<compile_context>
chip_gen: v7x
topology: tpu7x:2x2x1
jax: 0.10.0
libtpu: 0.0.40
codegen_flags: <defaults>
</compile_context>

<pallas_src>
import functools

import jax
import jax.numpy as jnp
from jax import lax
from jax.experimental import pallas as pl
from jax.experimental.pallas import tpu as pltpu


_UNROLL_MAX_GT = 16   # fully unroll the GRU time loop only for tiny GT


# ------------------------------ fused kernel ------------------------------

def _cpc_fused_kernel(*refs, conv_cfgs, BP, D, TS, GT, slope):
    n_conv = len(conv_cfgs)
    idx = 0
    ts_ref = refs[idx]; idx += 1                       # (1,) int32 in SMEM
    x_ref = refs[idx]; idx += 1                        # (Lpad0*BP, Cin0) time-major, batch-padded
    conv_w, conv_b = [], []
    for _ in range(n_conv):
        conv_w.append(refs[idx]); conv_b.append(refs[idx + 1]); idx += 2
    h0_ref = refs[idx]; idx += 1                       # (BP, 2D) packed [h_layer0 | h_layer1]
    (wih0_ref, whhblk_ref, bi0_ref, bhall_ref,
     wih1_ref, bi1_ref) = refs[idx:idx + 6]; idx += 6
    wk_ref = refs[idx]; bk_ref = refs[idx + 1]; idx += 2
    # outputs
    enc_ref = refs[idx]; pred_ref = refs[idx + 1]; hid_ref = refs[idx + 2]; idx += 3
    # scratch
    z_ref = refs[idx]; gi0_ref = refs[idx + 1]; h_ref = refs[idx + 2]; idx += 3
    pad_refs = list(refs[idx:idx + n_conv - 1]); idx += n_conv - 1

    f32 = jnp.float32
    ts_val = ts_ref[0]

    # ---------------- conv encoder: K accumulated matmuls per layer ----------------
    # (no im2col slabs; every tap slice starts on an 8-row sublane boundary)
    cur = None
    src = x_ref                                        # layer-0 input is pre-padded
    for i, (Cin, Cout, K, _s, pad, dil, L_in, L_out, _Lp) in enumerate(conv_cfgs):
        if i > 0:
            zp = pad_refs[i - 1]                       # ((L_in+2*pad)*BP, Cin)
            if pad > 0:
                zp[0:pad * BP] = jnp.zeros((pad * BP, Cin), f32)
                zp[(pad + L_in) * BP:(pad + L_in + pad) * BP] = jnp.zeros((pad * BP, Cin), f32)
            zp[pad * BP:(pad + L_in) * BP] = cur
            src = zp
        acc = None
        for k in range(K):                             # stride==1 -> contiguous taps
            start = k * dil * BP
            tap = src[start:start + L_out * BP]        # 8-row aligned slice
            part = jnp.dot(tap, conv_w[i][k], preferred_element_type=f32)
            acc = part if acc is None else acc + part
        acc = acc + conv_b[i][...]
        cur = jnp.where(acc > 0, acc, slope * acc)     # LeakyReLU
    z_ref[...] = cur                                   # (L_last*BP, D), rows = t*BP + b

    # ---------------- encoder_samples gather (dynamic time_sample) ----------------
    off = pl.multiple_of((ts_val + 1) * BP, BP)        # 8-row aligned dynamic offset
    enc_ref[0:(TS - 1) * BP] = z_ref[pl.ds(off, (TS - 1) * BP)]
    # TODO(synk): row ts-1 is torch.empty (uninitialized) in the reference;
    # we zero it for determinism.
    enc_ref[(TS - 1) * BP:TS * BP] = jnp.zeros((BP, D), f32)

    # ---------------- 2-layer GRU ----------------
    # Hoisted layer-0 input projection for all GT steps (bias already includes the
    # pre-summed r/z hh biases and b_in).
    gi0_ref[...] = (jnp.dot(z_ref[0:GT * BP], wih0_ref[...],
                            preferred_element_type=f32) + bi0_ref[...])

    whh_blk = whhblk_ref[...]                          # (2D, 6D) block-diag recurrent weight
    wih1 = wih1_ref[...]
    bh_all = jnp.broadcast_to(bhall_ref[...], (BP, 6 * D))   # hoisted bias broadcasts
    bi1 = jnp.broadcast_to(bi1_ref[...], (BP, 3 * D))

    def gru_step(gi0, h_pack):
        h1 = h_pack[:, :D]
        h2 = h_pack[:, D:]
        # one fused recurrent matmul for BOTH layers (block-diagonal RHS)
        gh_all = jnp.dot(h_pack, whh_blk, preferred_element_type=f32) + bh_all
        gh0 = gh_all[:, :3 * D]
        gh1 = gh_all[:, 3 * D:]
        # layer 0
        r0 = jax.nn.sigmoid(gi0[:, :D] + gh0[:, :D])
        z0 = jax.nn.sigmoid(gi0[:, D:2 * D] + gh0[:, D:2 * D])
        n0 = jnp.tanh(gi0[:, 2 * D:] + r0 * gh0[:, 2 * D:])
        h1n = (1.0 - z0) * n0 + z0 * h1
        # layer 1 (input projection depends on h1n, so it stays per-step)
        gi1 = jnp.dot(h1n, wih1, preferred_element_type=f32) + bi1
        r1 = jax.nn.sigmoid(gi1[:, :D] + gh1[:, :D])
        z1 = jax.nn.sigmoid(gi1[:, D:2 * D] + gh1[:, D:2 * D])
        n1 = jnp.tanh(gi1[:, 2 * D:] + r1 * gh1[:, 2 * D:])
        h2n = (1.0 - z1) * n1 + z1 * h2
        return jnp.concatenate([h1n, h2n], axis=-1)

    if GT <= _UNROLL_MAX_GT:
        # Fully unrolled; steps past time_sample are skipped at runtime (pl.when),
        # no mask-blend and no wasted matmuls.
        h_ref[...] = h0_ref[...].astype(f32)
        for t in range(GT):
            @pl.when(t <= ts_val)
            def _(t=t):
                h_ref[...] = gru_step(gi0_ref[t * BP:(t + 1) * BP], h_ref[...])
        h_final = h_ref[...]
    else:
        # Large GT: dynamic-bound loop natively skips dead steps and keeps code size flat.
        def body(t, h_pack):
            row = pl.multiple_of(t * BP, BP)
            return gru_step(gi0_ref[pl.ds(row, BP)], h_pack)
        h_final = lax.fori_loop(0, ts_val + 1, body, h0_ref[...].astype(f32))

    hid_ref[...] = h_final.astype(hid_ref.dtype)       # packed (BP, 2D)

    # ------------- Wk predictions: one (BP,D)@(D,TS*D) matmul, lane-dense store ----
    preds = jnp.dot(h_final[:, D:], wk_ref[...], preferred_element_type=f32) + bk_ref[...]
    pred_ref[...] = preds.astype(pred_ref.dtype)       # (BP, TS*D) = 128-lane store


# ------------------------------ wrapper ------------------------------

def build_cpc_forward(options):
    dims = options['conv_dims']
    conv_layer_dims = dims[:-1]
    D = dims[-1]
    TS = options['time_steps']
    B = options['batch_size']
    BP = max(8, ((B + 7) // 8) * 8)                    # batch rows padded to 8 sublanes
    L_seq = options['sequence_length']
    GT = int(L_seq / options['downsampling_factor']) - TS   # hindex = max prior length
    slope = 0.01                                             # nn.LeakyReLU default

    # Static conv geometry (2-D time-major layout: rows = t*BP + b).
    conv_cfgs = []
    L_in = L_seq
    for (ci, co, k, s, p, d) in conv_layer_dims:
        # TODO(synk): fused tap-accumulation path assumes stride == 1 (true here).
        assert s == 1, "fused CPC kernel currently assumes conv stride == 1"
        L_out = (L_in + 2 * p - d * (k - 1) - 1) // s + 1
        conv_cfgs.append((ci, co, k, s, p, d, L_in, L_out, L_in + 2 * p))
        L_in = L_out
    L_last = L_in
    conv_cfgs = tuple(conv_cfgs)
    assert conv_cfgs[-1][1] == D
    assert GT <= L_last and GT + TS - 1 <= L_last

    kernel = functools.partial(_cpc_fused_kernel, conv_cfgs=conv_cfgs,
                               BP=BP, D=D, TS=TS, GT=GT, slope=slope)

    n_conv = len(conv_cfgs)
    in_specs = ([pl.BlockSpec(memory_space=pltpu.MemorySpace.SMEM)]
                + [pl.BlockSpec(memory_space=pltpu.MemorySpace.VMEM)] * (10 + 2 * n_conv))
    out_shape = (jax.ShapeDtypeStruct((TS * BP, D), jnp.float32),     # encoder_samples (flat)
                 jax.ShapeDtypeStruct((BP, TS * D), jnp.float32),     # predictions (lane-dense)
                 jax.ShapeDtypeStruct((BP, 2 * D), jnp.float32))      # hidden (packed)
    out_specs = (pl.BlockSpec(memory_space=pltpu.MemorySpace.VMEM),) * 3

    scratch_shapes = [
        pltpu.VMEM((L_last * BP, D), jnp.float32),      # z features
        pltpu.VMEM((GT * BP, 3 * D), jnp.float32),      # hoisted layer-0 input projection
        pltpu.VMEM((BP, 2 * D), jnp.float32),           # packed GRU hidden carry
    ]
    for (ci, co, k, s, p, d, li, lo, lp) in conv_cfgs[1:]:
        scratch_shapes.append(pltpu.VMEM((lp * BP, ci), jnp.float32))   # padded conv inputs

    fused = pl.pallas_call(
        kernel,
        out_shape=out_shape,
        in_specs=in_specs,
        out_specs=out_specs,
        scratch_shapes=scratch_shapes,
    )

    @jax.jit
    def cpc_forward(x, hidden, time_sample, params):
        """x: (B, Cin, L) NCL; hidden: (2, B, D); time_sample: int32 array (1,)."""
        Cin0 = conv_cfgs[0][0]
        p0 = conv_cfgs[0][4]
        # One-time layout prep: NCL -> time-major channels-last, pad batch to BP
        # sublanes + time by p0, flatten to 2D (rows = t*BP + b).
        x_lbc = jnp.transpose(x, (2, 0, 1)).astype(jnp.float32)       # (L, B, Cin)
        x_pad = jnp.pad(x_lbc, ((p0, p0), (0, BP - B), (0, 0)))
        x2d = x_pad.reshape(-1, Cin0)                                 # (Lpad0*BP, Cin0)

        conv_args = []
        for lp_, (ci, co, k, *_rest) in zip(params['conv'], conv_cfgs):
            w = jnp.transpose(lp_['w'], (2, 1, 0))                    # (K, Cin, Cout) per-tap
            conv_args += [w, lp_['b'].reshape(1, co)]

        wih0, whh0, bih0, bhh0, wih1, whh1, bih1, bhh1 = params['gru']
        # Block-diagonal recurrent weight: one (BP,2D)@(2D,6D) matmul gives gh for both layers.
        z3 = jnp.zeros((D, 3 * D), jnp.float32)
        whh_blk = jnp.concatenate(
            [jnp.concatenate([whh0.T, z3], axis=1),
             jnp.concatenate([z3, whh1.T], axis=1)], axis=0)          # (2D, 6D)

        def prep_bias(bih, bhh):
            # gi bias carries summed r/z biases + b_in; gh bias keeps only b_hn.
            bi = jnp.concatenate([bih[:2 * D] + bhh[:2 * D], bih[2 * D:]]).reshape(1, 3 * D)
            bh = jnp.concatenate([jnp.zeros((2 * D,), bhh.dtype), bhh[2 * D:]]).reshape(1, 3 * D)
            return bi, bh

        bi0, bh0 = prep_bias(bih0, bhh0)
        bi1, bh1 = prep_bias(bih1, bhh1)
        bh_all = jnp.concatenate([bh0, bh1], axis=1)                  # (1, 6D)
        gru_args = [wih0.T, whh_blk, bi0, bh_all, wih1.T, bi1]

        wk_all = jnp.transpose(params['wk_w'], (2, 0, 1)).reshape(D, TS * D)  # (D, ts*D)
        bk_all = params['wk_b'].reshape(1, TS * D)

        # Packed hidden (BP, 2D): cols [0:D) = layer 0, [D:2D) = layer 1.
        h_pack = jnp.transpose(hidden, (1, 0, 2)).reshape(B, 2 * D)
        h_pack = jnp.pad(h_pack, ((0, BP - B), (0, 0))).astype(jnp.float32)

        ts_arr = jnp.asarray(time_sample, jnp.int32).reshape(1)

        enc_flat, pred_flat, hid_flat = fused(
            ts_arr, x2d, *conv_args, h_pack, *gru_args, wk_all, bk_all)

        encoder_samples = enc_flat.reshape(TS, BP, D)[:, :B, :]
        predictions = jnp.transpose(pred_flat.reshape(BP, TS, D), (1, 0, 2))[:, :B, :]
        hidden_out = jnp.transpose(hid_flat[:B].reshape(B, 2, D), (1, 0, 2))
        return encoder_samples, predictions, hidden_out

    return cpc_forward


# ------------------------------ main ------------------------------

if __name__ == "__main__":
    options = {
        # conv layer specs (in, out, kernel, stride, padding, dilation); last entry = feature dim
        'conv_dims': [[4, 16, 3, 1, 1, 1], [16, 32, 3, 1, 1, 1], 32],
        'img_size': 16,
        'isBatchNorm': False,
        'isDropout': False,
        'dropout_rate': 0.0,
        'time_steps': 4,
        'batch_size': 2,
        'sequence_length': 16,
        'downsampling_factor': 1,
    }
    dims = options['conv_dims']
    D = dims[-1]
    ts = options['time_steps']
    bs = options['batch_size']
    hindex = int(options['sequence_length'] / options['downsampling_factor']) - ts

    key = jax.random.PRNGKey(0)
    ks = iter(jax.random.split(key, 32))

    conv_params = []
    for (ci, co, k, s, p, d) in dims[:-1]:
        conv_params.append({
            'w': 0.1 * jax.random.normal(next(ks), (co, ci, k), jnp.float32),
            'b': 0.1 * jax.random.normal(next(ks), (co,), jnp.float32),
        })

    gru_params = []
    in_dim = D
    for _layer in range(2):
        gru_params += [
            0.1 * jax.random.normal(next(ks), (3 * D, in_dim), jnp.float32),  # weight_ih
            0.1 * jax.random.normal(next(ks), (3 * D, D), jnp.float32),       # weight_hh
            0.1 * jax.random.normal(next(ks), (3 * D,), jnp.float32),         # bias_ih
            0.1 * jax.random.normal(next(ks), (3 * D,), jnp.float32),         # bias_hh
        ]
        in_dim = D
    gru_params = tuple(gru_params)

    wk_w = 0.1 * jax.random.normal(next(ks), (ts, D, D), jnp.float32)
    wk_b = 0.1 * jax.random.normal(next(ks), (ts, D), jnp.float32)

    params = {'conv': conv_params, 'gru': gru_params, 'wk_w': wk_w, 'wk_b': wk_b}

    x = jax.random.normal(next(ks), (bs, dims[0][0], options['sequence_length']),
                          jnp.float32)                         # NCL like torch Conv1d
    hidden = jnp.zeros((2, bs, D), jnp.float32)

    # th.randint(0, hindex, (1,)) equivalent — kept as a device int32 array so
    # changing time_sample does NOT trigger a recompile or host sync.
    time_sample = jax.random.randint(next(ks), (1,), 0, hindex, dtype=jnp.int32)

    fwd = build_cpc_forward(options)

    enc_samples, preds, hidden_out = fwd(x, hidden, time_sample, params)
    jax.block_until_ready((enc_samples, preds, hidden_out))

    # Second call with a different (boundary) time_sample reuses the same compiled kernel.
    enc2, preds2, hid2 = fwd(x, hidden, jnp.array([0], jnp.int32), params)
    jax.block_until_ready((enc2, preds2, hid2))

    assert enc_samples.shape == (ts, bs, D)
    assert preds.shape == (ts, bs, D)
    assert hidden_out.shape == (2, bs, D)
    assert bool(jnp.all(jnp.isfinite(enc_samples)))
    assert bool(jnp.all(jnp.isfinite(preds))) and bool(jnp.all(jnp.isfinite(hidden_out)))
    assert bool(jnp.all(jnp.isfinite(preds2))) and bool(jnp.all(jnp.isfinite(hid2)))
    print("KERNEL_OK")
</pallas_src>

<mosaic_0001>
module attributes {stable_mosaic.version = 11 : i64} {
  func.func @_cpc_fused_kernel(%arg0: memref<1xi32, #tpu.memory_space<smem>>, %arg1: memref<144x4xf32, #tpu.memory_space<vmem>>, %arg2: memref<3x4x16xf32, #tpu.memory_space<vmem>>, %arg3: memref<1x16xf32, #tpu.memory_space<vmem>>, %arg4: memref<3x16x32xf32, #tpu.memory_space<vmem>>, %arg5: memref<1x32xf32, #tpu.memory_space<vmem>>, %arg6: memref<8x64xf32, #tpu.memory_space<vmem>>, %arg7: memref<32x96xf32, #tpu.memory_space<vmem>>, %arg8: memref<64x192xf32, #tpu.memory_space<vmem>>, %arg9: memref<1x96xf32, #tpu.memory_space<vmem>>, %arg10: memref<1x192xf32, #tpu.memory_space<vmem>>, %arg11: memref<32x96xf32, #tpu.memory_space<vmem>>, %arg12: memref<1x96xf32, #tpu.memory_space<vmem>>, %arg13: memref<32x128xf32, #tpu.memory_space<vmem>>, %arg14: memref<1x128xf32, #tpu.memory_space<vmem>>, %arg15: memref<32x32xf32, #tpu.memory_space<vmem>>, %arg16: memref<8x128xf32, #tpu.memory_space<vmem>>, %arg17: memref<8x64xf32, #tpu.memory_space<vmem>>, %arg18: memref<128x32xf32, #tpu.memory_space<vmem>>, %arg19: memref<96x96xf32, #tpu.memory_space<vmem>>, %arg20: memref<8x64xf32, #tpu.memory_space<vmem>>, %arg21: memref<144x16xf32, #tpu.memory_space<vmem>>) attributes {dimension_semantics = [], scalar_prefetch = 0 : i64, scratch_operands = 4 : i64, tpu.core_type = #tpu.core_type<tc>} {
    %c0 = arith.constant 0 : index
    %0 = memref.load %arg0[%c0] : memref<1xi32, #tpu.memory_space<smem>>
    %c0_0 = arith.constant 0 : index
    %c0_1 = arith.constant 0 : index
    %1 = vector.load %arg1[%c0_0, %c0_1] : memref<144x4xf32, #tpu.memory_space<vmem>>, vector<128x4xf32>
    %c0_2 = arith.constant 0 : index
    %c0_3 = arith.constant 0 : index
    %c0_4 = arith.constant 0 : index
    %2 = vector.load %arg2[%c0_2, %c0_3, %c0_4] : memref<3x4x16xf32, #tpu.memory_space<vmem>>, vector<1x4x16xf32>
    %3 = vector.shape_cast %2 : vector<1x4x16xf32> to vector<4x16xf32>
    %cst = arith.constant dense<0.000000e+00> : vector<128x16xf32>
    %4 = tpu.matmul %1, %3, %cst {dimension_numbers = #tpu.dot_dimension_numbers<[1], [0], [0], [1], [0, 0, 1, 1], [], []>} : vector<128x4xf32>, vector<4x16xf32>, vector<128x16xf32> -> vector<128x16xf32>
    %c8 = arith.constant 8 : index
    %c0_5 = arith.constant 0 : index
    %5 = vector.load %arg1[%c8, %c0_5] : memref<144x4xf32, #tpu.memory_space<vmem>>, vector<128x4xf32>
    %c1 = arith.constant 1 : index
    %c0_6 = arith.constant 0 : index
    %c0_7 = arith.constant 0 : index
    %6 = vector.load %arg2[%c1, %c0_6, %c0_7] : memref<3x4x16xf32, #tpu.memory_space<vmem>>, vector<1x4x16xf32>
    %7 = vector.shape_cast %6 : vector<1x4x16xf32> to vector<4x16xf32>
    %cst_8 = arith.constant dense<0.000000e+00> : vector<128x16xf32>
    %8 = tpu.matmul %5, %7, %cst_8 {dimension_numbers = #tpu.dot_dimension_numbers<[1], [0], [0], [1], [0, 0, 1, 1], [], []>} : vector<128x4xf32>, vector<4x16xf32>, vector<128x16xf32> -> vector<128x16xf32>
    %9 = arith.addf %4, %8 : vector<128x16xf32>
    %c16 = arith.constant 16 : index
    %c0_9 = arith.constant 0 : index
    %10 = vector.load %arg1[%c16, %c0_9] : memref<144x4xf32, #tpu.memory_space<vmem>>, vector<128x4xf32>
    %c2 = arith.constant 2 : index
    %c0_10 = arith.constant 0 : index
    %c0_11 = arith.constant 0 : index
    %11 = vector.load %arg2[%c2, %c0_10, %c0_11] : memref<3x4x16xf32, #tpu.memory_space<vmem>>, vector<1x4x16xf32>
    %12 = vector.shape_cast %11 : vector<1x4x16xf32> to vector<4x16xf32>
    %cst_12 = arith.constant dense<0.000000e+00> : vector<128x16xf32>
    %13 = tpu.matmul %10, %12, %cst_12 {dimension_numbers = #tpu.dot_dimension_numbers<[1], [0], [0], [1], [0, 0, 1, 1], [], []>} : vector<128x4xf32>, vector<4x16xf32>, vector<128x16xf32> -> vector<128x16xf32>
    %14 = arith.addf %9, %13 : vector<128x16xf32>
    %c0_13 = arith.constant 0 : index
    %c0_14 = arith.constant 0 : index
    %15 = vector.load %arg3[%c0_13, %c0_14] : memref<1x16xf32, #tpu.memory_space<vmem>>, vector<1x16xf32>
    %16 = vector.broadcast %15 : vector<1x16xf32> to vector<128x16xf32>
    %17 = arith.addf %14, %16 : vector<128x16xf32>
    %cst_15 = arith.constant 0.000000e+00 : f32
    %18 = vector.broadcast %cst_15 : f32 to vector<128x16xf32>
    %19 = arith.cmpf ogt, %17, %18 : vector<128x16xf32>
    %cst_16 = arith.constant 0.00999999977 : f32
    %20 = vector.broadcast %cst_16 : f32 to vector<128x16xf32>
    %21 = arith.mulf %20, %17 : vector<128x16xf32>
    %22 = arith.select %19, %17, %21 : vector<128x16xi1>, vector<128x16xf32>
    %cst_17 = arith.constant 0.000000e+00 : f32
    %23 = vector.broadcast %cst_17 : f32 to vector<8x16xf32>
    %c0_18 = arith.constant 0 : index
    %c0_19 = arith.constant 0 : index
    %24 = vector.load %arg21[%c0_18, %c0_19] : memref<144x16xf32, #tpu.memory_space<vmem>>, vector<8x16xf32>
    tpu.vector_store %arg21[%c0_18, %c0_19], %23 {strides = array<i32>} : memref<144x16xf32, #tpu.memory_space<vmem>>, vector<8x16xf32>,
    %cst_20 = arith.constant 0.000000e+00 : f32
    %25 = vector.broadcast %cst_20 : f32 to vector<8x16xf32>
    %c136 = arith.constant 136 : index
    %c0_21 = arith.constant 0 : index
    %26 = vector.load %arg21[%c136, %c0_21] : memref<144x16xf32, #tpu.memory_space<vmem>>, vector<8x16xf32>
    tpu.vector_store %arg21[%c136, %c0_21], %25 {strides = array<i32>} : memref<144x16xf32, #tpu.memory_space<vmem>>, vector<8x16xf32>,
    %c8_22 = arith.constant 8 : index
    %c0_23 = arith.constant 0 : index
    %27 = vector.load %arg21[%c8_22, %c0_23] : memref<144x16xf32, #tpu.memory_space<vmem>>, vector<128x16xf32>
    tpu.vector_store %arg21[%c8_22, %c0_23], %22 {strides = array<i32>} : memref<144x16xf32, #tpu.memory_space<vmem>>, vector<128x16xf32>,
    %c0_24 = arith.constant 0 : index
    %c0_25 = arith.constant 0 : index
    %28 = vector.load %arg21[%c0_24, %c0_25] : memref<144x16xf32, #tpu.memory_space<vmem>>, vector<128x16xf32>
    %c0_26 = arith.constant 0 : index
    %c0_27 = arith.constant 0 : index
    %c0_28 = arith.constant 0 : index
    %29 = vector.load %arg4[%c0_26, %c0_27, %c0_28] : memref<3x16x32xf32, #tpu.memory_space<vmem>>, vector<1x16x32xf32>
    %30 = vector.shape_cast %29 : vector<1x16x32xf32> to vector<16x32xf32>
    %cst_29 = arith.constant dense<0.000000e+00> : vector<128x32xf32>
    %31 = tpu.matmul %28, %30, %cst_29 {dimension_numbers = #tpu.dot_dimension_numbers<[1], [0], [0], [1], [0, 0, 1, 1], [], []>} : vector<128x16xf32>, vector<16x32xf32>, vector<128x32xf32> -> vector<128x32xf32>
    %c8_30 = arith.constant 8 : index
    %c0_31 = arith.constant 0 : index
    %32 = vector.load %arg21[%c8_30, %c0_31] : memref<144x16xf32, #tpu.memory_space<vmem>>, vector<128x16xf32>
    %c1_32 = arith.constant 1 : index
    %c0_33 = arith.constant 0 : index
    %c0_34 = arith.constant 0 : index
    %33 = vector.load %arg4[%c1_32, %c0_33, %c0_34] : memref<3x16x32xf32, #tpu.memory_space<vmem>>, vector<1x16x32xf32>
    %34 = vector.shape_cast %33 : vector<1x16x32xf32> to vector<16x32xf32>
    %cst_35 = arith.constant dense<0.000000e+00> : vector<128x32xf32>
    %35 = tpu.matmul %32, %34, %cst_35 {dimension_numbers = #tpu.dot_dimension_numbers<[1], [0], [0], [1], [0, 0, 1, 1], [], []>} : vector<128x16xf32>, vector<16x32xf32>, vector<128x32xf32> -> vector<128x32xf32>
    %36 = arith.addf %31, %35 : vector<128x32xf32>
    %c16_36 = arith.constant 16 : index
    %c0_37 = arith.constant 0 : index
    %37 = vector.load %arg21[%c16_36, %c0_37] : memref<144x16xf32, #tpu.memory_space<vmem>>, vector<128x16xf32>
    %c2_38 = arith.constant 2 : index
    %c0_39 = arith.constant 0 : index
    %c0_40 = arith.constant 0 : index
    %38 = vector.load %arg4[%c2_38, %c0_39, %c0_40] : memref<3x16x32xf32, #tpu.memory_space<vmem>>, vector<1x16x32xf32>
    %39 = vector.shape_cast %38 : vector<1x16x32xf32> to vector<16x32xf32>
    %cst_41 = arith.constant dense<0.000000e+00> : vector<128x32xf32>
    %40 = tpu.matmul %37, %39, %cst_41 {dimension_numbers = #tpu.dot_dimension_numbers<[1], [0], [0], [1], [0, 0, 1, 1], [], []>} : vector<128x16xf32>, vector<16x32xf32>, vector<128x32xf32> -> vector<128x32xf32>
    %41 = arith.addf %36, %40 : vector<128x32xf32>
    %c0_42 = arith.constant 0 : index
    %c0_43 = arith.constant 0 : index
    %42 = vector.load %arg5[%c0_42, %c0_43] : memref<1x32xf32, #tpu.memory_space<vmem>>, vector<1x32xf32>
    %43 = vector.broadcast %42 : vector<1x32xf32> to vector<128x32xf32>
    %44 = arith.addf %41, %43 : vector<128x32xf32>
    %cst_44 = arith.constant 0.000000e+00 : f32
    %45 = vector.broadcast %cst_44 : f32 to vector<128x32xf32>
    %46 = arith.cmpf ogt, %44, %45 : vector<128x32xf32>
    %cst_45 = arith.constant 0.00999999977 : f32
    %47 = vector.broadcast %cst_45 : f32 to vector<128x32xf32>
    %48 = arith.mulf %47, %44 : vector<128x32xf32>
    %49 = arith.select %46, %44, %48 : vector<128x32xi1>, vector<128x32xf32>
    %c0_46 = arith.constant 0 : index
    %c0_47 = arith.constant 0 : index
    %50 = vector.load %arg18[%c0_46, %c0_47] : memref<128x32xf32, #tpu.memory_space<vmem>>, vector<128x32xf32>
    tpu.vector_store %arg18[%c0_46, %c0_47], %49 {strides = array<i32>} : memref<128x32xf32, #tpu.memory_space<vmem>>, vector<128x32xf32>,
    %c1_i32 = arith.constant 1 : i32
    %51 = arith.addi %0, %c1_i32 : i32
    %c8_i32 = arith.constant 8 : i32
    %52 = arith.muli %51, %c8_i32 : i32
    %53 = tpu.assume_multiple %52, 8 : i32
    %54 = arith.index_cast %53 : i32 to index
    %c0_48 = arith.constant 0 : index
    %55 = vector.load %arg18[%54, %c0_48] : memref<128x32xf32, #tpu.memory_space<vmem>>, vector<24x32xf32>
    %c0_49 = arith.constant 0 : index
    %c0_50 = arith.constant 0 : index
    %56 = vector.load %arg15[%c0_49, %c0_50] : memref<32x32xf32, #tpu.memory_space<vmem>>, vector<24x32xf32>
    tpu.vector_store %arg15[%c0_49, %c0_50], %55 {strides = array<i32>} : memref<32x32xf32, #tpu.memory_space<vmem>>, vector<24x32xf32>,
    %cst_51 = arith.constant 0.000000e+00 : f32
    %57 = vector.broadcast %cst_51 : f32 to vector<8x32xf32>
    %c24 = arith.constant 24 : index
    %c0_52 = arith.constant 0 : index
    %58 = vector.load %arg15[%c24, %c0_52] : memref<32x32xf32, #tpu.memory_space<vmem>>, vector<8x32xf32>
    tpu.vector_store %arg15[%c24, %c0_52], %57 {strides = array<i32>} : memref<32x32xf32, #tpu.memory_space<vmem>>, vector<8x32xf32>,
    %c0_53 = arith.constant 0 : index
    %c0_54 = arith.constant 0 : index
    %59 = vector.load %arg18[%c0_53, %c0_54] : memref<128x32xf32, #tpu.memory_space<vmem>>, vector<96x32xf32>
    %c0_55 = arith.constant 0 : index
    %c0_56 = arith.constant 0 : index
    %60 = vector.load %arg7[%c0_55, %c0_56] : memref<32x96xf32, #tpu.memory_space<vmem>>, vector<32x96xf32>
    %cst_57 = arith.constant dense<0.000000e+00> : vector<96x96xf32>
    %61 = tpu.matmul %59, %60, %cst_57 {dimension_numbers = #tpu.dot_dimension_numbers<[1], [0], [0], [1], [0, 0, 1, 1], [], []>} : vector<96x32xf32>, vector<32x96xf32>, vector<96x96xf32> -> vector<96x96xf32>
    %c0_58 = arith.constant 0 : index
    %c0_59 = arith.constant 0 : index
    %62 = vector.load %arg9[%c0_58, %c0_59] : memref<1x96xf32, #tpu.memory_space<vmem>>, vector<1x96xf32>
    %63 = vector.broadcast %62 : vector<1x96xf32> to vector<96x96xf32>
    %64 = arith.addf %61, %63 : vector<96x96xf32>
    %c0_60 = arith.constant 0 : index
    %c0_61 = arith.constant 0 : index
    %65 = vector.load %arg19[%c0_60, %c0_61] : memref<96x96xf32, #tpu.memory_space<vmem>>, vector<96x96xf32>
    tpu.vector_store %arg19[%c0_60, %c0_61], %64 {strides = array<i32>} : memref<96x96xf32, #tpu.memory_space<vmem>>, vector<96x96xf32>,
    %c0_62 = arith.constant 0 : index
    %c0_63 = arith.constant 0 : index
    %66 = vector.load %arg8[%c0_62, %c0_63] : memref<64x192xf32, #tpu.memory_space<vmem>>, vector<64x192xf32>
    %c0_64 = arith.constant 0 : index
    %c0_65 = arith.constant 0 : index
    %67 = vector.load %arg11[%c0_64, %c0_65] : memref<32x96xf32, #tpu.memory_space<vmem>>, vector<32x96xf32>
    %c0_66 = arith.constant 0 : index
    %c0_67 = arith.constant 0 : index
    %68 = vector.load %arg10[%c0_66, %c0_67] : memref<1x192xf32, #tpu.memory_space<vmem>>, vector<1x192xf32>
    %69 = vector.shape_cast %68 : vector<1x192xf32> to vector<1x192xf32>
    %70 = vector.broadcast %69 : vector<1x192xf32> to vector<8x192xf32>
    %c0_68 = arith.constant 0 : index
    %c0_69 = arith.constant 0 : index
    %71 = vector.load %arg12[%c0_68, %c0_69] : memref<1x96xf32, #tpu.memory_space<vmem>>, vector<1x96xf32>
    %72 = vector.shape_cast %71 : vector<1x96xf32> to vector<1x96xf32>
    %73 = vector.broadcast %72 : vector<1x96xf32> to vector<8x96xf32>
    %c0_70 = arith.constant 0 : index
    %c0_71 = arith.constant 0 : index
    %74 = vector.load %arg6[%c0_70, %c0_71] : memref<8x64xf32, #tpu.memory_space<vmem>>, vector<8x64xf32>
    %c0_72 = arith.constant 0 : index
    %c0_73 = arith.constant 0 : index
    %75 = vector.load %arg20[%c0_72, %c0_73] : memref<8x64xf32, #tpu.memory_space<vmem>>, vector<8x64xf32>
    tpu.vector_store %arg20[%c0_72, %c0_73], %74 {strides = array<i32>} : memref<8x64xf32, #tpu.memory_space<vmem>>, vector<8x64xf32>,
    %c0_i32 = arith.constant 0 : i32
    %76 = arith.cmpi sge, %0, %c0_i32 : i32
    %77 = arith.extui %76 : i1 to i32
    %c0_i32_74 = arith.constant 0 : i32
    %78 = arith.cmpi ne, %77, %c0_i32_74 : i32
    scf.if %78 {
      %c0_99 = arith.constant 0 : index
      %c0_100 = arith.constant 0 : index
      %121 = vector.load %arg19[%c0_99, %c0_100] : memref<96x96xf32, #tpu.memory_space<vmem>>, vector<8x96xf32>
      %c0_101 = arith.constant 0 : index
      %c0_102 = arith.constant 0 : index
      %122 = vector.load %arg20[%c0_101, %c0_102] : memref<8x64xf32, #tpu.memory_space<vmem>>, vector<8x64xf32>
      %123 = vector.extract_strided_slice %122 {offsets = [0, 0], sizes = [8, 32], strides = [1, 1]} : vector<8x64xf32> to vector<8x32xf32>
      %124 = vector.extract_strided_slice %122 {offsets = [0, 32], sizes = [8, 32], strides = [1, 1]} : vector<8x64xf32> to vector<8x32xf32>
      %cst_103 = arith.constant dense<0.000000e+00> : vector<8x192xf32>
      %125 = tpu.matmul %122, %66, %cst_103 {dimension_numbers = #tpu.dot_dimension_numbers<[1], [0], [0], [1], [0, 0, 1, 1], [], []>} : vector<8x64xf32>, vector<64x192xf32>, vector<8x192xf32> -> vector<8x192xf32>
      %126 = arith.addf %125, %70 : vector<8x192xf32>
      %127 = vector.extract_strided_slice %126 {offsets = [0, 0], sizes = [8, 96], strides = [1, 1]} : vector<8x192xf32> to vector<8x96xf32>
      %128 = vector.extract_strided_slice %126 {offsets = [0, 96], sizes = [8, 96], strides = [1, 1]} : vector<8x192xf32> to vector<8x96xf32>
      %129 = vector.extract_strided_slice %121 {offsets = [0, 0], sizes = [8, 32], strides = [1, 1]} : vector<8x96xf32> to vector<8x32xf32>
      %130 = vector.extract_strided_slice %127 {offsets = [0, 0], sizes = [8, 32], strides = [1, 1]} : vector<8x96xf32> to vector<8x32xf32>
      %131 = arith.addf %129, %130 : vector<8x32xf32>
      %132 = arith.negf %131 : vector<8x32xf32>
      %133 = math.exp %132 : vector<8x32xf32>
      %cst_104 = arith.constant 1.000000e+00 : f32
      %134 = vector.broadcast %cst_104 : f32 to vector<8x32xf32>
      %135 = arith.addf %134, %133 : vector<8x32xf32>
      %136 = arith.divf %134, %135 : vector<8x32xf32>
      %137 = vector.extract_strided_slice %121 {offsets = [0, 32], sizes = [8, 32], strides = [1, 1]} : vector<8x96xf32> to vector<8x32xf32>
      %138 = vector.extract_strided_slice %127 {offsets = [0, 32], sizes = [8, 32], strides = [1, 1]} : vector<8x96xf32> to vector<8x32xf32>
      %139 = arith.addf %137, %138 : vector<8x32xf32>
      %140 = arith.negf %139 : vector<8x32xf32>
      %141 = math.exp %140 : vector<8x32xf32>
      %cst_105 = arith.constant 1.000000e+00 : f32
      %142 = vector.broadcast %cst_105 : f32 to vector<8x32xf32>
      %143 = arith.addf %142, %141 : vector<8x32xf32>
      %144 = arith.divf %142, %143 : vector<8x32xf32>
      %145 = vector.extract_strided_slice %121 {offsets = [0, 64], sizes = [8, 32], strides = [1, 1]} : vector<8x96xf32> to vector<8x32xf32>
      %146 = vector.extract_strided_slice %127 {offsets = [0, 64], sizes = [8, 32], strides = [1, 1]} : vector<8x96xf32> to vector<8x32xf32>
      %147 = arith.mulf %136, %146 : vector<8x32xf32>
      %148 = arith.addf %145, %147 : vector<8x32xf32>
      %149 = math.tanh %148 : vector<8x32xf32>
      %cst_106 = arith.constant 1.000000e+00 : f32
      %150 = vector.broadcast %cst_106 : f32 to vector<8x32xf32>
      %151 = arith.subf %150, %144 : vector<8x32xf32>
      %152 = arith.mulf %151, %149 : vector<8x32xf32>
      %153 = arith.mulf %144, %123 : vector<8x32xf32>
      %154 = arith.addf %152, %153 : vector<8x32xf32>
      %cst_107 = arith.constant dense<0.000000e+00> : vector<8x96xf32>
      %155 = tpu.matmul %154, %67, %cst_107 {dimension_numbers = #tpu.dot_dimension_numbers<[1], [0], [0], [1], [0, 0, 1, 1], [], []>} : vector<8x32xf32>, vector<32x96xf32>, vector<8x96xf32> -> vector<8x96xf32>
      %156 = arith.addf %155, %73 : vector<8x96xf32>
      %157 = vector.extract_strided_slice %156 {offsets = [0, 0], sizes = [8, 32], strides = [1, 1]} : vector<8x96xf32> to vector<8x32xf32>
      %158 = vector.extract_strided_slice %128 {offsets = [0, 0], sizes = [8, 32], strides = [1, 1]} : vector<8x96xf32> to vector<8x32xf32>
      %159 = arith.addf %157, %158 : vector<8x32xf32>
      %160 = arith.negf %159 : vector<8x32xf32>
      %161 = math.exp %160 : vector<8x32xf32>
      %cst_108 = arith.constant 1.000000e+00 : f32
      %162 = vector.broadcast %cst_108 : f32 to vector<8x32xf32>
      %163 = arith.addf %162, %161 : vector<8x32xf32>
      %164 = arith.divf %162, %163 : vector<8x32xf32>
      %165 = vector.extract_strided_slice %156 {offsets = [0, 32], sizes = [8, 32], strides = [1, 1]} : vector<8x96xf32> to vector<8x32xf32>
      %166 = vector.extract_strided_slice %128 {offsets = [0, 32], sizes = [8, 32], strides = [1, 1]} : vector<8x96xf32> to vector<8x32xf32>
      %167 = arith.addf %165, %166 : vector<8x32xf32>
      %168 = arith.negf %167 : vector<8x32xf32>
      %169 = math.exp %168 : vector<8x32xf32>
      %cst_109 = arith.constant 1.000000e+00 : f32
      %170 = vector.broadcast %cst_109 : f32 to vector<8x32xf32>
      %171 = arith.addf %170, %169 : vector<8x32xf32>
      %172 = arith.divf %170, %171 : vector<8x32xf32>
      %173 = vector.extract_strided_slice %156 {offsets = [0, 64], sizes = [8, 32], strides = [1, 1]} : vector<8x96xf32> to vector<8x32xf32>
      %174 = vector.extract_strided_slice %128 {offsets = [0, 64], sizes = [8, 32], strides = [1, 1]} : vector<8x96xf32> to vector<8x32xf32>
      %175 = arith.mulf %164, %174 : vector<8x32xf32>
      %176 = arith.addf %173, %175 : vector<8x32xf32>
      %177 = math.tanh %176 : vector<8x32xf32>
      %cst_110 = arith.constant 1.000000e+00 : f32
      %178 = vector.broadcast %cst_110 : f32 to vector<8x32xf32>
      %179 = arith.subf %178, %172 : vector<8x32xf32>
      %180 = arith.mulf %179, %177 : vector<8x32xf32>
      %181 = arith.mulf %172, %124 : vector<8x32xf32>
      %182 = arith.addf %180, %181 : vector<8x32xf32>
      %183 = tpu.concatenate %154, %182 in 1 : vector<8x32xf32>, vector<8x32xf32> -> vector<8x64xf32>
      %c0_111 = arith.constant 0 : index
      %c0_112 = arith.constant 0 : index
      %184 = vector.load %arg20[%c0_111, %c0_112] : memref<8x64xf32, #tpu.memory_space<vmem>>, vector<8x64xf32>
      tpu.vector_store %arg20[%c0_111, %c0_112], %183 {strides = array<i32>} : memref<8x64xf32, #tpu.memory_space<vmem>>, vector<8x64xf32>,
    } else {
    }
    %c1_i32_75 = arith.constant 1 : i32
    %79 = arith.cmpi sge, %0, %c1_i32_75 : i32
    %80 = arith.extui %79 : i1 to i32
    %c0_i32_76 = arith.constant 0 : i32
    %81 = arith.cmpi ne, %80, %c0_i32_76 : i32
    scf.if %81 {
      %c8_99 = arith.constant 8 : index
      %c0_100 = arith.constant 0 : index
      %121 = vector.load %arg19[%c8_99, %c0_100] : memref<96x96xf32, #tpu.memory_space<vmem>>, vector<8x96xf32>
      %c0_101 = arith.constant 0 : index
      %c0_102 = arith.constant 0 : index
      %122 = vector.load %arg20[%c0_101, %c0_102] : memref<8x64xf32, #tpu.memory_space<vmem>>, vector<8x64xf32>
      %123 = vector.extract_strided_slice %122 {offsets = [0, 0], sizes = [8, 32], strides = [1, 1]} : vector<8x64xf32> to vector<8x32xf32>
      %124 = vector.extract_strided_slice %122 {offsets = [0, 32], sizes = [8, 32], strides = [1, 1]} : vector<8x64xf32> to vector<8x32xf32>
      %cst_103 = arith.constant dense<0.000000e+00> : vector<8x192xf32>
      %125 = tpu.matmul %122, %66, %cst_103 {dimension_numbers = #tpu.dot_dimension_numbers<[1], [0], [0], [1], [0, 0, 1, 1], [], []>} : vector<8x64xf32>, vector<64x192xf32>, vector<8x192xf32> -> vector<8x192xf32>
      %126 = arith.addf %125, %70 : vector<8x192xf32>
      %127 = vector.extract_strided_slice %126 {offsets = [0, 0], sizes = [8, 96], strides = [1, 1]} : vector<8x192xf32> to vector<8x96xf32>
      %128 = vector.extract_strided_slice %126 {offsets = [0, 96], sizes = [8, 96], strides = [1, 1]} : vector<8x192xf32> to vector<8x96xf32>
      %129 = vector.extract_strided_slice %121 {offsets = [0, 0], sizes = [8, 32], strides = [1, 1]} : vector<8x96xf32> to vector<8x32xf32>
      %130 = vector.extract_strided_slice %127 {offsets = [0, 0], sizes = [8, 32], strides = [1, 1]} : vector<8x96xf32> to vector<8x32xf32>
      %131 = arith.addf %129, %130 : vector<8x32xf32>
      %132 = arith.negf %131 : vector<8x32xf32>
      %133 = math.exp %132 : vector<8x32xf32>
      %cst_104 = arith.constant 1.000000e+00 : f32
      %134 = vector.broadcast %cst_104 : f32 to vector<8x32xf32>
      %135 = arith.addf %134, %133 : vector<8x32xf32>
      %136 = arith.divf %134, %135 : vector<8x32xf32>
      %137 = vector.extract_strided_slice %121 {offsets = [0, 32], sizes = [8, 32], strides = [1, 1]} : vector<8x96xf32> to vector<8x32xf32>
      %138 = vector.extract_strided_slice %127 {offsets = [0, 32], sizes = [8, 32], strides = [1, 1]} : vector<8x96xf32> to vector<8x32xf32>
      %139 = arith.addf %137, %138 : vector<8x32xf32>
      %140 = arith.negf %139 : vector<8x32xf32>
      %141 = math.exp %140 : vector<8x32xf32>
      %cst_105 = arith.constant 1.000000e+00 : f32
      %142 = vector.broadcast %cst_105 : f32 to vector<8x32xf32>
      %143 = arith.addf %142, %141 : vector<8x32xf32>
      %144 = arith.divf %142, %143 : vector<8x32xf32>
      %145 = vector.extract_strided_slice %121 {offsets = [0, 64], sizes = [8, 32], strides = [1, 1]} : vector<8x96xf32> to vector<8x32xf32>
      %146 = vector.extract_strided_slice %127 {offsets = [0, 64], sizes = [8, 32], strides = [1, 1]} : vector<8x96xf32> to vector<8x32xf32>
      %147 = arith.mulf %136, %146 : vector<8x32xf32>
      %148 = arith.addf %145, %147 : vector<8x32xf32>
      %149 = math.tanh %148 : vector<8x32xf32>
      %cst_106 = arith.constant 1.000000e+00 : f32
      %150 = vector.broadcast %cst_106 : f32 to vector<8x32xf32>
      %151 = arith.subf %150, %144 : vector<8x32xf32>
      %152 = arith.mulf %151, %149 : vector<8x32xf32>
      %153 = arith.mulf %144, %123 : vector<8x32xf32>
      %154 = arith.addf %152, %153 : vector<8x32xf32>
      %cst_107 = arith.constant dense<0.000000e+00> : vector<8x96xf32>
      %155 = tpu.matmul %154, %67, %cst_107 {dimension_numbers = #tpu.dot_dimension_numbers<[1], [0], [0], [1], [0, 0, 1, 1], [], []>} : vector<8x32xf32>, vector<32x96xf32>, vector<8x96xf32> -> vector<8x96xf32>
      %156 = arith.addf %155, %73 : vector<8x96xf32>
      %157 = vector.extract_strided_slice %156 {offsets = [0, 0], sizes = [8, 32], strides = [1, 1]} : vector<8x96xf32> to vector<8x32xf32>
      %158 = vector.extract_strided_slice %128 {offsets = [0, 0], sizes = [8, 32], strides = [1, 1]} : vector<8x96xf32> to vector<8x32xf32>
      %159 = arith.addf %157, %158 : vector<8x32xf32>
      %160 = arith.negf %159 : vector<8x32xf32>
      %161 = math.exp %160 : vector<8x32xf32>
      %cst_108 = arith.constant 1.000000e+00 : f32
      %162 = vector.broadcast %cst_108 : f32 to vector<8x32xf32>
      %163 = arith.addf %162, %161 : vector<8x32xf32>
      %164 = arith.divf %162, %163 : vector<8x32xf32>
      %165 = vector.extract_strided_slice %156 {offsets = [0, 32], sizes = [8, 32], strides = [1, 1]} : vector<8x96xf32> to vector<8x32xf32>
      %166 = vector.extract_strided_slice %128 {offsets = [0, 32], sizes = [8, 32], strides = [1, 1]} : vector<8x96xf32> to vector<8x32xf32>
      %167 = arith.addf %165, %166 : vector<8x32xf32>
      %168 = arith.negf %167 : vector<8x32xf32>
      %169 = math.exp %168 : vector<8x32xf32>
      %cst_109 = arith.constant 1.000000e+00 : f32
      %170 = vector.broadcast %cst_109 : f32 to vector<8x32xf32>
      %171 = arith.addf %170, %169 : vector<8x32xf32>
      %172 = arith.divf %170, %171 : vector<8x32xf32>
      %173 = vector.extract_strided_slice %156 {offsets = [0, 64], sizes = [8, 32], strides = [1, 1]} : vector<8x96xf32> to vector<8x32xf32>
      %174 = vector.extract_strided_slice %128 {offsets = [0, 64], sizes = [8, 32], strides = [1, 1]} : vector<8x96xf32> to vector<8x32xf32>
      %175 = arith.mulf %164, %174 : vector<8x32xf32>
      %176 = arith.addf %173, %175 : vector<8x32xf32>
      %177 = math.tanh %176 : vector<8x32xf32>
      %cst_110 = arith.constant 1.000000e+00 : f32
      %178 = vector.broadcast %cst_110 : f32 to vector<8x32xf32>
      %179 = arith.subf %178, %172 : vector<8x32xf32>
      %180 = arith.mulf %179, %177 : vector<8x32xf32>
      %181 = arith.mulf %172, %124 : vector<8x32xf32>
      %182 = arith.addf %180, %181 : vector<8x32xf32>
      %183 = tpu.concatenate %154, %182 in 1 : vector<8x32xf32>, vector<8x32xf32> -> vector<8x64xf32>
      %c0_111 = arith.constant 0 : index
      %c0_112 = arith.constant 0 : index
      %184 = vector.load %arg20[%c0_111, %c0_112] : memref<8x64xf32, #tpu.memory_space<vmem>>, vector<8x64xf32>
      tpu.vector_store %arg20[%c0_111, %c0_112], %183 {strides = array<i32>} : memref<8x64xf32, #tpu.memory_space<vmem>>, vector<8x64xf32>,
    } else {
    }
    %c2_i32 = arith.constant 2 : i32
    %82 = arith.cmpi sge, %0, %c2_i32 : i32
    %83 = arith.extui %82 : i1 to i32
    %c0_i32_77 = arith.constant 0 : i32
    %84 = arith.cmpi ne, %83, %c0_i32_77 : i32
    scf.if %84 {
      %c16_99 = arith.constant 16 : index
      %c0_100 = arith.constant 0 : index
      %121 = vector.load %arg19[%c16_99, %c0_100] : memref<96x96xf32, #tpu.memory_space<vmem>>, vector<8x96xf32>
      %c0_101 = arith.constant 0 : index
      %c0_102 = arith.constant 0 : index
      %122 = vector.load %arg20[%c0_101, %c0_102] : memref<8x64xf32, #tpu.memory_space<vmem>>, vector<8x64xf32>
      %123 = vector.extract_strided_slice %122 {offsets = [0, 0], sizes = [8, 32], strides = [1, 1]} : vector<8x64xf32> to vector<8x32xf32>
      %124 = vector.extract_strided_slice %122 {offsets = [0, 32], sizes = [8, 32], strides = [1, 1]} : vector<8x64xf32> to vector<8x32xf32>
      %cst_103 = arith.constant dense<0.000000e+00> : vector<8x192xf32>
      %125 = tpu.matmul %122, %66, %cst_103 {dimension_numbers = #tpu.dot_dimension_numbers<[1], [0], [0], [1], [0, 0, 1, 1], [], []>} : vector<8x64xf32>, vector<64x192xf32>, vector<8x192xf32> -> vector<8x192xf32>
      %126 = arith.addf %125, %70 : vector<8x192xf32>
      %127 = vector.extract_strided_slice %126 {offsets = [0, 0], sizes = [8, 96], strides = [1, 1]} : vector<8x192xf32> to vector<8x96xf32>
      %128 = vector.extract_strided_slice %126 {offsets = [0, 96], sizes = [8, 96], strides = [1, 1]} : vector<8x192xf32> to vector<8x96xf32>
      %129 = vector.extract_strided_slice %121 {offsets = [0, 0], sizes = [8, 32], strides = [1, 1]} : vector<8x96xf32> to vector<8x32xf32>
      %130 = vector.extract_strided_slice %127 {offsets = [0, 0], sizes = [8, 32], strides = [1, 1]} : vector<8x96xf32> to vector<8x32xf32>
      %131 = arith.addf %129, %130 : vector<8x32xf32>
      %132 = arith.negf %131 : vector<8x32xf32>
      %133 = math.exp %132 : vector<8x32xf32>
      %cst_104 = arith.constant 1.000000e+00 : f32
      %134 = vector.broadcast %cst_104 : f32 to vector<8x32xf32>
      %135 = arith.addf %134, %133 : vector<8x32xf32>
      %136 = arith.divf %134, %135 : vector<8x32xf32>
      %137 = vector.extract_strided_slice %121 {offsets = [0, 32], sizes = [8, 32], strides = [1, 1]} : vector<8x96xf32> to vector<8x32xf32>
      %138 = vector.extract_strided_slice %127 {offsets = [0, 32], sizes = [8, 32], strides = [1, 1]} : vector<8x96xf32> to vector<8x32xf32>
      %139 = arith.addf %137, %138 : vector<8x32xf32>
      %140 = arith.negf %139 : vector<8x32xf32>
      %141 = math.exp %140 : vector<8x32xf32>
      %cst_105 = arith.constant 1.000000e+00 : f32
      %142 = vector.broadcast %cst_105 : f32 to vector<8x32xf32>
      %143 = arith.addf %142, %141 : vector<8x32xf32>
      %144 = arith.divf %142, %143 : vector<8x32xf32>
      %145 = vector.extract_strided_slice %121 {offsets = [0, 64], sizes = [8, 32], strides = [1, 1]} : vector<8x96xf32> to vector<8x32xf32>
      %146 = vector.extract_strided_slice %127 {offsets = [0, 64], sizes = [8, 32], strides = [1, 1]} : vector<8x96xf32> to vector<8x32xf32>
      %147 = arith.mulf %136, %146 : vector<8x32xf32>
      %148 = arith.addf %145, %147 : vector<8x32xf32>
      %149 = math.tanh %148 : vector<8x32xf32>
      %cst_106 = arith.constant 1.000000e+00 : f32
      %150 = vector.broadcast %cst_106 : f32 to vector<8x32xf32>
      %151 = arith.subf %150, %144 : vector<8x32xf32>
      %152 = arith.mulf %151, %149 : vector<8x32xf32>
      %153 = arith.mulf %144, %123 : vector<8x32xf32>
      %154 = arith.addf %152, %153 : vector<8x32xf32>
      %cst_107 = arith.constant dense<0.000000e+00> : vector<8x96xf32>
      %155 = tpu.matmul %154, %67, %cst_107 {dimension_numbers = #tpu.dot_dimension_numbers<[1], [0], [0], [1], [0, 0, 1, 1], [], []>} : vector<8x32xf32>, vector<32x96xf32>, vector<8x96xf32> -> vector<8x96xf32>
      %156 = arith.addf %155, %73 : vector<8x96xf32>
      %157 = vector.extract_strided_slice %156 {offsets = [0, 0], sizes = [8, 32], strides = [1, 1]} : vector<8x96xf32> to vector<8x32xf32>
      %158 = vector.extract_strided_slice %128 {offsets = [0, 0], sizes = [8, 32], strides = [1, 1]} : vector<8x96xf32> to vector<8x32xf32>
      %159 = arith.addf %157, %158 : vector<8x32xf32>
      %160 = arith.negf %159 : vector<8x32xf32>
      %161 = math.exp %160 : vector<8x32xf32>
      %cst_108 = arith.constant 1.000000e+00 : f32
      %162 = vector.broadcast %cst_108 : f32 to vector<8x32xf32>
      %163 = arith.addf %162, %161 : vector<8x32xf32>
      %164 = arith.divf %162, %163 : vector<8x32xf32>
      %165 = vector.extract_strided_slice %156 {offsets = [0, 32], sizes = [8, 32], strides = [1, 1]} : vector<8x96xf32> to vector<8x32xf32>
      %166 = vector.extract_strided_slice %128 {offsets = [0, 32], sizes = [8, 32], strides = [1, 1]} : vector<8x96xf32> to vector<8x32xf32>
      %167 = arith.addf %165, %166 : vector<8x32xf32>
      %168 = arith.negf %167 : vector<8x32xf32>
      %169 = math.exp %168 : vector<8x32xf32>
      %cst_109 = arith.constant 1.000000e+00 : f32
      %170 = vector.broadcast %cst_109 : f32 to vector<8x32xf32>
      %171 = arith.addf %170, %169 : vector<8x32xf32>
      %172 = arith.divf %170, %171 : vector<8x32xf32>
      %173 = vector.extract_strided_slice %156 {offsets = [0, 64], sizes = [8, 32], strides = [1, 1]} : vector<8x96xf32> to vector<8x32xf32>
      %174 = vector.extract_strided_slice %128 {offsets = [0, 64], sizes = [8, 32], strides = [1, 1]} : vector<8x96xf32> to vector<8x32xf32>
      %175 = arith.mulf %164, %174 : vector<8x32xf32>
      %176 = arith.addf %173, %175 : vector<8x32xf32>
      %177 = math.tanh %176 : vector<8x32xf32>
      %cst_110 = arith.constant 1.000000e+00 : f32
      %178 = vector.broadcast %cst_110 : f32 to vector<8x32xf32>
      %179 = arith.subf %178, %172 : vector<8x32xf32>
      %180 = arith.mulf %179, %177 : vector<8x32xf32>
      %181 = arith.mulf %172, %124 : vector<8x32xf32>
      %182 = arith.addf %180, %181 : vector<8x32xf32>
      %183 = tpu.concatenate %154, %182 in 1 : vector<8x32xf32>, vector<8x32xf32> -> vector<8x64xf32>
      %c0_111 = arith.constant 0 : index
      %c0_112 = arith.constant 0 : index
      %184 = vector.load %arg20[%c0_111, %c0_112] : memref<8x64xf32, #tpu.memory_space<vmem>>, vector<8x64xf32>
      tpu.vector_store %arg20[%c0_111, %c0_112], %183 {strides = array<i32>} : memref<8x64xf32, #tpu.memory_space<vmem>>, vector<8x64xf32>,
    } else {
    }
    %c3_i32 = arith.constant 3 : i32
    %85 = arith.cmpi sge, %0, %c3_i32 : i32
    %86 = arith.extui %85 : i1 to i32
    %c0_i32_78 = arith.constant 0 : i32
    %87 = arith.cmpi ne, %86, %c0_i32_78 : i32
    scf.if %87 {
      %c24_99 = arith.constant 24 : index
      %c0_100 = arith.constant 0 : index
      %121 = vector.load %arg19[%c24_99, %c0_100] : memref<96x96xf32, #tpu.memory_space<vmem>>, vector<8x96xf32>
      %c0_101 = arith.constant 0 : index
      %c0_102 = arith.constant 0 : index
      %122 = vector.load %arg20[%c0_101, %c0_102] : memref<8x64xf32, #tpu.memory_space<vmem>>, vector<8x64xf32>
      %123 = vector.extract_strided_slice %122 {offsets = [0, 0], sizes = [8, 32], strides = [1, 1]} : vector<8x64xf32> to vector<8x32xf32>
      %124 = vector.extract_strided_slice %122 {offsets = [0, 32], sizes = [8, 32], strides = [1, 1]} : vector<8x64xf32> to vector<8x32xf32>
      %cst_103 = arith.constant dense<0.000000e+00> : vector<8x192xf32>
      %125 = tpu.matmul %122, %66, %cst_103 {dimension_numbers = #tpu.dot_dimension_numbers<[1], [0], [0], [1], [0, 0, 1, 1], [], []>} : vector<8x64xf32>, vector<64x192xf32>, vector<8x192xf32> -> vector<8x192xf32>
      %126 = arith.addf %125, %70 : vector<8x192xf32>
      %127 = vector.extract_strided_slice %126 {offsets = [0, 0], sizes = [8, 96], strides = [1, 1]} : vector<8x192xf32> to vector<8x96xf32>
      %128 = vector.extract_strided_slice %126 {offsets = [0, 96], sizes = [8, 96], strides = [1, 1]} : vector<8x192xf32> to vector<8x96xf32>
      %129 = vector.extract_strided_slice %121 {offsets = [0, 0], sizes = [8, 32], strides = [1, 1]} : vector<8x96xf32> to vector<8x32xf32>
      %130 = vector.extract_strided_slice %127 {offsets = [0, 0], sizes = [8, 32], strides = [1, 1]} : vector<8x96xf32> to vector<8x32xf32>
      %131 = arith.addf %129, %130 : vector<8x32xf32>
      %132 = arith.negf %131 : vector<8x32xf32>
      %133 = math.exp %132 : vector<8x32xf32>
      %cst_104 = arith.constant 1.000000e+00 : f32
      %134 = vector.broadcast %cst_104 : f32 to vector<8x32xf32>
      %135 = arith.addf %134, %133 : vector<8x32xf32>
      %136 = arith.divf %134, %135 : vector<8x32xf32>
      %137 = vector.extract_strided_slice %121 {offsets = [0, 32], sizes = [8, 32], strides = [1, 1]} : vector<8x96xf32> to vector<8x32xf32>
      %138 = vector.extract_strided_slice %127 {offsets = [0, 32], sizes = [8, 32], strides = [1, 1]} : vector<8x96xf32> to vector<8x32xf32>
      %139 = arith.addf %137, %138 : vector<8x32xf32>
      %140 = arith.negf %139 : vector<8x32xf32>
      %141 = math.exp %140 : vector<8x32xf32>
      %cst_105 = arith.constant 1.000000e+00 : f32
      %142 = vector.broadcast %cst_105 : f32 to vector<8x32xf32>
      %143 = arith.addf %142, %141 : vector<8x32xf32>
      %144 = arith.divf %142, %143 : vector<8x32xf32>
      %145 = vector.extract_strided_slice %121 {offsets = [0, 64], sizes = [8, 32], strides = [1, 1]} : vector<8x96xf32> to vector<8x32xf32>
      %146 = vector.extract_strided_slice %127 {offsets = [0, 64], sizes = [8, 32], strides = [1, 1]} : vector<8x96xf32> to vector<8x32xf32>
      %147 = arith.mulf %136, %146 : vector<8x32xf32>
      %148 = arith.addf %145, %147 : vector<8x32xf32>
      %149 = math.tanh %148 : vector<8x32xf32>
      %cst_106 = arith.constant 1.000000e+00 : f32
      %150 = vector.broadcast %cst_106 : f32 to vector<8x32xf32>
      %151 = arith.subf %150, %144 : vector<8x32xf32>
      %152 = arith.mulf %151, %149 : vector<8x32xf32>
      %153 = arith.mulf %144, %123 : vector<8x32xf32>
      %154 = arith.addf %152, %153 : vector<8x32xf32>
      %cst_107 = arith.constant dense<0.000000e+00> : vector<8x96xf32>
      %155 = tpu.matmul %154, %67, %cst_107 {dimension_numbers = #tpu.dot_dimension_numbers<[1], [0], [0], [1], [0, 0, 1, 1], [], []>} : vector<8x32xf32>, vector<32x96xf32>, vector<8x96xf32> -> vector<8x96xf32>
      %156 = arith.addf %155, %73 : vector<8x96xf32>
      %157 = vector.extract_strided_slice %156 {offsets = [0, 0], sizes = [8, 32], strides = [1, 1]} : vector<8x96xf32> to vector<8x32xf32>
      %158 = vector.extract_strided_slice %128 {offsets = [0, 0], sizes = [8, 32], strides = [1, 1]} : vector<8x96xf32> to vector<8x32xf32>
      %159 = arith.addf %157, %158 : vector<8x32xf32>
      %160 = arith.negf %159 : vector<8x32xf32>
      %161 = math.exp %160 : vector<8x32xf32>
      %cst_108 = arith.constant 1.000000e+00 : f32
      %162 = vector.broadcast %cst_108 : f32 to vector<8x32xf32>
      %163 = arith.addf %162, %161 : vector<8x32xf32>
      %164 = arith.divf %162, %163 : vector<8x32xf32>
      %165 = vector.extract_strided_slice %156 {offsets = [0, 32], sizes = [8, 32], strides = [1, 1]} : vector<8x96xf32> to vector<8x32xf32>
      %166 = vector.extract_strided_slice %128 {offsets = [0, 32], sizes = [8, 32], strides = [1, 1]} : vector<8x96xf32> to vector<8x32xf32>
      %167 = arith.addf %165, %166 : vector<8x32xf32>
      %168 = arith.negf %167 : vector<8x32xf32>
      %169 = math.exp %168 : vector<8x32xf32>
      %cst_109 = arith.constant 1.000000e+00 : f32
      %170 = vector.broadcast %cst_109 : f32 to vector<8x32xf32>
      %171 = arith.addf %170, %169 : vector<8x32xf32>
      %172 = arith.divf %170, %171 : vector<8x32xf32>
      %173 = vector.extract_strided_slice %156 {offsets = [0, 64], sizes = [8, 32], strides = [1, 1]} : vector<8x96xf32> to vector<8x32xf32>
      %174 = vector.extract_strided_slice %128 {offsets = [0, 64], sizes = [8, 32], strides = [1, 1]} : vector<8x96xf32> to vector<8x32xf32>
      %175 = arith.mulf %164, %174 : vector<8x32xf32>
      %176 = arith.addf %173, %175 : vector<8x32xf32>
      %177 = math.tanh %176 : vector<8x32xf32>
      %cst_110 = arith.constant 1.000000e+00 : f32
      %178 = vector.broadcast %cst_110 : f32 to vector<8x32xf32>
      %179 = arith.subf %178, %172 : vector<8x32xf32>
      %180 = arith.mulf %179, %177 : vector<8x32xf32>
      %181 = arith.mulf %172, %124 : vector<8x32xf32>
      %182 = arith.addf %180, %181 : vector<8x32xf32>
      %183 = tpu.concatenate %154, %182 in 1 : vector<8x32xf32>, vector<8x32xf32> -> vector<8x64xf32>
      %c0_111 = arith.constant 0 : index
      %c0_112 = arith.constant 0 : index
      %184 = vector.load %arg20[%c0_111, %c0_112] : memref<8x64xf32, #tpu.memory_space<vmem>>, vector<8x64xf32>
      tpu.vector_store %arg20[%c0_111, %c0_112], %183 {strides = array<i32>} : memref<8x64xf32, #tpu.memory_space<vmem>>, vector<8x64xf32>,
    } else {
    }
    %c4_i32 = arith.constant 4 : i32
    %88 = arith.cmpi sge, %0, %c4_i32 : i32
    %89 = arith.extui %88 : i1 to i32
    %c0_i32_79 = arith.constant 0 : i32
    %90 = arith.cmpi ne, %89, %c0_i32_79 : i32
    scf.if %90 {
      %c32 = arith.constant 32 : index
      %c0_99 = arith.constant 0 : index
      %121 = vector.load %arg19[%c32, %c0_99] : memref<96x96xf32, #tpu.memory_space<vmem>>, vector<8x96xf32>
      %c0_100 = arith.constant 0 : index
      %c0_101 = arith.constant 0 : index
      %122 = vector.load %arg20[%c0_100, %c0_101] : memref<8x64xf32, #tpu.memory_space<vmem>>, vector<8x64xf32>
      %123 = vector.extract_strided_slice %122 {offsets = [0, 0], sizes = [8, 32], strides = [1, 1]} : vector<8x64xf32> to vector<8x32xf32>
      %124 = vector.extract_strided_slice %122 {offsets = [0, 32], sizes = [8, 32], strides = [1, 1]} : vector<8x64xf32> to vector<8x32xf32>
      %cst_102 = arith.constant dense<0.000000e+00> : vector<8x192xf32>
      %125 = tpu.matmul %122, %66, %cst_102 {dimension_numbers = #tpu.dot_dimension_numbers<[1], [0], [0], [1], [0, 0, 1, 1], [], []>} : vector<8x64xf32>, vector<64x192xf32>, vector<8x192xf32> -> vector<8x192xf32>
      %126 = arith.addf %125, %70 : vector<8x192xf32>
      %127 = vector.extract_strided_slice %126 {offsets = [0, 0], sizes = [8, 96], strides = [1, 1]} : vector<8x192xf32> to vector<8x96xf32>
      %128 = vector.extract_strided_slice %126 {offsets = [0, 96], sizes = [8, 96], strides = [1, 1]} : vector<8x192xf32> to vector<8x96xf32>
      %129 = vector.extract_strided_slice %121 {offsets = [0, 0], sizes = [8, 32], strides = [1, 1]} : vector<8x96xf32> to vector<8x32xf32>
      %130 = vector.extract_strided_slice %127 {offsets = [0, 0], sizes = [8, 32], strides = [1, 1]} : vector<8x96xf32> to vector<8x32xf32>
      %131 = arith.addf %129, %130 : vector<8x32xf32>
      %132 = arith.negf %131 : vector<8x32xf32>
      %133 = math.exp %132 : vector<8x32xf32>
      %cst_103 = arith.constant 1.000000e+00 : f32
      %134 = vector.broadcast %cst_103 : f32 to vector<8x32xf32>
      %135 = arith.addf %134, %133 : vector<8x32xf32>
      %136 = arith.divf %134, %135 : vector<8x32xf32>
      %137 = vector.extract_strided_slice %121 {offsets = [0, 32], sizes = [8, 32], strides = [1, 1]} : vector<8x96xf32> to vector<8x32xf32>
      %138 = vector.extract_strided_slice %127 {offsets = [0, 32], sizes = [8, 32], strides = [1, 1]} : vector<8x96xf32> to vector<8x32xf32>
      %139 = arith.addf %137, %138 : vector<8x32xf32>
      %140 = arith.negf %139 : vector<8x32xf32>
      %141 = math.exp %140 : vector<8x32xf32>
      %cst_104 = arith.constant 1.000000e+00 : f32
      %142 = vector.broadcast %cst_104 : f32 to vector<8x32xf32>
      %143 = arith.addf %142, %141 : vector<8x32xf32>
      %144 = arith.divf %142, %143 : vector<8x32xf32>
      %145 = vector.extract_strided_slice %121 {offsets = [0, 64], sizes = [8, 32], strides = [1, 1]} : vector<8x96xf32> to vector<8x32xf32>
      %146 = vector.extract_strided_slice %127 {offsets = [0, 64], sizes = [8, 32], strides = [1, 1]} : vector<8x96xf32> to vector<8x32xf32>
      %147 = arith.mulf %136, %146 : vector<8x32xf32>
      %148 = arith.addf %145, %147 : vector<8x32xf32>
      %149 = math.tanh %148 : vector<8x32xf32>
      %cst_105 = arith.constant 1.000000e+00 : f32
      %150 = vector.broadcast %cst_105 : f32 to vector<8x32xf32>
      %151 = arith.subf %150, %144 : vector<8x32xf32>
      %152 = arith.mulf %151, %149 : vector<8x32xf32>
      %153 = arith.mulf %144, %123 : vector<8x32xf32>
      %154 = arith.addf %152, %153 : vector<8x32xf32>
      %cst_106 = arith.constant dense<0.000000e+00> : vector<8x96xf32>
      %155 = tpu.matmul %154, %67, %cst_106 {dimension_numbers = #tpu.dot_dimension_numbers<[1], [0], [0], [1], [0, 0, 1, 1], [], []>} : vector<8x32xf32>, vector<32x96xf32>, vector<8x96xf32> -> vector<8x96xf32>
      %156 = arith.addf %155, %73 : vector<8x96xf32>
      %157 = vector.extract_strided_slice %156 {offsets = [0, 0], sizes = [8, 32], strides = [1, 1]} : vector<8x96xf32> to vector<8x32xf32>
      %158 = vector.extract_strided_slice %128 {offsets = [0, 0], sizes = [8, 32], strides = [1, 1]} : vector<8x96xf32> to vector<8x32xf32>
      %159 = arith.addf %157, %158 : vector<8x32xf32>
      %160 = arith.negf %159 : vector<8x32xf32>
      %161 = math.exp %160 : vector<8x32xf32>
      %cst_107 = arith.constant 1.000000e+00 : f32
      %162 = vector.broadcast %cst_107 : f32 to vector<8x32xf32>
      %163 = arith.addf %162, %161 : vector<8x32xf32>
      %164 = arith.divf %162, %163 : vector<8x32xf32>
      %165 = vector.extract_strided_slice %156 {offsets = [0, 32], sizes = [8, 32], strides = [1, 1]} : vector<8x96xf32> to vector<8x32xf32>
      %166 = vector.extract_strided_slice %128 {offsets = [0, 32], sizes = [8, 32], strides = [1, 1]} : vector<8x96xf32> to vector<8x32xf32>
      %167 = arith.addf %165, %166 : vector<8x32xf32>
      %168 = arith.negf %167 : vector<8x32xf32>
      %169 = math.exp %168 : vector<8x32xf32>
      %cst_108 = arith.constant 1.000000e+00 : f32
      %170 = vector.broadcast %cst_108 : f32 to vector<8x32xf32>
      %171 = arith.addf %170, %169 : vector<8x32xf32>
      %172 = arith.divf %170, %171 : vector<8x32xf32>
      %173 = vector.extract_strided_slice %156 {offsets = [0, 64], sizes = [8, 32], strides = [1, 1]} : vector<8x96xf32> to vector<8x32xf32>
      %174 = vector.extract_strided_slice %128 {offsets = [0, 64], sizes = [8, 32], strides = [1, 1]} : vector<8x96xf32> to vector<8x32xf32>
      %175 = arith.mulf %164, %174 : vector<8x32xf32>
      %176 = arith.addf %173, %175 : vector<8x32xf32>
      %177 = math.tanh %176 : vector<8x32xf32>
      %cst_109 = arith.constant 1.000000e+00 : f32
      %178 = vector.broadcast %cst_109 : f32 to vector<8x32xf32>
      %179 = arith.subf %178, %172 : vector<8x32xf32>
      %180 = arith.mulf %179, %177 : vector<8x32xf32>
      %181 = arith.mulf %172, %124 : vector<8x32xf32>
      %182 = arith.addf %180, %181 : vector<8x32xf32>
      %183 = tpu.concatenate %154, %182 in 1 : vector<8x32xf32>, vector<8x32xf32> -> vector<8x64xf32>
      %c0_110 = arith.constant 0 : index
      %c0_111 = arith.constant 0 : index
      %184 = vector.load %arg20[%c0_110, %c0_111] : memref<8x64xf32, #tpu.memory_space<vmem>>, vector<8x64xf32>
      tpu.vector_store %arg20[%c0_110, %c0_111], %183 {strides = array<i32>} : memref<8x64xf32, #tpu.memory_space<vmem>>, vector<8x64xf32>,
    } else {
    }
    %c5_i32 = arith.constant 5 : i32
    %91 = arith.cmpi sge, %0, %c5_i32 : i32
    %92 = arith.extui %91 : i1 to i32
    %c0_i32_80 = arith.constant 0 : i32
    %93 = arith.cmpi ne, %92, %c0_i32_80 : i32
    scf.if %93 {
      %c40 = arith.constant 40 : index
      %c0_99 = arith.constant 0 : index
      %121 = vector.load %arg19[%c40, %c0_99] : memref<96x96xf32, #tpu.memory_space<vmem>>, vector<8x96xf32>
      %c0_100 = arith.constant 0 : index
      %c0_101 = arith.constant 0 : index
      %122 = vector.load %arg20[%c0_100, %c0_101] : memref<8x64xf32, #tpu.memory_space<vmem>>, vector<8x64xf32>
      %123 = vector.extract_strided_slice %122 {offsets = [0, 0], sizes = [8, 32], strides = [1, 1]} : vector<8x64xf32> to vector<8x32xf32>
      %124 = vector.extract_strided_slice %122 {offsets = [0, 32], sizes = [8, 32], strides = [1, 1]} : vector<8x64xf32> to vector<8x32xf32>
      %cst_102 = arith.constant dense<0.000000e+00> : vector<8x192xf32>
      %125 = tpu.matmul %122, %66, %cst_102 {dimension_numbers = #tpu.dot_dimension_numbers<[1], [0], [0], [1], [0, 0, 1, 1], [], []>} : vector<8x64xf32>, vector<64x192xf32>, vector<8x192xf32> -> vector<8x192xf32>
      %126 = arith.addf %125, %70 : vector<8x192xf32>
      %127 = vector.extract_strided_slice %126 {offsets = [0, 0], sizes = [8, 96], strides = [1, 1]} : vector<8x192xf32> to vector<8x96xf32>
      %128 = vector.extract_strided_slice %126 {offsets = [0, 96], sizes = [8, 96], strides = [1, 1]} : vector<8x192xf32> to vector<8x96xf32>
      %129 = vector.extract_strided_slice %121 {offsets = [0, 0], sizes = [8, 32], strides = [1, 1]} : vector<8x96xf32> to vector<8x32xf32>
      %130 = vector.extract_strided_slice %127 {offsets = [0, 0], sizes = [8, 32], strides = [1, 1]} : vector<8x96xf32> to vector<8x32xf32>
      %131 = arith.addf %129, %130 : vector<8x32xf32>
      %132 = arith.negf %131 : vector<8x32xf32>
      %133 = math.exp %132 : vector<8x32xf32>
      %cst_103 = arith.constant 1.000000e+00 : f32
      %134 = vector.broadcast %cst_103 : f32 to vector<8x32xf32>
      %135 = arith.addf %134, %133 : vector<8x32xf32>
      %136 = arith.divf %134, %135 : vector<8x32xf32>
      %137 = vector.extract_strided_slice %121 {offsets = [0, 32], sizes = [8, 32], strides = [1, 1]} : vector<8x96xf32> to vector<8x32xf32>
      %138 = vector.extract_strided_slice %127 {offsets = [0, 32], sizes = [8, 32], strides = [1, 1]} : vector<8x96xf32> to vector<8x32xf32>
      %139 = arith.addf %137, %138 : vector<8x32xf32>
      %140 = arith.negf %139 : vector<8x32xf32>
      %141 = math.exp %140 : vector<8x32xf32>
      %cst_104 = arith.constant 1.000000e+00 : f32
      %142 = vector.broadcast %cst_104 : f32 to vector<8x32xf32>
      %143 = arith.addf %142, %141 : vector<8x32xf32>
      %144 = arith.divf %142, %143 : vector<8x32xf32>
      %145 = vector.extract_strided_slice %121 {offsets = [0, 64], sizes = [8, 32], strides = [1, 1]} : vector<8x96xf32> to vector<8x32xf32>
      %146 = vector.extract_strided_slice %127 {offsets = [0, 64], sizes = [8, 32], strides = [1, 1]} : vector<8x96xf32> to vector<8x32xf32>
      %147 = arith.mulf %136, %146 : vector<8x32xf32>
      %148 = arith.addf %145, %147 : vector<8x32xf32>
      %149 = math.tanh %148 : vector<8x32xf32>
      %cst_105 = arith.constant 1.000000e+00 : f32
      %150 = vector.broadcast %cst_105 : f32 to vector<8x32xf32>
      %151 = arith.subf %150, %144 : vector<8x32xf32>
      %152 = arith.mulf %151, %149 : vector<8x32xf32>
      %153 = arith.mulf %144, %123 : vector<8x32xf32>
      %154 = arith.addf %152, %153 : vector<8x32xf32>
      %cst_106 = arith.constant dense<0.000000e+00> : vector<8x96xf32>
      %155 = tpu.matmul %154, %67, %cst_106 {dimension_numbers = #tpu.dot_dimension_numbers<[1], [0], [0], [1], [0, 0, 1, 1], [], []>} : vector<8x32xf32>, vector<32x96xf32>, vector<8x96xf32> -> vector<8x96xf32>
      %156 = arith.addf %155, %73 : vector<8x96xf32>
      %157 = vector.extract_strided_slice %156 {offsets = [0, 0], sizes = [8, 32], strides = [1, 1]} : vector<8x96xf32> to vector<8x32xf32>
      %158 = vector.extract_strided_slice %128 {offsets = [0, 0], sizes = [8, 32], strides = [1, 1]} : vector<8x96xf32> to vector<8x32xf32>
      %159 = arith.addf %157, %158 : vector<8x32xf32>
      %160 = arith.negf %159 : vector<8x32xf32>
      %161 = math.exp %160 : vector<8x32xf32>
      %cst_107 = arith.constant 1.000000e+00 : f32
      %162 = vector.broadcast %cst_107 : f32 to vector<8x32xf32>
      %163 = arith.addf %162, %161 : vector<8x32xf32>
      %164 = arith.divf %162, %163 : vector<8x32xf32>
      %165 = vector.extract_strided_slice %156 {offsets = [0, 32], sizes = [8, 32], strides = [1, 1]} : vector<8x96xf32> to vector<8x32xf32>
      %166 = vector.extract_strided_slice %128 {offsets = [0, 32], sizes = [8, 32], strides = [1, 1]} : vector<8x96xf32> to vector<8x32xf32>
      %167 = arith.addf %165, %166 : vector<8x32xf32>
      %168 = arith.negf %167 : vector<8x32xf32>
      %169 = math.exp %168 : vector<8x32xf32>
      %cst_108 = arith.constant 1.000000e+00 : f32
      %170 = vector.broadcast %cst_108 : f32 to vector<8x32xf32>
      %171 = arith.addf %170, %169 : vector<8x32xf32>
      %172 = arith.divf %170, %171 : vector<8x32xf32>
      %173 = vector.extract_strided_slice %156 {offsets = [0, 64], sizes = [8, 32], strides = [1, 1]} : vector<8x96xf32> to vector<8x32xf32>
      %174 = vector.extract_strided_slice %128 {offsets = [0, 64], sizes = [8, 32], strides = [1, 1]} : vector<8x96xf32> to vector<8x32xf32>
      %175 = arith.mulf %164, %174 : vector<8x32xf32>
      %176 = arith.addf %173, %175 : vector<8x32xf32>
      %177 = math.tanh %176 : vector<8x32xf32>
      %cst_109 = arith.constant 1.000000e+00 : f32
      %178 = vector.broadcast %cst_109 : f32 to vector<8x32xf32>
      %179 = arith.subf %178, %172 : vector<8x32xf32>
      %180 = arith.mulf %179, %177 : vector<8x32xf32>
      %181 = arith.mulf %172, %124 : vector<8x32xf32>
      %182 = arith.addf %180, %181 : vector<8x32xf32>
      %183 = tpu.concatenate %154, %182 in 1 : vector<8x32xf32>, vector<8x32xf32> -> vector<8x64xf32>
      %c0_110 = arith.constant 0 : index
      %c0_111 = arith.constant 0 : index
      %184 = vector.load %arg20[%c0_110, %c0_111] : memref<8x64xf32, #tpu.memory_space<vmem>>, vector<8x64xf32>
      tpu.vector_store %arg20[%c0_110, %c0_111], %183 {strides = array<i32>} : memref<8x64xf32, #tpu.memory_space<vmem>>, vector<8x64xf32>,
    } else {
    }
    %c6_i32 = arith.constant 6 : i32
    %94 = arith.cmpi sge, %0, %c6_i32 : i32
    %95 = arith.extui %94 : i1 to i32
    %c0_i32_81 = arith.constant 0 : i32
    %96 = arith.cmpi ne, %95, %c0_i32_81 : i32
    scf.if %96 {
      %c48 = arith.constant 48 : index
      %c0_99 = arith.constant 0 : index
      %121 = vector.load %arg19[%c48, %c0_99] : memref<96x96xf32, #tpu.memory_space<vmem>>, vector<8x96xf32>
      %c0_100 = arith.constant 0 : index
      %c0_101 = arith.constant 0 : index
      %122 = vector.load %arg20[%c0_100, %c0_101] : memref<8x64xf32, #tpu.memory_space<vmem>>, vector<8x64xf32>
      %123 = vector.extract_strided_slice %122 {offsets = [0, 0], sizes = [8, 32], strides = [1, 1]} : vector<8x64xf32> to vector<8x32xf32>
      %124 = vector.extract_strided_slice %122 {offsets = [0, 32], sizes = [8, 32], strides = [1, 1]} : vector<8x64xf32> to vector<8x32xf32>
      %cst_102 = arith.constant dense<0.000000e+00> : vector<8x192xf32>
      %125 = tpu.matmul %122, %66, %cst_102 {dimension_numbers = #tpu.dot_dimension_numbers<[1], [0], [0], [1], [0, 0, 1, 1], [], []>} : vector<8x64xf32>, vector<64x192xf32>, vector<8x192xf32> -> vector<8x192xf32>
      %126 = arith.addf %125, %70 : vector<8x192xf32>
      %127 = vector.extract_strided_slice %126 {offsets = [0, 0], sizes = [8, 96], strides = [1, 1]} : vector<8x192xf32> to vector<8x96xf32>
      %128 = vector.extract_strided_slice %126 {offsets = [0, 96], sizes = [8, 96], strides = [1, 1]} : vector<8x192xf32> to vector<8x96xf32>
      %129 = vector.extract_strided_slice %121 {offsets = [0, 0], sizes = [8, 32], strides = [1, 1]} : vector<8x96xf32> to vector<8x32xf32>
      %130 = vector.extract_strided_slice %127 {offsets = [0, 0], sizes = [8, 32], strides = [1, 1]} : vector<8x96xf32> to vector<8x32xf32>
      %131 = arith.addf %129, %130 : vector<8x32xf32>
      %132 = arith.negf %131 : vector<8x32xf32>
      %133 = math.exp %132 : vector<8x32xf32>
      %cst_103 = arith.constant 1.000000e+00 : f32
      %134 = vector.broadcast %cst_103 : f32 to vector<8x32xf32>
      %135 = arith.addf %134, %133 : vector<8x32xf32>
      %136 = arith.divf %134, %135 : vector<8x32xf32>
      %137 = vector.extract_strided_slice %121 {offsets = [0, 32], sizes = [8, 32], strides = [1, 1]} : vector<8x96xf32> to vector<8x32xf32>
      %138 = vector.extract_strided_slice %127 {offsets = [0, 32], sizes = [8, 32], strides = [1, 1]} : vector<8x96xf32> to vector<8x32xf32>
      %139 = arith.addf %137, %138 : vector<8x32xf32>
      %140 = arith.negf %139 : vector<8x32xf32>
      %141 = math.exp %140 : vector<8x32xf32>
      %cst_104 = arith.constant 1.000000e+00 : f32
      %142 = vector.broadcast %cst_104 : f32 to vector<8x32xf32>
      %143 = arith.addf %142, %141 : vector<8x32xf32>
      %144 = arith.divf %142, %143 : vector<8x32xf32>
      %145 = vector.extract_strided_slice %121 {offsets = [0, 64], sizes = [8, 32], strides = [1, 1]} : vector<8x96xf32> to vector<8x32xf32>
      %146 = vector.extract_strided_slice %127 {offsets = [0, 64], sizes = [8, 32], strides = [1, 1]} : vector<8x96xf32> to vector<8x32xf32>
      %147 = arith.mulf %136, %146 : vector<8x32xf32>
      %148 = arith.addf %145, %147 : vector<8x32xf32>
      %149 = math.tanh %148 : vector<8x32xf32>
      %cst_105 = arith.constant 1.000000e+00 : f32
      %150 = vector.broadcast %cst_105 : f32 to vector<8x32xf32>
      %151 = arith.subf %150, %144 : vector<8x32xf32>
      %152 = arith.mulf %151, %149 : vector<8x32xf32>
      %153 = arith.mulf %144, %123 : vector<8x32xf32>
      %154 = arith.addf %152, %153 : vector<8x32xf32>
      %cst_106 = arith.constant dense<0.000000e+00> : vector<8x96xf32>
      %155 = tpu.matmul %154, %67, %cst_106 {dimension_numbers = #tpu.dot_dimension_numbers<[1], [0], [0], [1], [0, 0, 1, 1], [], []>} : vector<8x32xf32>, vector<32x96xf32>, vector<8x96xf32> -> vector<8x96xf32>
      %156 = arith.addf %155, %73 : vector<8x96xf32>
      %157 = vector.extract_strided_slice %156 {offsets = [0, 0], sizes = [8, 32], strides = [1, 1]} : vector<8x96xf32> to vector<8x32xf32>
      %158 = vector.extract_strided_slice %128 {offsets = [0, 0], sizes = [8, 32], strides = [1, 1]} : vector<8x96xf32> to vector<8x32xf32>
      %159 = arith.addf %157, %158 : vector<8x32xf32>
      %160 = arith.negf %159 : vector<8x32xf32>
      %161 = math.exp %160 : vector<8x32xf32>
      %cst_107 = arith.constant 1.000000e+00 : f32
      %162 = vector.broadcast %cst_107 : f32 to vector<8x32xf32>
      %163 = arith.addf %162, %161 : vector<8x32xf32>
      %164 = arith.divf %162, %163 : vector<8x32xf32>
      %165 = vector.extract_strided_slice %156 {offsets = [0, 32], sizes = [8, 32], strides = [1, 1]} : vector<8x96xf32> to vector<8x32xf32>
      %166 = vector.extract_strided_slice %128 {offsets = [0, 32], sizes = [8, 32], strides = [1, 1]} : vector<8x96xf32> to vector<8x32xf32>
      %167 = arith.addf %165, %166 : vector<8x32xf32>
      %168 = arith.negf %167 : vector<8x32xf32>
      %169 = math.exp %168 : vector<8x32xf32>
      %cst_108 = arith.constant 1.000000e+00 : f32
      %170 = vector.broadcast %cst_108 : f32 to vector<8x32xf32>
      %171 = arith.addf %170, %169 : vector<8x32xf32>
      %172 = arith.divf %170, %171 : vector<8x32xf32>
      %173 = vector.extract_strided_slice %156 {offsets = [0, 64], sizes = [8, 32], strides = [1, 1]} : vector<8x96xf32> to vector<8x32xf32>
      %174 = vector.extract_strided_slice %128 {offsets = [0, 64], sizes = [8, 32], strides = [1, 1]} : vector<8x96xf32> to vector<8x32xf32>
      %175 = arith.mulf %164, %174 : vector<8x32xf32>
      %176 = arith.addf %173, %175 : vector<8x32xf32>
      %177 = math.tanh %176 : vector<8x32xf32>
      %cst_109 = arith.constant 1.000000e+00 : f32
      %178 = vector.broadcast %cst_109 : f32 to vector<8x32xf32>
      %179 = arith.subf %178, %172 : vector<8x32xf32>
      %180 = arith.mulf %179, %177 : vector<8x32xf32>
      %181 = arith.mulf %172, %124 : vector<8x32xf32>
      %182 = arith.addf %180, %181 : vector<8x32xf32>
      %183 = tpu.concatenate %154, %182 in 1 : vector<8x32xf32>, vector<8x32xf32> -> vector<8x64xf32>
      %c0_110 = arith.constant 0 : index
      %c0_111 = arith.constant 0 : index
      %184 = vector.load %arg20[%c0_110, %c0_111] : memref<8x64xf32, #tpu.memory_space<vmem>>, vector<8x64xf32>
      tpu.vector_store %arg20[%c0_110, %c0_111], %183 {strides = array<i32>} : memref<8x64xf32, #tpu.memory_space<vmem>>, vector<8x64xf32>,
    } else {
    }
    %c7_i32 = arith.constant 7 : i32
    %97 = arith.cmpi sge, %0, %c7_i32 : i32
    %98 = arith.extui %97 : i1 to i32
    %c0_i32_82 = arith.constant 0 : i32
    %99 = arith.cmpi ne, %98, %c0_i32_82 : i32
    scf.if %99 {
      %c56 = arith.constant 56 : index
      %c0_99 = arith.constant 0 : index
      %121 = vector.load %arg19[%c56, %c0_99] : memref<96x96xf32, #tpu.memory_space<vmem>>, vector<8x96xf32>
      %c0_100 = arith.constant 0 : index
      %c0_101 = arith.constant 0 : index
      %122 = vector.load %arg20[%c0_100, %c0_101] : memref<8x64xf32, #tpu.memory_space<vmem>>, vector<8x64xf32>
      %123 = vector.extract_strided_slice %122 {offsets = [0, 0], sizes = [8, 32], strides = [1, 1]} : vector<8x64xf32> to vector<8x32xf32>
      %124 = vector.extract_strided_slice %122 {offsets = [0, 32], sizes = [8, 32], strides = [1, 1]} : vector<8x64xf32> to vector<8x32xf32>
      %cst_102 = arith.constant dense<0.000000e+00> : vector<8x192xf32>
      %125 = tpu.matmul %122, %66, %cst_102 {dimension_numbers = #tpu.dot_dimension_numbers<[1], [0], [0], [1], [0, 0, 1, 1], [], []>} : vector<8x64xf32>, vector<64x192xf32>, vector<8x192xf32> -> vector<8x192xf32>
      %126 = arith.addf %125, %70 : vector<8x192xf32>
      %127 = vector.extract_strided_slice %126 {offsets = [0, 0], sizes = [8, 96], strides = [1, 1]} : vector<8x192xf32> to vector<8x96xf32>
      %128 = vector.extract_strided_slice %126 {offsets = [0, 96], sizes = [8, 96], strides = [1, 1]} : vector<8x192xf32> to vector<8x96xf32>
      %129 = vector.extract_strided_slice %121 {offsets = [0, 0], sizes = [8, 32], strides = [1, 1]} : vector<8x96xf32> to vector<8x32xf32>
      %130 = vector.extract_strided_slice %127 {offsets = [0, 0], sizes = [8, 32], strides = [1, 1]} : vector<8x96xf32> to vector<8x32xf32>
      %131 = arith.addf %129, %130 : vector<8x32xf32>
      %132 = arith.negf %131 : vector<8x32xf32>
      %133 = math.exp %132 : vector<8x32xf32>
      %cst_103 = arith.constant 1.000000e+00 : f32
      %134 = vector.broadcast %cst_103 : f32 to vector<8x32xf32>
      %135 = arith.addf %134, %133 : vector<8x32xf32>
      %136 = arith.divf %134, %135 : vector<8x32xf32>
      %137 = vector.extract_strided_slice %121 {offsets = [0, 32], sizes = [8, 32], strides = [1, 1]} : vector<8x96xf32> to vector<8x32xf32>
      %138 = vector.extract_strided_slice %127 {offsets = [0, 32], sizes = [8, 32], strides = [1, 1]} : vector<8x96xf32> to vector<8x32xf32>
      %139 = arith.addf %137, %138 : vector<8x32xf32>
      %140 = arith.negf %139 : vector<8x32xf32>
      %141 = math.exp %140 : vector<8x32xf32>
      %cst_104 = arith.constant 1.000000e+00 : f32
      %142 = vector.broadcast %cst_104 : f32 to vector<8x32xf32>
      %143 = arith.addf %142, %141 : vector<8x32xf32>
      %144 = arith.divf %142, %143 : vector<8x32xf32>
      %145 = vector.extract_strided_slice %121 {offsets = [0, 64], sizes = [8, 32], strides = [1, 1]} : vector<8x96xf32> to vector<8x32xf32>
      %146 = vector.extract_strided_slice %127 {offsets = [0, 64], sizes = [8, 32], strides = [1, 1]} : vector<8x96xf32> to vector<8x32xf32>
      %147 = arith.mulf %136, %146 : vector<8x32xf32>
      %148 = arith.addf %145, %147 : vector<8x32xf32>
      %149 = math.tanh %148 : vector<8x32xf32>
      %cst_105 = arith.constant 1.000000e+00 : f32
      %150 = vector.broadcast %cst_105 : f32 to vector<8x32xf32>
      %151 = arith.subf %150, %144 : vector<8x32xf32>
      %152 = arith.mulf %151, %149 : vector<8x32xf32>
      %153 = arith.mulf %144, %123 : vector<8x32xf32>
      %154 = arith.addf %152, %153 : vector<8x32xf32>
      %cst_106 = arith.constant dense<0.000000e+00> : vector<8x96xf32>
      %155 = tpu.matmul %154, %67, %cst_106 {dimension_numbers = #tpu.dot_dimension_numbers<[1], [0], [0], [1], [0, 0, 1, 1], [], []>} : vector<8x32xf32>, vector<32x96xf32>, vector<8x96xf32> -> vector<8x96xf32>
      %156 = arith.addf %155, %73 : vector<8x96xf32>
      %157 = vector.extract_strided_slice %156 {offsets = [0, 0], sizes = [8, 32], strides = [1, 1]} : vector<8x96xf32> to vector<8x32xf32>
      %158 = vector.extract_strided_slice %128 {offsets = [0, 0], sizes = [8, 32], strides = [1, 1]} : vector<8x96xf32> to vector<8x32xf32>
      %159 = arith.addf %157, %158 : vector<8x32xf32>
      %160 = arith.negf %159 : vector<8x32xf32>
      %161 = math.exp %160 : vector<8x32xf32>
      %cst_107 = arith.constant 1.000000e+00 : f32
      %162 = vector.broadcast %cst_107 : f32 to vector<8x32xf32>
      %163 = arith.addf %162, %161 : vector<8x32xf32>
      %164 = arith.divf %162, %163 : vector<8x32xf32>
      %165 = vector.extract_strided_slice %156 {offsets = [0, 32], sizes = [8, 32], strides = [1, 1]} : vector<8x96xf32> to vector<8x32xf32>
      %166 = vector.extract_strided_slice %128 {offsets = [0, 32], sizes = [8, 32], strides = [1, 1]} : vector<8x96xf32> to vector<8x32xf32>
      %167 = arith.addf %165, %166 : vector<8x32xf32>
      %168 = arith.negf %167 : vector<8x32xf32>
      %169 = math.exp %168 : vector<8x32xf32>
      %cst_108 = arith.constant 1.000000e+00 : f32
      %170 = vector.broadcast %cst_108 : f32 to vector<8x32xf32>
      %171 = arith.addf %170, %169 : vector<8x32xf32>
      %172 = arith.divf %170, %171 : vector<8x32xf32>
      %173 = vector.extract_strided_slice %156 {offsets = [0, 64], sizes = [8, 32], strides = [1, 1]} : vector<8x96xf32> to vector<8x32xf32>
      %174 = vector.extract_strided_slice %128 {offsets = [0, 64], sizes = [8, 32], strides = [1, 1]} : vector<8x96xf32> to vector<8x32xf32>
      %175 = arith.mulf %164, %174 : vector<8x32xf32>
      %176 = arith.addf %173, %175 : vector<8x32xf32>
      %177 = math.tanh %176 : vector<8x32xf32>
      %cst_109 = arith.constant 1.000000e+00 : f32
      %178 = vector.broadcast %cst_109 : f32 to vector<8x32xf32>
      %179 = arith.subf %178, %172 : vector<8x32xf32>
      %180 = arith.mulf %179, %177 : vector<8x32xf32>
      %181 = arith.mulf %172, %124 : vector<8x32xf32>
      %182 = arith.addf %180, %181 : vector<8x32xf32>
      %183 = tpu.concatenate %154, %182 in 1 : vector<8x32xf32>, vector<8x32xf32> -> vector<8x64xf32>
      %c0_110 = arith.constant 0 : index
      %c0_111 = arith.constant 0 : index
      %184 = vector.load %arg20[%c0_110, %c0_111] : memref<8x64xf32, #tpu.memory_space<vmem>>, vector<8x64xf32>
      tpu.vector_store %arg20[%c0_110, %c0_111], %183 {strides = array<i32>} : memref<8x64xf32, #tpu.memory_space<vmem>>, vector<8x64xf32>,
    } else {
    }
    %c8_i32_83 = arith.constant 8 : i32
    %100 = arith.cmpi sge, %0, %c8_i32_83 : i32
    %101 = arith.extui %100 : i1 to i32
    %c0_i32_84 = arith.constant 0 : i32
    %102 = arith.cmpi ne, %101, %c0_i32_84 : i32
    scf.if %102 {
      %c64 = arith.constant 64 : index
      %c0_99 = arith.constant 0 : index
      %121 = vector.load %arg19[%c64, %c0_99] : memref<96x96xf32, #tpu.memory_space<vmem>>, vector<8x96xf32>
      %c0_100 = arith.constant 0 : index
      %c0_101 = arith.constant 0 : index
      %122 = vector.load %arg20[%c0_100, %c0_101] : memref<8x64xf32, #tpu.memory_space<vmem>>, vector<8x64xf32>
      %123 = vector.extract_strided_slice %122 {offsets = [0, 0], sizes = [8, 32], strides = [1, 1]} : vector<8x64xf32> to vector<8x32xf32>
      %124 = vector.extract_strided_slice %122 {offsets = [0, 32], sizes = [8, 32], strides = [1, 1]} : vector<8x64xf32> to vector<8x32xf32>
      %cst_102 = arith.constant dense<0.000000e+00> : vector<8x192xf32>
      %125 = tpu.matmul %122, %66, %cst_102 {dimension_numbers = #tpu.dot_dimension_numbers<[1], [0], [0], [1], [0, 0, 1, 1], [], []>} : vector<8x64xf32>, vector<64x192xf32>, vector<8x192xf32> -> vector<8x192xf32>
      %126 = arith.addf %125, %70 : vector<8x192xf32>
      %127 = vector.extract_strided_slice %126 {offsets = [0, 0], sizes = [8, 96], strides = [1, 1]} : vector<8x192xf32> to vector<8x96xf32>
      %128 = vector.extract_strided_slice %126 {offsets = [0, 96], sizes = [8, 96], strides = [1, 1]} : vector<8x192xf32> to vector<8x96xf32>
      %129 = vector.extract_strided_slice %121 {offsets = [0, 0], sizes = [8, 32], strides = [1, 1]} : vector<8x96xf32> to vector<8x32xf32>
      %130 = vector.extract_strided_slice %127 {offsets = [0, 0], sizes = [8, 32], strides = [1, 1]} : vector<8x96xf32> to vector<8x32xf32>
      %131 = arith.addf %129, %130 : vector<8x32xf32>
      %132 = arith.negf %131 : vector<8x32xf32>
      %133 = math.exp %132 : vector<8x32xf32>
      %cst_103 = arith.constant 1.000000e+00 : f32
      %134 = vector.broadcast %cst_103 : f32 to vector<8x32xf32>
      %135 = arith.addf %134, %133 : vector<8x32xf32>
      %136 = arith.divf %134, %135 : vector<8x32xf32>
      %137 = vector.extract_strided_slice %121 {offsets = [0, 32], sizes = [8, 32], strides = [1, 1]} : vector<8x96xf32> to vector<8x32xf32>
      %138 = vector.extract_strided_slice %127 {offsets = [0, 32], sizes = [8, 32], strides = [1, 1]} : vector<8x96xf32> to vector<8x32xf32>
      %139 = arith.addf %137, %138 : vector<8x32xf32>
      %140 = arith.negf %139 : vector<8x32xf32>
      %141 = math.exp %140 : vector<8x32xf32>
      %cst_104 = arith.constant 1.000000e+00 : f32
      %142 = vector.broadcast %cst_104 : f32 to vector<8x32xf32>
      %143 = arith.addf %142, %141 : vector<8x32xf32>
      %144 = arith.divf %142, %143 : vector<8x32xf32>
      %145 = vector.extract_strided_slice %121 {offsets = [0, 64], sizes = [8, 32], strides = [1, 1]} : vector<8x96xf32> to vector<8x32xf32>
      %146 = vector.extract_strided_slice %127 {offsets = [0, 64], sizes = [8, 32], strides = [1, 1]} : vector<8x96xf32> to vector<8x32xf32>
      %147 = arith.mulf %136, %146 : vector<8x32xf32>
      %148 = arith.addf %145, %147 : vector<8x32xf32>
      %149 = math.tanh %148 : vector<8x32xf32>
      %cst_105 = arith.constant 1.000000e+00 : f32
      %150 = vector.broadcast %cst_105 : f32 to vector<8x32xf32>
      %151 = arith.subf %150, %144 : vector<8x32xf32>
      %152 = arith.mulf %151, %149 : vector<8x32xf32>
      %153 = arith.mulf %144, %123 : vector<8x32xf32>
      %154 = arith.addf %152, %153 : vector<8x32xf32>
      %cst_106 = arith.constant dense<0.000000e+00> : vector<8x96xf32>
      %155 = tpu.matmul %154, %67, %cst_106 {dimension_numbers = #tpu.dot_dimension_numbers<[1], [0], [0], [1], [0, 0, 1, 1], [], []>} : vector<8x32xf32>, vector<32x96xf32>, vector<8x96xf32> -> vector<8x96xf32>
      %156 = arith.addf %155, %73 : vector<8x96xf32>
      %157 = vector.extract_strided_slice %156 {offsets = [0, 0], sizes = [8, 32], strides = [1, 1]} : vector<8x96xf32> to vector<8x32xf32>
      %158 = vector.extract_strided_slice %128 {offsets = [0, 0], sizes = [8, 32], strides = [1, 1]} : vector<8x96xf32> to vector<8x32xf32>
      %159 = arith.addf %157, %158 : vector<8x32xf32>
      %160 = arith.negf %159 : vector<8x32xf32>
      %161 = math.exp %160 : vector<8x32xf32>
      %cst_107 = arith.constant 1.000000e+00 : f32
      %162 = vector.broadcast %cst_107 : f32 to vector<8x32xf32>
      %163 = arith.addf %162, %161 : vector<8x32xf32>
      %164 = arith.divf %162, %163 : vector<8x32xf32>
      %165 = vector.extract_strided_slice %156 {offsets = [0, 32], sizes = [8, 32], strides = [1, 1]} : vector<8x96xf32> to vector<8x32xf32>
      %166 = vector.extract_strided_slice %128 {offsets = [0, 32], sizes = [8, 32], strides = [1, 1]} : vector<8x96xf32> to vector<8x32xf32>
      %167 = arith.addf %165, %166 : vector<8x32xf32>
      %168 = arith.negf %167 : vector<8x32xf32>
      %169 = math.exp %168 : vector<8x32xf32>
      %cst_108 = arith.constant 1.000000e+00 : f32
      %170 = vector.broadcast %cst_108 : f32 to vector<8x32xf32>
      %171 = arith.addf %170, %169 : vector<8x32xf32>
      %172 = arith.divf %170, %171 : vector<8x32xf32>
      %173 = vector.extract_strided_slice %156 {offsets = [0, 64], sizes = [8, 32], strides = [1, 1]} : vector<8x96xf32> to vector<8x32xf32>
      %174 = vector.extract_strided_slice %128 {offsets = [0, 64], sizes = [8, 32], strides = [1, 1]} : vector<8x96xf32> to vector<8x32xf32>
      %175 = arith.mulf %164, %174 : vector<8x32xf32>
      %176 = arith.addf %173, %175 : vector<8x32xf32>
      %177 = math.tanh %176 : vector<8x32xf32>
      %cst_109 = arith.constant 1.000000e+00 : f32
      %178 = vector.broadcast %cst_109 : f32 to vector<8x32xf32>
      %179 = arith.subf %178, %172 : vector<8x32xf32>
      %180 = arith.mulf %179, %177 : vector<8x32xf32>
      %181 = arith.mulf %172, %124 : vector<8x32xf32>
      %182 = arith.addf %180, %181 : vector<8x32xf32>
      %183 = tpu.concatenate %154, %182 in 1 : vector<8x32xf32>, vector<8x32xf32> -> vector<8x64xf32>
      %c0_110 = arith.constant 0 : index
      %c0_111 = arith.constant 0 : index
      %184 = vector.load %arg20[%c0_110, %c0_111] : memref<8x64xf32, #tpu.memory_space<vmem>>, vector<8x64xf32>
      tpu.vector_store %arg20[%c0_110, %c0_111], %183 {strides = array<i32>} : memref<8x64xf32, #tpu.memory_space<vmem>>, vector<8x64xf32>,
    } else {
    }
    %c9_i32 = arith.constant 9 : i32
    %103 = arith.cmpi sge, %0, %c9_i32 : i32
    %104 = arith.extui %103 : i1 to i32
    %c0_i32_85 = arith.constant 0 : i32
    %105 = arith.cmpi ne, %104, %c0_i32_85 : i32
    scf.if %105 {
      %c72 = arith.constant 72 : index
      %c0_99 = arith.constant 0 : index
      %121 = vector.load %arg19[%c72, %c0_99] : memref<96x96xf32, #tpu.memory_space<vmem>>, vector<8x96xf32>
      %c0_100 = arith.constant 0 : index
      %c0_101 = arith.constant 0 : index
      %122 = vector.load %arg20[%c0_100, %c0_101] : memref<8x64xf32, #tpu.memory_space<vmem>>, vector<8x64xf32>
      %123 = vector.extract_strided_slice %122 {offsets = [0, 0], sizes = [8, 32], strides = [1, 1]} : vector<8x64xf32> to vector<8x32xf32>
      %124 = vector.extract_strided_slice %122 {offsets = [0, 32], sizes = [8, 32], strides = [1, 1]} : vector<8x64xf32> to vector<8x32xf32>
      %cst_102 = arith.constant dense<0.000000e+00> : vector<8x192xf32>
      %125 = tpu.matmul %122, %66, %cst_102 {dimension_numbers = #tpu.dot_dimension_numbers<[1], [0], [0], [1], [0, 0, 1, 1], [], []>} : vector<8x64xf32>, vector<64x192xf32>, vector<8x192xf32> -> vector<8x192xf32>
      %126 = arith.addf %125, %70 : vector<8x192xf32>
      %127 = vector.extract_strided_slice %126 {offsets = [0, 0], sizes = [8, 96], strides = [1, 1]} : vector<8x192xf32> to vector<8x96xf32>
      %128 = vector.extract_strided_slice %126 {offsets = [0, 96], sizes = [8, 96], strides = [1, 1]} : vector<8x192xf32> to vector<8x96xf32>
      %129 = vector.extract_strided_slice %121 {offsets = [0, 0], sizes = [8, 32], strides = [1, 1]} : vector<8x96xf32> to vector<8x32xf32>
      %130 = vector.extract_strided_slice %127 {offsets = [0, 0], sizes = [8, 32], strides = [1, 1]} : vector<8x96xf32> to vector<8x32xf32>
      %131 = arith.addf %129, %130 : vector<8x32xf32>
      %132 = arith.negf %131 : vector<8x32xf32>
      %133 = math.exp %132 : vector<8x32xf32>
      %cst_103 = arith.constant 1.000000e+00 : f32
      %134 = vector.broadcast %cst_103 : f32 to vector<8x32xf32>
      %135 = arith.addf %134, %133 : vector<8x32xf32>
      %136 = arith.divf %134, %135 : vector<8x32xf32>
      %137 = vector.extract_strided_slice %121 {offsets = [0, 32], sizes = [8, 32], strides = [1, 1]} : vector<8x96xf32> to vector<8x32xf32>
      %138 = vector.extract_strided_slice %127 {offsets = [0, 32], sizes = [8, 32], strides = [1, 1]} : vector<8x96xf32> to vector<8x32xf32>
      %139 = arith.addf %137, %138 : vector<8x32xf32>
      %140 = arith.negf %139 : vector<8x32xf32>
      %141 = math.exp %140 : vector<8x32xf32>
      %cst_104 = arith.constant 1.000000e+00 : f32
      %142 = vector.broadcast %cst_104 : f32 to vector<8x32xf32>
      %143 = arith.addf %142, %141 : vector<8x32xf32>
      %144 = arith.divf %142, %143 : vector<8x32xf32>
      %145 = vector.extract_strided_slice %121 {offsets = [0, 64], sizes = [8, 32], strides = [1, 1]} : vector<8x96xf32> to vector<8x32xf32>
      %146 = vector.extract_strided_slice %127 {offsets = [0, 64], sizes = [8, 32], strides = [1, 1]} : vector<8x96xf32> to vector<8x32xf32>
      %147 = arith.mulf %136, %146 : vector<8x32xf32>
      %148 = arith.addf %145, %147 : vector<8x32xf32>
      %149 = math.tanh %148 : vector<8x32xf32>
      %cst_105 = arith.constant 1.000000e+00 : f32
      %150 = vector.broadcast %cst_105 : f32 to vector<8x32xf32>
      %151 = arith.subf %150, %144 : vector<8x32xf32>
      %152 = arith.mulf %151, %149 : vector<8x32xf32>
      %153 = arith.mulf %144, %123 : vector<8x32xf32>
      %154 = arith.addf %152, %153 : vector<8x32xf32>
      %cst_106 = arith.constant dense<0.000000e+00> : vector<8x96xf32>
      %155 = tpu.matmul %154, %67, %cst_106 {dimension_numbers = #tpu.dot_dimension_numbers<[1], [0], [0], [1], [0, 0, 1, 1], [], []>} : vector<8x32xf32>, vector<32x96xf32>, vector<8x96xf32> -> vector<8x96xf32>
      %156 = arith.addf %155, %73 : vector<8x96xf32>
      %157 = vector.extract_strided_slice %156 {offsets = [0, 0], sizes = [8, 32], strides = [1, 1]} : vector<8x96xf32> to vector<8x32xf32>
      %158 = vector.extract_strided_slice %128 {offsets = [0, 0], sizes = [8, 32], strides = [1, 1]} : vector<8x96xf32> to vector<8x32xf32>
      %159 = arith.addf %157, %158 : vector<8x32xf32>
      %160 = arith.negf %159 : vector<8x32xf32>
      %161 = math.exp %160 : vector<8x32xf32>
      %cst_107 = arith.constant 1.000000e+00 : f32
      %162 = vector.broadcast %cst_107 : f32 to vector<8x32xf32>
      %163 = arith.addf %162, %161 : vector<8x32xf32>
      %164 = arith.divf %162, %163 : vector<8x32xf32>
      %165 = vector.extract_strided_slice %156 {offsets = [0, 32], sizes = [8, 32], strides = [1, 1]} : vector<8x96xf32> to vector<8x32xf32>
      %166 = vector.extract_strided_slice %128 {offsets = [0, 32], sizes = [8, 32], strides = [1, 1]} : vector<8x96xf32> to vector<8x32xf32>
      %167 = arith.addf %165, %166 : vector<8x32xf32>
      %168 = arith.negf %167 : vector<8x32xf32>
      %169 = math.exp %168 : vector<8x32xf32>
      %cst_108 = arith.constant 1.000000e+00 : f32
      %170 = vector.broadcast %cst_108 : f32 to vector<8x32xf32>
      %171 = arith.addf %170, %169 : vector<8x32xf32>
      %172 = arith.divf %170, %171 : vector<8x32xf32>
      %173 = vector.extract_strided_slice %156 {offsets = [0, 64], sizes = [8, 32], strides = [1, 1]} : vector<8x96xf32> to vector<8x32xf32>
      %174 = vector.extract_strided_slice %128 {offsets = [0, 64], sizes = [8, 32], strides = [1, 1]} : vector<8x96xf32> to vector<8x32xf32>
      %175 = arith.mulf %164, %174 : vector<8x32xf32>
      %176 = arith.addf %173, %175 : vector<8x32xf32>
      %177 = math.tanh %176 : vector<8x32xf32>
      %cst_109 = arith.constant 1.000000e+00 : f32
      %178 = vector.broadcast %cst_109 : f32 to vector<8x32xf32>
      %179 = arith.subf %178, %172 : vector<8x32xf32>
      %180 = arith.mulf %179, %177 : vector<8x32xf32>
      %181 = arith.mulf %172, %124 : vector<8x32xf32>
      %182 = arith.addf %180, %181 : vector<8x32xf32>
      %183 = tpu.concatenate %154, %182 in 1 : vector<8x32xf32>, vector<8x32xf32> -> vector<8x64xf32>
      %c0_110 = arith.constant 0 : index
      %c0_111 = arith.constant 0 : index
      %184 = vector.load %arg20[%c0_110, %c0_111] : memref<8x64xf32, #tpu.memory_space<vmem>>, vector<8x64xf32>
      tpu.vector_store %arg20[%c0_110, %c0_111], %183 {strides = array<i32>} : memref<8x64xf32, #tpu.memory_space<vmem>>, vector<8x64xf32>,
    } else {
    }
    %c10_i32 = arith.constant 10 : i32
    %106 = arith.cmpi sge, %0, %c10_i32 : i32
    %107 = arith.extui %106 : i1 to i32
    %c0_i32_86 = arith.constant 0 : i32
    %108 = arith.cmpi ne, %107, %c0_i32_86 : i32
    scf.if %108 {
      %c80 = arith.constant 80 : index
      %c0_99 = arith.constant 0 : index
      %121 = vector.load %arg19[%c80, %c0_99] : memref<96x96xf32, #tpu.memory_space<vmem>>, vector<8x96xf32>
      %c0_100 = arith.constant 0 : index
      %c0_101 = arith.constant 0 : index
      %122 = vector.load %arg20[%c0_100, %c0_101] : memref<8x64xf32, #tpu.memory_space<vmem>>, vector<8x64xf32>
      %123 = vector.extract_strided_slice %122 {offsets = [0, 0], sizes = [8, 32], strides = [1, 1]} : vector<8x64xf32> to vector<8x32xf32>
      %124 = vector.extract_strided_slice %122 {offsets = [0, 32], sizes = [8, 32], strides = [1, 1]} : vector<8x64xf32> to vector<8x32xf32>
      %cst_102 = arith.constant dense<0.000000e+00> : vector<8x192xf32>
      %125 = tpu.matmul %122, %66, %cst_102 {dimension_numbers = #tpu.dot_dimension_numbers<[1], [0], [0], [1], [0, 0, 1, 1], [], []>} : vector<8x64xf32>, vector<64x192xf32>, vector<8x192xf32> -> vector<8x192xf32>
      %126 = arith.addf %125, %70 : vector<8x192xf32>
      %127 = vector.extract_strided_slice %126 {offsets = [0, 0], sizes = [8, 96], strides = [1, 1]} : vector<8x192xf32> to vector<8x96xf32>
      %128 = vector.extract_strided_slice %126 {offsets = [0, 96], sizes = [8, 96], strides = [1, 1]} : vector<8x192xf32> to vector<8x96xf32>
      %129 = vector.extract_strided_slice %121 {offsets = [0, 0], sizes = [8, 32], strides = [1, 1]} : vector<8x96xf32> to vector<8x32xf32>
      %130 = vector.extract_strided_slice %127 {offsets = [0, 0], sizes = [8, 32], strides = [1, 1]} : vector<8x96xf32> to vector<8x32xf32>
      %131 = arith.addf %129, %130 : vector<8x32xf32>
      %132 = arith.negf %131 : vector<8x32xf32>
      %133 = math.exp %132 : vector<8x32xf32>
      %cst_103 = arith.constant 1.000000e+00 : f32
      %134 = vector.broadcast %cst_103 : f32 to vector<8x32xf32>
      %135 = arith.addf %134, %133 : vector<8x32xf32>
      %136 = arith.divf %134, %135 : vector<8x32xf32>
      %137 = vector.extract_strided_slice %121 {offsets = [0, 32], sizes = [8, 32], strides = [1, 1]} : vector<8x96xf32> to vector<8x32xf32>
      %138 = vector.extract_strided_slice %127 {offsets = [0, 32], sizes = [8, 32], strides = [1, 1]} : vector<8x96xf32> to vector<8x32xf32>
      %139 = arith.addf %137, %138 : vector<8x32xf32>
      %140 = arith.negf %139 : vector<8x32xf32>
      %141 = math.exp %140 : vector<8x32xf32>
      %cst_104 = arith.constant 1.000000e+00 : f32
      %142 = vector.broadcast %cst_104 : f32 to vector<8x32xf32>
      %143 = arith.addf %142, %141 : vector<8x32xf32>
      %144 = arith.divf %142, %143 : vector<8x32xf32>
      %145 = vector.extract_strided_slice %121 {offsets = [0, 64], sizes = [8, 32], strides = [1, 1]} : vector<8x96xf32> to vector<8x32xf32>
      %146 = vector.extract_strided_slice %127 {offsets = [0, 64], sizes = [8, 32], strides = [1, 1]} : vector<8x96xf32> to vector<8x32xf32>
      %147 = arith.mulf %136, %146 : vector<8x32xf32>
      %148 = arith.addf %145, %147 : vector<8x32xf32>
      %149 = math.tanh %148 : vector<8x32xf32>
      %cst_105 = arith.constant 1.000000e+00 : f32
      %150 = vector.broadcast %cst_105 : f32 to vector<8x32xf32>
      %151 = arith.subf %150, %144 : vector<8x32xf32>
      %152 = arith.mulf %151, %149 : vector<8x32xf32>
      %153 = arith.mulf %144, %123 : vector<8x32xf32>
      %154 = arith.addf %152, %153 : vector<8x32xf32>
      %cst_106 = arith.constant dense<0.000000e+00> : vector<8x96xf32>
      %155 = tpu.matmul %154, %67, %cst_106 {dimension_numbers = #tpu.dot_dimension_numbers<[1], [0], [0], [1], [0, 0, 1, 1], [], []>} : vector<8x32xf32>, vector<32x96xf32>, vector<8x96xf32> -> vector<8x96xf32>
      %156 = arith.addf %155, %73 : vector<8x96xf32>
      %157 = vector.extract_strided_slice %156 {offsets = [0, 0], sizes = [8, 32], strides = [1, 1]} : vector<8x96xf32> to vector<8x32xf32>
      %158 = vector.extract_strided_slice %128 {offsets = [0, 0], sizes = [8, 32], strides = [1, 1]} : vector<8x96xf32> to vector<8x32xf32>
      %159 = arith.addf %157, %158 : vector<8x32xf32>
      %160 = arith.negf %159 : vector<8x32xf32>
      %161 = math.exp %160 : vector<8x32xf32>
      %cst_107 = arith.constant 1.000000e+00 : f32
      %162 = vector.broadcast %cst_107 : f32 to vector<8x32xf32>
      %163 = arith.addf %162, %161 : vector<8x32xf32>
      %164 = arith.divf %162, %163 : vector<8x32xf32>
      %165 = vector.extract_strided_slice %156 {offsets = [0, 32], sizes = [8, 32], strides = [1, 1]} : vector<8x96xf32> to vector<8x32xf32>
      %166 = vector.extract_strided_slice %128 {offsets = [0, 32], sizes = [8, 32], strides = [1, 1]} : vector<8x96xf32> to vector<8x32xf32>
      %167 = arith.addf %165, %166 : vector<8x32xf32>
      %168 = arith.negf %167 : vector<8x32xf32>
      %169 = math.exp %168 : vector<8x32xf32>
      %cst_108 = arith.constant 1.000000e+00 : f32
      %170 = vector.broadcast %cst_108 : f32 to vector<8x32xf32>
      %171 = arith.addf %170, %169 : vector<8x32xf32>
      %172 = arith.divf %170, %171 : vector<8x32xf32>
      %173 = vector.extract_strided_slice %156 {offsets = [0, 64], sizes = [8, 32], strides = [1, 1]} : vector<8x96xf32> to vector<8x32xf32>
      %174 = vector.extract_strided_slice %128 {offsets = [0, 64], sizes = [8, 32], strides = [1, 1]} : vector<8x96xf32> to vector<8x32xf32>
      %175 = arith.mulf %164, %174 : vector<8x32xf32>
      %176 = arith.addf %173, %175 : vector<8x32xf32>
      %177 = math.tanh %176 : vector<8x32xf32>
      %cst_109 = arith.constant 1.000000e+00 : f32
      %178 = vector.broadcast %cst_109 : f32 to vector<8x32xf32>
      %179 = arith.subf %178, %172 : vector<8x32xf32>
      %180 = arith.mulf %179, %177 : vector<8x32xf32>
      %181 = arith.mulf %172, %124 : vector<8x32xf32>
      %182 = arith.addf %180, %181 : vector<8x32xf32>
      %183 = tpu.concatenate %154, %182 in 1 : vector<8x32xf32>, vector<8x32xf32> -> vector<8x64xf32>
      %c0_110 = arith.constant 0 : index
      %c0_111 = arith.constant 0 : index
      %184 = vector.load %arg20[%c0_110, %c0_111] : memref<8x64xf32, #tpu.memory_space<vmem>>, vector<8x64xf32>
      tpu.vector_store %arg20[%c0_110, %c0_111], %183 {strides = array<i32>} : memref<8x64xf32, #tpu.memory_space<vmem>>, vector<8x64xf32>,
    } else {
    }
    %c11_i32 = arith.constant 11 : i32
    %109 = arith.cmpi sge, %0, %c11_i32 : i32
    %110 = arith.extui %109 : i1 to i32
    %c0_i32_87 = arith.constant 0 : i32
    %111 = arith.cmpi ne, %110, %c0_i32_87 : i32
    scf.if %111 {
      %c88 = arith.constant 88 : index
      %c0_99 = arith.constant 0 : index
      %121 = vector.load %arg19[%c88, %c0_99] : memref<96x96xf32, #tpu.memory_space<vmem>>, vector<8x96xf32>
      %c0_100 = arith.constant 0 : index
      %c0_101 = arith.constant 0 : index
      %122 = vector.load %arg20[%c0_100, %c0_101] : memref<8x64xf32, #tpu.memory_space<vmem>>, vector<8x64xf32>
      %123 = vector.extract_strided_slice %122 {offsets = [0, 0], sizes = [8, 32], strides = [1, 1]} : vector<8x64xf32> to vector<8x32xf32>
      %124 = vector.extract_strided_slice %122 {offsets = [0, 32], sizes = [8, 32], strides = [1, 1]} : vector<8x64xf32> to vector<8x32xf32>
      %cst_102 = arith.constant dense<0.000000e+00> : vector<8x192xf32>
      %125 = tpu.matmul %122, %66, %cst_102 {dimension_numbers = #tpu.dot_dimension_numbers<[1], [0], [0], [1], [0, 0, 1, 1], [], []>} : vector<8x64xf32>, vector<64x192xf32>, vector<8x192xf32> -> vector<8x192xf32>
      %126 = arith.addf %125, %70 : vector<8x192xf32>
      %127 = vector.extract_strided_slice %126 {offsets = [0, 0], sizes = [8, 96], strides = [1, 1]} : vector<8x192xf32> to vector<8x96xf32>
      %128 = vector.extract_strided_slice %126 {offsets = [0, 96], sizes = [8, 96], strides = [1, 1]} : vector<8x192xf32> to vector<8x96xf32>
      %129 = vector.extract_strided_slice %121 {offsets = [0, 0], sizes = [8, 32], strides = [1, 1]} : vector<8x96xf32> to vector<8x32xf32>
      %130 = vector.extract_strided_slice %127 {offsets = [0, 0], sizes = [8, 32], strides = [1, 1]} : vector<8x96xf32> to vector<8x32xf32>
      %131 = arith.addf %129, %130 : vector<8x32xf32>
      %132 = arith.negf %131 : vector<8x32xf32>
      %133 = math.exp %132 : vector<8x32xf32>
      %cst_103 = arith.constant 1.000000e+00 : f32
      %134 = vector.broadcast %cst_103 : f32 to vector<8x32xf32>
      %135 = arith.addf %134, %133 : vector<8x32xf32>
      %136 = arith.divf %134, %135 : vector<8x32xf32>
      %137 = vector.extract_strided_slice %121 {offsets = [0, 32], sizes = [8, 32], strides = [1, 1]} : vector<8x96xf32> to vector<8x32xf32>
      %138 = vector.extract_strided_slice %127 {offsets = [0, 32], sizes = [8, 32], strides = [1, 1]} : vector<8x96xf32> to vector<8x32xf32>
      %139 = arith.addf %137, %138 : vector<8x32xf32>
      %140 = arith.negf %139 : vector<8x32xf32>
      %141 = math.exp %140 : vector<8x32xf32>
      %cst_104 = arith.constant 1.000000e+00 : f32
      %142 = vector.broadcast %cst_104 : f32 to vector<8x32xf32>
      %143 = arith.addf %142, %141 : vector<8x32xf32>
      %144 = arith.divf %142, %143 : vector<8x32xf32>
      %145 = vector.extract_strided_slice %121 {offsets = [0, 64], sizes = [8, 32], strides = [1, 1]} : vector<8x96xf32> to vector<8x32xf32>
      %146 = vector.extract_strided_slice %127 {offsets = [0, 64], sizes = [8, 32], strides = [1, 1]} : vector<8x96xf32> to vector<8x32xf32>
      %147 = arith.mulf %136, %146 : vector<8x32xf32>
      %148 = arith.addf %145, %147 : vector<8x32xf32>
      %149 = math.tanh %148 : vector<8x32xf32>
      %cst_105 = arith.constant 1.000000e+00 : f32
      %150 = vector.broadcast %cst_105 : f32 to vector<8x32xf32>
      %151 = arith.subf %150, %144 : vector<8x32xf32>
      %152 = arith.mulf %151, %149 : vector<8x32xf32>
      %153 = arith.mulf %144, %123 : vector<8x32xf32>
      %154 = arith.addf %152, %153 : vector<8x32xf32>
      %cst_106 = arith.constant dense<0.000000e+00> : vector<8x96xf32>
      %155 = tpu.matmul %154, %67, %cst_106 {dimension_numbers = #tpu.dot_dimension_numbers<[1], [0], [0], [1], [0, 0, 1, 1], [], []>} : vector<8x32xf32>, vector<32x96xf32>, vector<8x96xf32> -> vector<8x96xf32>
      %156 = arith.addf %155, %73 : vector<8x96xf32>
      %157 = vector.extract_strided_slice %156 {offsets = [0, 0], sizes = [8, 32], strides = [1, 1]} : vector<8x96xf32> to vector<8x32xf32>
      %158 = vector.extract_strided_slice %128 {offsets = [0, 0], sizes = [8, 32], strides = [1, 1]} : vector<8x96xf32> to vector<8x32xf32>
      %159 = arith.addf %157, %158 : vector<8x32xf32>
      %160 = arith.negf %159 : vector<8x32xf32>
      %161 = math.exp %160 : vector<8x32xf32>
      %cst_107 = arith.constant 1.000000e+00 : f32
      %162 = vector.broadcast %cst_107 : f32 to vector<8x32xf32>
      %163 = arith.addf %162, %161 : vector<8x32xf32>
      %164 = arith.divf %162, %163 : vector<8x32xf32>
      %165 = vector.extract_strided_slice %156 {offsets = [0, 32], sizes = [8, 32], strides = [1, 1]} : vector<8x96xf32> to vector<8x32xf32>
      %166 = vector.extract_strided_slice %128 {offsets = [0, 32], sizes = [8, 32], strides = [1, 1]} : vector<8x96xf32> to vector<8x32xf32>
      %167 = arith.addf %165, %166 : vector<8x32xf32>
      %168 = arith.negf %167 : vector<8x32xf32>
      %169 = math.exp %168 : vector<8x32xf32>
      %cst_108 = arith.constant 1.000000e+00 : f32
      %170 = vector.broadcast %cst_108 : f32 to vector<8x32xf32>
      %171 = arith.addf %170, %169 : vector<8x32xf32>
      %172 = arith.divf %170, %171 : vector<8x32xf32>
      %173 = vector.extract_strided_slice %156 {offsets = [0, 64], sizes = [8, 32], strides = [1, 1]} : vector<8x96xf32> to vector<8x32xf32>
      %174 = vector.extract_strided_slice %128 {offsets = [0, 64], sizes = [8, 32], strides = [1, 1]} : vector<8x96xf32> to vector<8x32xf32>
      %175 = arith.mulf %164, %174 : vector<8x32xf32>
      %176 = arith.addf %173, %175 : vector<8x32xf32>
      %177 = math.tanh %176 : vector<8x32xf32>
      %cst_109 = arith.constant 1.000000e+00 : f32
      %178 = vector.broadcast %cst_109 : f32 to vector<8x32xf32>
      %179 = arith.subf %178, %172 : vector<8x32xf32>
      %180 = arith.mulf %179, %177 : vector<8x32xf32>
      %181 = arith.mulf %172, %124 : vector<8x32xf32>
      %182 = arith.addf %180, %181 : vector<8x32xf32>
      %183 = tpu.concatenate %154, %182 in 1 : vector<8x32xf32>, vector<8x32xf32> -> vector<8x64xf32>
      %c0_110 = arith.constant 0 : index
      %c0_111 = arith.constant 0 : index
      %184 = vector.load %arg20[%c0_110, %c0_111] : memref<8x64xf32, #tpu.memory_space<vmem>>, vector<8x64xf32>
      tpu.vector_store %arg20[%c0_110, %c0_111], %183 {strides = array<i32>} : memref<8x64xf32, #tpu.memory_space<vmem>>, vector<8x64xf32>,
    } else {
    }
    %c0_88 = arith.constant 0 : index
    %c0_89 = arith.constant 0 : index
    %112 = vector.load %arg20[%c0_88, %c0_89] : memref<8x64xf32, #tpu.memory_space<vmem>>, vector<8x64xf32>
    %c0_90 = arith.constant 0 : index
    %c0_91 = arith.constant 0 : index
    %113 = vector.load %arg17[%c0_90, %c0_91] : memref<8x64xf32, #tpu.memory_space<vmem>>, vector<8x64xf32>
    tpu.vector_store %arg17[%c0_90, %c0_91], %112 {strides = array<i32>} : memref<8x64xf32, #tpu.memory_space<vmem>>, vector<8x64xf32>,
    %114 = vector.extract_strided_slice %112 {offsets = [0, 32], sizes = [8, 32], strides = [1, 1]} : vector<8x64xf32> to vector<8x32xf32>
    %c0_92 = arith.constant 0 : index
    %c0_93 = arith.constant 0 : index
    %115 = vector.load %arg13[%c0_92, %c0_93] : memref<32x128xf32, #tpu.memory_space<vmem>>, vector<32x128xf32>
    %cst_94 = arith.constant dense<0.000000e+00> : vector<8x128xf32>
    %116 = tpu.matmul %114, %115, %cst_94 {dimension_numbers = #tpu.dot_dimension_numbers<[1], [0], [0], [1], [0, 0, 1, 1], [], []>} : vector<8x32xf32>, vector<32x128xf32>, vector<8x128xf32> -> vector<8x128xf32>
    %c0_95 = arith.constant 0 : index
    %c0_96 = arith.constant 0 : index
    %117 = vector.load %arg14[%c0_95, %c0_96] : memref<1x128xf32, #tpu.memory_space<vmem>>, vector<1x128xf32>
    %118 = vector.broadcast %117 : vector<1x128xf32> to vector<8x128xf32>
    %119 = arith.addf %116, %118 : vector<8x128xf32>
    %c0_97 = arith.constant 0 : index
    %c0_98 = arith.constant 0 : index
    %120 = vector.load %arg16[%c0_97, %c0_98] : memref<8x128xf32, #tpu.memory_space<vmem>>, vector<8x128xf32>
    tpu.vector_store %arg16[%c0_97, %c0_98], %119 {strides = array<i32>} : memref<8x128xf32, #tpu.memory_space<vmem>>, vector<8x128xf32>,
    return
  }
}

</mosaic_0001>

<llo_original>
// kernel: cpc_forward.1
$region0: #{cpc_forward.1}
  #allocation0 [shape = 'u32[]', space=smem, size = 0x4, offset = 0x4, fixed_abs, tag = 'smem constant byte address 0x4 - core index']
  #allocation1 [shape = 'u32[144,128]{1,0:T(1,128)}', space=vmem, size = 0x12000, scoped, tag = 'internal scratch']
  #allocation2 [shape = 'f32[128,32]{1,0:T(8,128)}', space=vmem, size = 0x10000, scoped, tag = 'scratch operand']
  #allocation3 [shape = 'f32[96,96]{1,0:T(8,128)}', space=vmem, size = 0xc000, scoped, tag = 'scratch operand']
  #allocation4 [shape = 'f32[8,64]{1,0:T(8,128)}', space=vmem, size = 0x1000, scoped, tag = 'scratch operand']
  #allocation5 [shape = 'f32[144,16]{1,0:T(8,128)}', space=vmem, size = 0x12000, scoped, tag = 'scratch operand']
  #allocation6 [shape = 's32[1]{0:T(128)S(6)}', space=smem, size = 0x200, scoped, tag = 'scoped memory for cpc_forward.1']
  %s0 = inlined_call_operand.<no memory space> [shape: s32[1], index: 0, kind: input, shape index: {}]
  %s1 = inlined_call_operand.vmem [shape: f32[144,4], index: 1, kind: input, shape index: {}]
  %s2 = inlined_call_operand.vmem [shape: f32[3,4,16], index: 2, kind: input, shape index: {}]
  %s3 = inlined_call_operand.vmem [shape: f32[1,16], index: 3, kind: input, shape index: {}]
  %s4 = inlined_call_operand.vmem [shape: f32[3,16,32], index: 4, kind: input, shape index: {}]
  %s5 = inlined_call_operand.vmem [shape: f32[1,32], index: 5, kind: input, shape index: {}]
  %s6 = inlined_call_operand.vmem [shape: f32[8,64], index: 6, kind: input, shape index: {}]
  %s7 = inlined_call_operand.vmem [shape: f32[32,96], index: 7, kind: input, shape index: {}]
  %s8 = inlined_call_operand.vmem [shape: f32[64,192], index: 8, kind: input, shape index: {}]
  %s9 = inlined_call_operand.vmem [shape: f32[1,96], index: 9, kind: input, shape index: {}]
  %s10 = inlined_call_operand.vmem [shape: f32[1,192], index: 10, kind: input, shape index: {}]
  %s11 = inlined_call_operand.vmem [shape: f32[32,96], index: 11, kind: input, shape index: {}]
  %s12 = inlined_call_operand.vmem [shape: f32[1,96], index: 12, kind: input, shape index: {}]
  %s13 = inlined_call_operand.vmem [shape: f32[32,128], index: 13, kind: input, shape index: {}]
  %s14 = inlined_call_operand.vmem [shape: f32[1,128], index: 14, kind: input, shape index: {}]
  %s15 = inlined_call_operand.vmem [shape: f32[32,32], index: 15, kind: output, shape index: {0}]
  %s16 = inlined_call_operand.vmem [shape: f32[8,128], index: 16, kind: output, shape index: {1}]
  %s17 = inlined_call_operand.vmem [shape: f32[8,64], index: 17, kind: output, shape index: {2}]
  %18 = xla_tuple %s15, %s16, %s17
  %s19 = sld [smem:[#allocation0]]
  $region134: #{cpc_forward.1} parent=0
    _
  %s21 = ssub.s32 1, %s19
  %s22 = scalar_select 0, %s21, %s19
  %23 = sst [smem:[#allocation6]] %s0
  // Predicated region
  $region2: #{cpc_forward.1} parent=0 // pred_check
    _
  $region3: #{cpc_forward.1} parent=0 // pred_check_branch
    %25 = sbr.rel (0) target = $region5
  $region4: #{cpc_forward.1} parent=0 // pred_region
    _
  $region5: #{cpc_forward.1} parent=0 // pred_fallthru
    _
  // Predicated region
  $region6: #{cpc_forward.1} parent=0 // pred_check
    _
  $region7: #{cpc_forward.1} parent=0 // pred_check_branch
    %27 = sbr.rel (0) target = $region9
  $region8: #{cpc_forward.1} parent=0 // pred_region
    _
  $region9: #{cpc_forward.1} parent=0 // pred_fallthru
    _
  // Predicated region
  $region10: #{cpc_forward.1} parent=0 // pred_check
    _
  $region11: #{cpc_forward.1} parent=0 // pred_check_branch
    %29 = sbr.rel (0) target = $region13
  $region12: #{cpc_forward.1} parent=0 // pred_region
    _
  $region13: #{cpc_forward.1} parent=0 // pred_fallthru
    _
  // Predicated region
  $region14: #{cpc_forward.1} parent=0 // pred_check
    _
  $region15: #{cpc_forward.1} parent=0 // pred_check_branch
    %31 = sbr.rel (0) target = $region17
  $region16: #{cpc_forward.1} parent=0 // pred_region
    _
  $region17: #{cpc_forward.1} parent=0 // pred_fallthru
    _
  // Predicated region
  $region18: #{cpc_forward.1} parent=0 // pred_check
    _
  $region19: #{cpc_forward.1} parent=0 // pred_check_branch
    %33 = sbr.rel (0) target = $region21
  $region20: #{cpc_forward.1} parent=0 // pred_region
    _
  $region21: #{cpc_forward.1} parent=0 // pred_fallthru
    _
  // Predicated region
  $region22: #{cpc_forward.1} parent=0 // pred_check
    _
  $region23: #{cpc_forward.1} parent=0 // pred_check_branch
    %35 = sbr.rel (0) target = $region25
  $region24: #{cpc_forward.1} parent=0 // pred_region
    _
  $region25: #{cpc_forward.1} parent=0 // pred_fallthru
    _
  // Predicated region
  $region26: #{cpc_forward.1} parent=0 // pred_check
    _
  $region27: #{cpc_forward.1} parent=0 // pred_check_branch
    %37 = sbr.rel (0) target = $region29
  $region28: #{cpc_forward.1} parent=0 // pred_region
    _
  $region29: #{cpc_forward.1} parent=0 // pred_fallthru
    _
  // Predicated region
  $region30: #{cpc_forward.1} parent=0 // pred_check
    _
  $region31: #{cpc_forward.1} parent=0 // pred_check_branch
    %39 = sbr.rel (0) target = $region33
  $region32: #{cpc_forward.1} parent=0 // pred_region
    _
  $region33: #{cpc_forward.1} parent=0 // pred_fallthru
    _
  // Predicated region
  $region34: #{cpc_forward.1} parent=0 // pred_check
    _
  $region35: #{cpc_forward.1} parent=0 // pred_check_branch
    %41 = sbr.rel (0) target = $region37
  $region36: #{cpc_forward.1} parent=0 // pred_region
    _
  $region37: #{cpc_forward.1} parent=0 // pred_fallthru
    _
  // Predicated region
  $region38: #{cpc_forward.1} parent=0 // pred_check
    _
  $region39: #{cpc_forward.1} parent=0 // pred_check_branch
    %43 = sbr.rel (0) target = $region41
  $region40: #{cpc_forward.1} parent=0 // pred_region
    _
  $region41: #{cpc_forward.1} parent=0 // pred_fallthru
    _
  // Predicated region
  $region42: #{cpc_forward.1} parent=0 // pred_check
    _
  $region43: #{cpc_forward.1} parent=0 // pred_check_branch
    %45 = sbr.rel (0) target = $region45
  $region44: #{cpc_forward.1} parent=0 // pred_region
    _
  $region45: #{cpc_forward.1} parent=0 // pred_fallthru
    _
  // Predicated region
  $region46: #{cpc_forward.1} parent=0 // pred_check
    _
  $region47: #{cpc_forward.1} parent=0 // pred_check_branch
    %47 = sbr.rel (0) target = $region49
  $region48: #{cpc_forward.1} parent=0 // pred_region
    _
  $region49: #{cpc_forward.1} parent=0 // pred_fallthru
    _
  // Predicated region
  $region50: #{cpc_forward.1} parent=0 // pred_check
    _
  $region51: #{cpc_forward.1} parent=0 // pred_check_branch
    %49 = sbr.rel (0) target = $region53
  $region52: #{cpc_forward.1} parent=0 // pred_region
    _
  $region53: #{cpc_forward.1} parent=0 // pred_fallthru
    _
  // Predicated region
  $region54: #{cpc_forward.1} parent=0 // pred_check
    _
  $region55: #{cpc_forward.1} parent=0 // pred_check_branch
    %51 = sbr.rel (0) target = $region57
  $region56: #{cpc_forward.1} parent=0 // pred_region
    _
  $region57: #{cpc_forward.1} parent=0 // pred_fallthru
    _
  // Predicated region
  $region58: #{cpc_forward.1} parent=0 // pred_check
    _
  $region59: #{cpc_forward.1} parent=0 // pred_check_branch
    %53 = sbr.rel (0) target = $region61
  $region60: #{cpc_forward.1} parent=0 // pred_region
    _
  $region61: #{cpc_forward.1} parent=0 // pred_fallthru
    _
  %s54 = sld [smem:[#allocation6]]
  %v55 = vld [vmem:[%s1] sm:$0xff]
  %v56 = vld [vmem:[%s1 + $0x8] sm:$0xff]
  %v57 = vld [vmem:[%s1 + $0x10] sm:$0xff]
  %v58 = vld [vmem:[%s1 + $0x18] sm:$0xff]
  %v59 = vld [vmem:[%s1 + $0x20] sm:$0xff]
  %v60 = vld [vmem:[%s1 + $0x28] sm:$0xff]
  %v61 = vld [vmem:[%s1 + $0x30] sm:$0xff]
  %v62 = vld [vmem:[%s1 + $0x38] sm:$0xff]
  %v63 = vld [vmem:[%s1 + $0x40] sm:$0xff]
  %v64 = vld [vmem:[%s1 + $0x48] sm:$0xff]
  %v65 = vld [vmem:[%s1 + $0x50] sm:$0xff]
  %v66 = vld [vmem:[%s1 + $0x58] sm:$0xff]
  %v67 = vld [vmem:[%s1 + $0x60] sm:$0xff]
  %v68 = vld [vmem:[%s1 + $0x68] sm:$0xff]
  %v69 = vld [vmem:[%s1 + $0x70] sm:$0xff]
  %v70 = vld [vmem:[%s1 + $0x78] sm:$0xff]
  %v71 = vld [vmem:[%s2] sm:$0xf]
  %v72 = vld [vmem:[%s1 + $0x80] sm:$0xff]
  %s73 = scalar_lea.vmem %s2, 4
  %v74 = vld [vmem:[%s73] sm:$0xf]
  %vm75 = vcmask 31744
  %v77 = vsel %vm75, %v56, 0
  %v80 = vsel %vm75, %v57, 0
  %v83 = vsel %vm75, %v58, 0
  %v86 = vsel %vm75, %v59, 0
  %v89 = vsel %vm75, %v60, 0
  %v92 = vsel %vm75, %v61, 0
  %v95 = vsel %vm75, %v62, 0
  %v98 = vsel %vm75, %v63, 0
  %v101 = vsel %vm75, %v64, 0
  %v104 = vsel %vm75, %v65, 0
  %v107 = vsel %vm75, %v66, 0
  %v110 = vsel %vm75, %v67, 0
  %v113 = vsel %vm75, %v68, 0
  %v116 = vsel %vm75, %v69, 0
  %v119 = vsel %vm75, %v70, 0
  %v122 = vsel %vm75, %v72, 0
  %vm124 = vcmask 1043456
  %v126 = vsel %vm124, %v74, 0
  %128 = vmatprep.subr.mxu0 0.0
  %129 = vmatpush1.msra.mxu0 %v126
  %130 = vmatprep.subr.mxu0 0.0
  %131 = vmatpush1.msra.mxu0 0.0
  %132 = vmatprep.subr.mxu0 0.0
  %133 = vmatpush1.msra.mxu0 0.0
  %134 = vmatprep.subr.mxu0 0.0
  %135 = vmatpush1.msra.mxu0 0.0
  %136 = vmatprep.subr.mxu0 0.0
  %137 = vmatpush1.msra.mxu0 0.0
  %138 = vmatprep.subr.mxu0 0.0
  %139 = vmatpush1.msra.mxu0 0.0
  %140 = vmatprep.subr.mxu0 0.0
  %141 = vmatpush1.msra.mxu0 0.0
  %142 = vmatprep.subr.mxu0 0.0
  %143 = vmatpush1.msra.mxu0 0.0
  %144 = vmatprep.subr.mxu0 0.0
  %145 = vmatpush1.msra.mxu0 0.0
  %146 = vmatprep.subr.mxu0 0.0
  %147 = vmatpush1.msra.mxu0 0.0
  %148 = vmatprep.subr.mxu0 0.0
  %149 = vmatpush1.msra.mxu0 0.0
  %150 = vmatprep.subr.mxu0 0.0
  %151 = vmatpush1.msra.mxu0 0.0
  %152 = vmatprep.subr.mxu0 0.0
  %153 = vmatpush1.msra.mxu0 0.0
  %154 = vmatprep.subr.mxu0 0.0
  %155 = vmatpush1.msra.mxu0 0.0
  %156 = vmatprep.subr.mxu0 0.0
  %157 = vmatpush1.msra.mxu0 0.0
  %158 = vmatprep.subr.mxu0 0.0
  %159 = vmatpush1.msra.mxu0 0.0
  %160 = vmatprep.subr.mxu0 0.0
  %161 = vmatpush1.msra.mxu0 0.0
  %162 = vmatprep.subr.mxu0 0.0
  %163 = vmatpush1.msra.mxu0 0.0
  %164 = vmatprep.subr.mxu0 0.0
  %165 = vmatpush1.msra.mxu0 0.0
  %166 = vmatprep.subr.mxu0 0.0
  %167 = vmatpush1.msra.mxu0 0.0
  %168 = vmatprep.subr.mxu0 0.0
  %169 = vmatpush1.msra.mxu0 0.0
  %170 = vmatprep.subr.mxu0 0.0
  %171 = vmatpush1.msra.mxu0 0.0
  %172 = vmatprep.subr.mxu0 0.0
  %173 = vmatpush1.msra.mxu0 0.0
  %174 = vmatprep.subr.mxu0 0.0
  %175 = vmatpush1.msra.mxu0 0.0
  %176 = vmatprep.subr.mxu0 0.0
  %177 = vmatpush1.msra.mxu0 0.0
  %178 = vmatprep.subr.mxu0 0.0
  %179 = vmatpush1.msra.mxu0 0.0
  %180 = vmatprep.subr.mxu0 0.0
  %181 = vmatpush1.msra.mxu0 0.0
  %182 = vmatprep.subr.mxu0 0.0
  %183 = vmatpush1.msra.mxu0 0.0
  %184 = vmatprep.subr.mxu0 0.0
  %185 = vmatpush1.msra.mxu0 0.0
  %186 = vmatprep.subr.mxu0 0.0
  %187 = vmatpush1.msra.mxu0 0.0
  %188 = vmatprep.subr.mxu0 0.0
  %189 = vmatpush1.msra.mxu0 0.0
  %190 = vmatprep.subr.mxu0 0.0
  %191 = vmatpush1.msra.mxu0 0.0
  %192 = vmatprep.mubr.f32.mxu0 0.0
  %193 = vmatmul.mubr.f32.gmra.mrb[0].mxu0 %v77
  %v194 = vpop.f32.mrb[0].mxu0
  %v195 = vadd.f32 0.0, %v194
  %v196 = vpop.f32.mrb[0].mxu0
  %197 = vmatprep.mubr.f32.mxu0 0.0
  %198 = vmatmul.mubr.f32.gmra.mrb[0].mxu0 %v80
  %v199 = vpop.f32.mrb[0].mxu0
  %v200 = vadd.f32 0.0, %v199
  %v201 = vpop.f32.mrb[0].mxu0
  %202 = vmatprep.mubr.f32.mxu0 0.0
  %203 = vmatmul.mubr.f32.gmra.mrb[0].mxu0 %v83
  %v204 = vpop.f32.mrb[0].mxu0
  %v205 = vadd.f32 0.0, %v204
  %v206 = vpop.f32.mrb[0].mxu0
  %207 = vmatprep.mubr.f32.mxu0 0.0
  %208 = vmatmul.mubr.f32.gmra.mrb[0].mxu0 %v86
  %v209 = vpop.f32.mrb[0].mxu0
  %v210 = vadd.f32 0.0, %v209
  %v211 = vpop.f32.mrb[0].mxu0
  %212 = vmatprep.mubr.f32.mxu0 0.0
  %213 = vmatmul.mubr.f32.gmra.mrb[0].mxu0 %v89
  %v214 = vpop.f32.mrb[0].mxu0
  %v215 = vadd.f32 0.0, %v214
  %v216 = vpop.f32.mrb[0].mxu0
  %217 = vmatprep.mubr.f32.mxu0 0.0
  %218 = vmatmul.mubr.f32.gmra.mrb[0].mxu0 %v92
  %v219 = vpop.f32.mrb[0].mxu0
  %v220 = vadd.f32 0.0, %v219
  %v221 = vpop.f32.mrb[0].mxu0
  %222 = vmatprep.mubr.f32.mxu0 0.0
  %223 = vmatmul.mubr.f32.gmra.mrb[0].mxu0 %v95
  %v224 = vpop.f32.mrb[0].mxu0
  %v225 = vadd.f32 0.0, %v224
  %v226 = vpop.f32.mrb[0].mxu0
  %227 = vmatprep.mubr.f32.mxu0 0.0
  %228 = vmatmul.mubr.f32.gmra.mrb[0].mxu0 %v98
  %v229 = vpop.f32.mrb[0].mxu0
  %v230 = vadd.f32 0.0, %v229
  %v231 = vpop.f32.mrb[0].mxu0
  %232 = vmatprep.mubr.f32.mxu0 0.0
  %233 = vmatmul.mubr.f32.gmra.mrb[0].mxu0 %v101
  %v234 = vpop.f32.mrb[0].mxu0
  %v235 = vadd.f32 0.0, %v234
  %v236 = vpop.f32.mrb[0].mxu0
  %237 = vmatprep.mubr.f32.mxu0 0.0
  %238 = vmatmul.mubr.f32.gmra.mrb[0].mxu0 %v104
  %v239 = vpop.f32.mrb[0].mxu0
  %v240 = vadd.f32 0.0, %v239
  %v241 = vpop.f32.mrb[0].mxu0
  %242 = vmatprep.mubr.f32.mxu0 0.0
  %243 = vmatmul.mubr.f32.gmra.mrb[0].mxu0 %v107
  %v244 = vpop.f32.mrb[0].mxu0
  %v245 = vadd.f32 0.0, %v244
  %v246 = vpop.f32.mrb[0].mxu0
  %247 = vmatprep.mubr.f32.mxu0 0.0
  %248 = vmatmul.mubr.f32.gmra.mrb[0].mxu0 %v110
  %v249 = vpop.f32.mrb[0].mxu0
  %v250 = vadd.f32 0.0, %v249
  %v251 = vpop.f32.mrb[0].mxu0
  %252 = vmatprep.mubr.f32.mxu0 0.0
  %253 = vmatmul.mubr.f32.gmra.mrb[0].mxu0 %v113
  %v254 = vpop.f32.mrb[0].mxu0
  %v255 = vadd.f32 0.0, %v254
  %v256 = vpop.f32.mrb[0].mxu0
  %257 = vmatprep.mubr.f32.mxu0 0.0
  %258 = vmatmul.mubr.f32.gmra.mrb[0].mxu0 %v116
  %v259 = vpop.f32.mrb[0].mxu0
  %v260 = vadd.f32 0.0, %v259
  %v261 = vpop.f32.mrb[0].mxu0
  %262 = vmatprep.mubr.f32.mxu0 0.0
  %263 = vmatmul.mubr.f32.gmra.mrb[0].mxu0 %v119
  %v264 = vpop.f32.mrb[0].mxu0
  %v265 = vadd.f32 0.0, %v264
  %v266 = vpop.f32.mrb[0].mxu0
  %267 = vmatprep.mubr.f32.mxu0 0.0
  %268 = vmatmul.mubr.f32.gmra.mrb[0].mxu0 %v122
  %v269 = vpop.f32.mrb[0].mxu0
  %v270 = vadd.f32 0.0, %v269
  %v271 = vpop.f32.mrb[0].mxu0
  %272 = vdwg.mxu0
  %v274 = vsel %vm75, %v55, 0
  %v277 = vsel %vm124, %v71, 0
  %279 = vmatprep.subr.mxu0 0.0
  %280 = vmatpush1.msra.mxu0 %v277
  %281 = vmatprep.subr.mxu0 0.0
  %282 = vmatpush1.msra.mxu0 0.0
  %283 = vmatprep.subr.mxu0 0.0
  %284 = vmatpush1.msra.mxu0 0.0
  %285 = vmatprep.subr.mxu0 0.0
  %286 = vmatpush1.msra.mxu0 0.0
  %287 = vmatprep.subr.mxu0 0.0
  %288 = vmatpush1.msra.mxu0 0.0
  %289 = vmatprep.subr.mxu0 0.0
  %290 = vmatpush1.msra.mxu0 0.0
  %291 = vmatprep.subr.mxu0 0.0
  %292 = vmatpush1.msra.mxu0 0.0
  %293 = vmatprep.subr.mxu0 0.0
  %294 = vmatpush1.msra.mxu0 0.0
  %295 = vmatprep.subr.mxu0 0.0
  %296 = vmatpush1.msra.mxu0 0.0
  %297 = vmatprep.subr.mxu0 0.0
  %298 = vmatpush1.msra.mxu0 0.0
  %299 = vmatprep.subr.mxu0 0.0
  %300 = vmatpush1.msra.mxu0 0.0
  %301 = vmatprep.subr.mxu0 0.0
  %302 = vmatpush1.msra.mxu0 0.0
  %303 = vmatprep.subr.mxu0 0.0
  %304 = vmatpush1.msra.mxu0 0.0
  %305 = vmatprep.subr.mxu0 0.0
  %306 = vmatpush1.msra.mxu0 0.0
  %307 = vmatprep.subr.mxu0 0.0
  %308 = vmatpush1.msra.mxu0 0.0
  %309 = vmatprep.subr.mxu0 0.0
  %310 = vmatpush1.msra.mxu0 0.0
  %311 = vmatprep.subr.mxu0 0.0
  %312 = vmatpush1.msra.mxu0 0.0
  %313 = vmatprep.subr.mxu0 0.0
  %314 = vmatpush1.msra.mxu0 0.0
  %315 = vmatprep.subr.mxu0 0.0
  %316 = vmatpush1.msra.mxu0 0.0
  %317 = vmatprep.subr.mxu0 0.0
  %318 = vmatpush1.msra.mxu0 0.0
  %319 = vmatprep.subr.mxu0 0.0
  %320 = vmatpush1.msra.mxu0 0.0
  %321 = vmatprep.subr.mxu0 0.0
  %322 = vmatpush1.msra.mxu0 0.0
  %323 = vmatprep.subr.mxu0 0.0
  %324 = vmatpush1.msra.mxu0 0.0
  %325 = vmatprep.subr.mxu0 0.0
  %326 = vmatpush1.msra.mxu0 0.0
  %327 = vmatprep.subr.mxu0 0.0
  %328 = vmatpush1.msra.mxu0 0.0
  %329 = vmatprep.subr.mxu0 0.0
  %330 = vmatpush1.msra.mxu0 0.0
  %331 = vmatprep.subr.mxu0 0.0
  %332 = vmatpush1.msra.mxu0 0.0
  %333 = vmatprep.subr.mxu0 0.0
  %334 = vmatpush1.msra.mxu0 0.0
  %335 = vmatprep.subr.mxu0 0.0
  %336 = vmatpush1.msra.mxu0 0.0
  %337 = vmatprep.subr.mxu0 0.0
  %338 = vmatpush1.msra.mxu0 0.0
  %339 = vmatprep.subr.mxu0 0.0
  %340 = vmatpush1.msra.mxu0 0.0
  %341 = vmatprep.subr.mxu0 0.0
  %342 = vmatpush1.msra.mxu0 0.0
  %343 = vmatprep.mubr.f32.mxu0 0.0
  %344 = vmatmul.mubr.f32.gmra.mrb[0].mxu0 %v274
  %v345 = vpop.f32.mrb[0].mxu0
  %v346 = vadd.f32 %v195, %v345
  %v347 = vpop.f32.mrb[0].mxu0
  %348 = vmatprep.mubr.f32.mxu0 0.0
  %349 = vmatmul.mubr.f32.gmra.mrb[0].mxu0 %v77
  %v350 = vpop.f32.mrb[0].mxu0
  %v351 = vadd.f32 %v200, %v350
  %v352 = vpop.f32.mrb[0].mxu0
  %353 = vmatprep.mubr.f32.mxu0 0.0
  %354 = vmatmul.mubr.f32.gmra.mrb[0].mxu0 %v80
  %v355 = vpop.f32.mrb[0].mxu0
  %v356 = vadd.f32 %v205, %v355
  %v357 = vpop.f32.mrb[0].mxu0
  %358 = vmatprep.mubr.f32.mxu0 0.0
  %359 = vmatmul.mubr.f32.gmra.mrb[0].mxu0 %v83
  %v360 = vpop.f32.mrb[0].mxu0
  %v361 = vadd.f32 %v210, %v360
  %v362 = vpop.f32.mrb[0].mxu0
  %363 = vmatprep.mubr.f32.mxu0 0.0
  %364 = vmatmul.mubr.f32.gmra.mrb[0].mxu0 %v86
  %v365 = vpop.f32.mrb[0].mxu0
  %v366 = vadd.f32 %v215, %v365
  %v367 = vpop.f32.mrb[0].mxu0
  %368 = vmatprep.mubr.f32.mxu0 0.0
  %369 = vmatmul.mubr.f32.gmra.mrb[0].mxu0 %v89
  %v370 = vpop.f32.mrb[0].mxu0
  %v371 = vadd.f32 %v220, %v370
  %v372 = vpop.f32.mrb[0].mxu0
  %373 = vmatprep.mubr.f32.mxu0 0.0
  %374 = vmatmul.mubr.f32.gmra.mrb[0].mxu0 %v92
  %v375 = vpop.f32.mrb[0].mxu0
  %v376 = vadd.f32 %v225, %v375
  %v377 = vpop.f32.mrb[0].mxu0
  %378 = vmatprep.mubr.f32.mxu0 0.0
  %379 = vmatmul.mubr.f32.gmra.mrb[0].mxu0 %v95
  %v380 = vpop.f32.mrb[0].mxu0
  %v381 = vadd.f32 %v230, %v380
  %v382 = vpop.f32.mrb[0].mxu0
  %383 = vmatprep.mubr.f32.mxu0 0.0
  %384 = vmatmul.mubr.f32.gmra.mrb[0].mxu0 %v98
  %v385 = vpop.f32.mrb[0].mxu0
  %v386 = vadd.f32 %v235, %v385
  %v387 = vpop.f32.mrb[0].mxu0
  %388 = vmatprep.mubr.f32.mxu0 0.0
  %389 = vmatmul.mubr.f32.gmra.mrb[0].mxu0 %v101
  %v390 = vpop.f32.mrb[0].mxu0
  %v391 = vadd.f32 %v240, %v390
  %v392 = vpop.f32.mrb[0].mxu0
  %393 = vmatprep.mubr.f32.mxu0 0.0
  %394 = vmatmul.mubr.f32.gmra.mrb[0].mxu0 %v104
  %v395 = vpop.f32.mrb[0].mxu0
  %v396 = vadd.f32 %v245, %v395
  %v397 = vpop.f32.mrb[0].mxu0
  %398 = vmatprep.mubr.f32.mxu0 0.0
  %399 = vmatmul.mubr.f32.gmra.mrb[0].mxu0 %v107
  %v400 = vpop.f32.mrb[0].mxu0
  %v401 = vadd.f32 %v250, %v400
  %v402 = vpop.f32.mrb[0].mxu0
  %403 = vmatprep.mubr.f32.mxu0 0.0
  %404 = vmatmul.mubr.f32.gmra.mrb[0].mxu0 %v110
  %v405 = vpop.f32.mrb[0].mxu0
  %v406 = vadd.f32 %v255, %v405
  %v407 = vpop.f32.mrb[0].mxu0
  %408 = vmatprep.mubr.f32.mxu0 0.0
  %409 = vmatmul.mubr.f32.gmra.mrb[0].mxu0 %v113
  %v410 = vpop.f32.mrb[0].mxu0
  %v411 = vadd.f32 %v260, %v410
  %v412 = vpop.f32.mrb[0].mxu0
  %413 = vmatprep.mubr.f32.mxu0 0.0
  %414 = vmatmul.mubr.f32.gmra.mrb[0].mxu0 %v116
  %v415 = vpop.f32.mrb[0].mxu0
  %v416 = vadd.f32 %v265, %v415
  %v417 = vpop.f32.mrb[0].mxu0
  %418 = vmatprep.mubr.f32.mxu0 0.0
  %419 = vmatmul.mubr.f32.gmra.mrb[0].mxu0 %v119
  %v420 = vpop.f32.mrb[0].mxu0
  %v421 = vadd.f32 %v270, %v420
  %v422 = vpop.f32.mrb[0].mxu0
  %423 = vdwg.mxu0
  %v424 = vld [vmem:[%s1 + $0x10] sm:$0xff]
  %v425 = vld [vmem:[%s1 + $0x18] sm:$0xff]
  %v426 = vld [vmem:[%s1 + $0x20] sm:$0xff]
  %v427 = vld [vmem:[%s1 + $0x28] sm:$0xff]
  %v428 = vld [vmem:[%s1 + $0x30] sm:$0xff]
  %v429 = vld [vmem:[%s1 + $0x38] sm:$0xff]
  %v430 = vld [vmem:[%s1 + $0x40] sm:$0xff]
  %v431 = vld [vmem:[%s1 + $0x48] sm:$0xff]
  %v432 = vld [vmem:[%s1 + $0x50] sm:$0xff]
  %v433 = vld [vmem:[%s1 + $0x58] sm:$0xff]
  %v434 = vld [vmem:[%s1 + $0x60] sm:$0xff]
  %v435 = vld [vmem:[%s1 + $0x68] sm:$0xff]
  %v436 = vld [vmem:[%s1 + $0x70] sm:$0xff]
  %v437 = vld [vmem:[%s1 + $0x78] sm:$0xff]
  %v438 = vld [vmem:[%s1 + $0x80] sm:$0xff]
  %v439 = vld [vmem:[%s1 + $0x88] sm:$0xff]
  %s440 = scalar_lea.vmem %s2, 8
  %v441 = vld [vmem:[%s440] sm:$0xf]
  %v443 = vsel %vm75, %v424, 0
  %v446 = vsel %vm75, %v425, 0
  %v449 = vsel %vm75, %v426, 0
  %v452 = vsel %vm75, %v427, 0
  %v455 = vsel %vm75, %v428, 0
  %v458 = vsel %vm75, %v429, 0
  %v461 = vsel %vm75, %v430, 0
  %v464 = vsel %vm75, %v431, 0
  %v467 = vsel %vm75, %v432, 0
  %v470 = vsel %vm75, %v433, 0
  %v473 = vsel %vm75, %v434, 0
  %v476 = vsel %vm75, %v435, 0
  %v479 = vsel %vm75, %v436, 0
  %v482 = vsel %vm75, %v437, 0
  %v485 = vsel %vm75, %v438, 0
  %v488 = vsel %vm75, %v439, 0
  %v491 = vsel %vm124, %v441, 0
  %493 = vmatprep.subr.mxu0 0.0
  %494 = vmatpush1.msra.mxu0 %v491
  %495 = vmatprep.subr.mxu0 0.0
  %496 = vmatpush1.msra.mxu0 0.0
  %497 = vmatprep.subr.mxu0 0.0
  %498 = vmatpush1.msra.mxu0 0.0
  %499 = vmatprep.subr.mxu0 0.0
  %500 = vmatpush1.msra.mxu0 0.0
  %501 = vmatprep.subr.mxu0 0.0
  %502 = vmatpush1.msra.mxu0 0.0
  %503 = vmatprep.subr.mxu0 0.0
  %504 = vmatpush1.msra.mxu0 0.0
  %505 = vmatprep.subr.mxu0 0.0
  %506 = vmatpush1.msra.mxu0 0.0
  %507 = vmatprep.subr.mxu0 0.0
  %508 = vmatpush1.msra.mxu0 0.0
  %509 = vmatprep.subr.mxu0 0.0
  %510 = vmatpush1.msra.mxu0 0.0
  %511 = vmatprep.subr.mxu0 0.0
  %512 = vmatpush1.msra.mxu0 0.0
  %513 = vmatprep.subr.mxu0 0.0
  %514 = vmatpush1.msra.mxu0 0.0
  %515 = vmatprep.subr.mxu0 0.0
  %516 = vmatpush1.msra.mxu0 0.0
  %517 = vmatprep.subr.mxu0 0.0
  %518 = vmatpush1.msra.mxu0 0.0
  %519 = vmatprep.subr.mxu0 0.0
  %520 = vmatpush1.msra.mxu0 0.0
  %521 = vmatprep.subr.mxu0 0.0
  %522 = vmatpush1.msra.mxu0 0.0
  %523 = vmatprep.subr.mxu0 0.0
  %524 = vmatpush1.msra.mxu0 0.0
  %525 = vmatprep.subr.mxu0 0.0
  %526 = vmatpush1.msra.mxu0 0.0
  %527 = vmatprep.subr.mxu0 0.0
  %528 = vmatpush1.msra.mxu0 0.0
  %529 = vmatprep.subr.mxu0 0.0
  %530 = vmatpush1.msra.mxu0 0.0
  %531 = vmatprep.subr.mxu0 0.0
  %532 = vmatpush1.msra.mxu0 0.0
  %533 = vmatprep.subr.mxu0 0.0
  %534 = vmatpush1.msra.mxu0 0.0
  %535 = vmatprep.subr.mxu0 0.0
  %536 = vmatpush1.msra.mxu0 0.0
  %537 = vmatprep.subr.mxu0 0.0
  %538 = vmatpush1.msra.mxu0 0.0
  %539 = vmatprep.subr.mxu0 0.0
  %540 = vmatpush1.msra.mxu0 0.0
  %541 = vmatprep.subr.mxu0 0.0
  %542 = vmatpush1.msra.mxu0 0.0
  %543 = vmatprep.subr.mxu0 0.0
  %544 = vmatpush1.msra.mxu0 0.0
  %545 = vmatprep.subr.mxu0 0.0
  %546 = vmatpush1.msra.mxu0 0.0
  %547 = vmatprep.subr.mxu0 0.0
  %548 = vmatpush1.msra.mxu0 0.0
  %549 = vmatprep.subr.mxu0 0.0
  %550 = vmatpush1.msra.mxu0 0.0
  %551 = vmatprep.subr.mxu0 0.0
  %552 = vmatpush1.msra.mxu0 0.0
  %553 = vmatprep.subr.mxu0 0.0
  %554 = vmatpush1.msra.mxu0 0.0
  %555 = vmatprep.subr.mxu0 0.0
  %556 = vmatpush1.msra.mxu0 0.0
  %557 = vmatprep.mubr.f32.mxu0 0.0
  %558 = vmatmul.mubr.f32.gmra.mrb[0].mxu0 %v443
  %v559 = vpop.f32.mrb[0].mxu0
  %v560 = vadd.f32 0.0, %v559
  %v561 = vpop.f32.mrb[0].mxu0
  %562 = vmatprep.mubr.f32.mxu0 0.0
  %563 = vmatmul.mubr.f32.gmra.mrb[0].mxu0 %v446
  %v564 = vpop.f32.mrb[0].mxu0
  %v565 = vadd.f32 0.0, %v564
  %v566 = vpop.f32.mrb[0].mxu0
  %567 = vmatprep.mubr.f32.mxu0 0.0
  %568 = vmatmul.mubr.f32.gmra.mrb[0].mxu0 %v449
  %v569 = vpop.f32.mrb[0].mxu0
  %v570 = vadd.f32 0.0, %v569
  %v571 = vpop.f32.mrb[0].mxu0
  %572 = vmatprep.mubr.f32.mxu0 0.0
  %573 = vmatmul.mubr.f32.gmra.mrb[0].mxu0 %v452
  %v574 = vpop.f32.mrb[0].mxu0
  %v575 = vadd.f32 0.0, %v574
  %v576 = vpop.f32.mrb[0].mxu0
  %577 = vmatprep.mubr.f32.mxu0 0.0
  %578 = vmatmul.mubr.f32.gmra.mrb[0].mxu0 %v455
  %v579 = vpop.f32.mrb[0].mxu0
  %v580 = vadd.f32 0.0, %v579
  %v581 = vpop.f32.mrb[0].mxu0
  %582 = vmatprep.mubr.f32.mxu0 0.0
  %583 = vmatmul.mubr.f32.gmra.mrb[0].mxu0 %v458
  %v584 = vpop.f32.mrb[0].mxu0
  %v585 = vadd.f32 0.0, %v584
  %v586 = vpop.f32.mrb[0].mxu0
  %587 = vmatprep.mubr.f32.mxu0 0.0
  %588 = vmatmul.mubr.f32.gmra.mrb[0].mxu0 %v461
  %v589 = vpop.f32.mrb[0].mxu0
  %v590 = vadd.f32 0.0, %v589
  %v591 = vpop.f32.mrb[0].mxu0
  %592 = vmatprep.mubr.f32.mxu0 0.0
  %593 = vmatmul.mubr.f32.gmra.mrb[0].mxu0 %v464
  %v594 = vpop.f32.mrb[0].mxu0
  %v595 = vadd.f32 0.0, %v594
  %v596 = vpop.f32.mrb[0].mxu0
  %597 = vmatprep.mubr.f32.mxu0 0.0
  %598 = vmatmul.mubr.f32.gmra.mrb[0].mxu0 %v467
  %v599 = vpop.f32.mrb[0].mxu0
  %v600 = vadd.f32 0.0, %v599
  %v601 = vpop.f32.mrb[0].mxu0
  %602 = vmatprep.mubr.f32.mxu0 0.0
  %603 = vmatmul.mubr.f32.gmra.mrb[0].mxu0 %v470
  %v604 = vpop.f32.mrb[0].mxu0
  %v605 = vadd.f32 0.0, %v604
  %v606 = vpop.f32.mrb[0].mxu0
  %607 = vmatprep.mubr.f32.mxu0 0.0
  %608 = vmatmul.mubr.f32.gmra.mrb[0].mxu0 %v473
  %v609 = vpop.f32.mrb[0].mxu0
  %v610 = vadd.f32 0.0, %v609
  %v611 = vpop.f32.mrb[0].mxu0
  %612 = vmatprep.mubr.f32.mxu0 0.0
  %613 = vmatmul.mubr.f32.gmra.mrb[0].mxu0 %v476
  %v614 = vpop.f32.mrb[0].mxu0
  %v615 = vadd.f32 0.0, %v614
  %v616 = vpop.f32.mrb[0].mxu0
  %617 = vmatprep.mubr.f32.mxu0 0.0
  %618 = vmatmul.mubr.f32.gmra.mrb[0].mxu0 %v479
  %v619 = vpop.f32.mrb[0].mxu0
  %v620 = vadd.f32 0.0, %v619
  %v621 = vpop.f32.mrb[0].mxu0
  %622 = vmatprep.mubr.f32.mxu0 0.0
  %623 = vmatmul.mubr.f32.gmra.mrb[0].mxu0 %v482
  %v624 = vpop.f32.mrb[0].mxu0
  %v625 = vadd.f32 0.0, %v624
  %v626 = vpop.f32.mrb[0].mxu0
  %627 = vmatprep.mubr.f32.mxu0 0.0
  %628 = vmatmul.mubr.f32.gmra.mrb[0].mxu0 %v485
  %v629 = vpop.f32.mrb[0].mxu0
  %v630 = vadd.f32 0.0, %v629
  %v631 = vpop.f32.mrb[0].mxu0
  %632 = vmatprep.mubr.f32.mxu0 0.0
  %633 = vmatmul.mubr.f32.gmra.mrb[0].mxu0 %v488
  %v634 = vpop.f32.mrb[0].mxu0
  %v635 = vadd.f32 0.0, %v634
  %v636 = vpop.f32.mrb[0].mxu0
  %637 = vdwg.mxu0
  %v638 = vadd.f32 %v346, %v560
  %v639 = vadd.f32 %v351, %v565
  %v640 = vadd.f32 %v356, %v570
  %v641 = vadd.f32 %v361, %v575
  %v642 = vadd.f32 %v366, %v580
  %v643 = vadd.f32 %v371, %v585
  %v644 = vadd.f32 %v376, %v590
  %v645 = vadd.f32 %v381, %v595
  %v646 = vadd.f32 %v386, %v600
  %v647 = vadd.f32 %v391, %v605
  %v648 = vadd.f32 %v396, %v610
  %v649 = vadd.f32 %v401, %v615
  %v650 = vadd.f32 %v406, %v620
  %v651 = vadd.f32 %v411, %v625
  %v652 = vadd.f32 %v416, %v630
  %v653 = vadd.f32 %v421, %v635
  %v654 = vld [vmem:[%s3] sm:$0x1]
  %v656 = vlaneseq
  %v657 = vshrl.u32 %v656, 7
  %v658 = vsub.s32 0, %v657
  %v659 = vrot.slane %v654, %v658
  %v661 = vadd.f32 %v638, %v659
  %v662 = vadd.f32 %v639, %v659
  %v663 = vadd.f32 %v640, %v659
  %v664 = vadd.f32 %v641, %v659
  %v665 = vadd.f32 %v642, %v659
  %v666 = vadd.f32 %v643, %v659
  %v667 = vadd.f32 %v644, %v659
  %v668 = vadd.f32 %v645, %v659
  %v669 = vadd.f32 %v646, %v659
  %v670 = vadd.f32 %v647, %v659
  %v671 = vadd.f32 %v648, %v659
  %v672 = vadd.f32 %v649, %v659
  %v673 = vadd.f32 %v650, %v659
  %v674 = vadd.f32 %v651, %v659
  %v675 = vadd.f32 %v652, %v659
  %v676 = vadd.f32 %v653, %v659
  %vm677 = vcmp.gt.f32.partialorder %v661, 0.0
  %vm678 = vcmp.gt.f32.partialorder %v662, 0.0
  %vm679 = vcmp.gt.f32.partialorder %v663, 0.0
  %vm680 = vcmp.gt.f32.partialorder %v664, 0.0
  %vm681 = vcmp.gt.f32.partialorder %v665, 0.0
  %vm682 = vcmp.gt.f32.partialorder %v666, 0.0
  %vm683 = vcmp.gt.f32.partialorder %v667, 0.0
  %vm684 = vcmp.gt.f32.partialorder %v668, 0.0
  %vm685 = vcmp.gt.f32.partialorder %v669, 0.0
  %vm686 = vcmp.gt.f32.partialorder %v670, 0.0
  %vm687 = vcmp.gt.f32.partialorder %v671, 0.0
  %vm688 = vcmp.gt.f32.partialorder %v672, 0.0
  %vm689 = vcmp.gt.f32.partialorder %v673, 0.0
  %vm690 = vcmp.gt.f32.partialorder %v674, 0.0
  %vm691 = vcmp.gt.f32.partialorder %v675, 0.0
  %vm692 = vcmp.gt.f32.partialorder %v676, 0.0
  %v693 = vmul.f32 %v661, 0.01
  %v694 = vmul.f32 %v662, 0.01
  %v695 = vmul.f32 %v663, 0.01
  %v696 = vmul.f32 %v664, 0.01
  %v697 = vmul.f32 %v665, 0.01
  %v698 = vmul.f32 %v666, 0.01
  %v699 = vmul.f32 %v667, 0.01
  %v700 = vmul.f32 %v668, 0.01
  %v701 = vmul.f32 %v669, 0.01
  %v702 = vmul.f32 %v670, 0.01
  %v703 = vmul.f32 %v671, 0.01
  %v704 = vmul.f32 %v672, 0.01
  %v705 = vmul.f32 %v673, 0.01
  %v706 = vmul.f32 %v674, 0.01
  %v707 = vmul.f32 %v675, 0.01
  %v708 = vmul.f32 %v676, 0.01
  %v709 = vsel %vm677, %v661, %v693
  %v710 = vsel %vm678, %v662, %v694
  %v711 = vsel %vm679, %v663, %v695
  %v712 = vsel %vm680, %v664, %v696
  %v713 = vsel %vm681, %v665, %v697
  %v714 = vsel %vm682, %v666, %v698
  %v715 = vsel %vm683, %v667, %v699
  %v716 = vsel %vm684, %v668, %v700
  %v717 = vsel %vm685, %v669, %v701
  %v718 = vsel %vm686, %v670, %v702
  %v719 = vsel %vm687, %v671, %v703
  %v720 = vsel %vm688, %v672, %v704
  %v721 = vsel %vm689, %v673, %v705
  %v722 = vsel %vm690, %v674, %v706
  %v723 = vsel %vm691, %v675, %v707
  %v724 = vsel %vm692, %v676, %v708
  %vm725 = vcmask 130048
  %726 = vst.msk [vmem:[#allocation5] sm:$0xff] %vm725, 0.0
  %727 = vst.msk [vmem:[#allocation5 + $0x88] sm:$0xff] %vm725, 0.0
  %728 = vst.msk [vmem:[#allocation5 + $0x8] sm:$0xff] %vm725, %v709
  %729 = vst.msk [vmem:[#allocation5 + $0x10] sm:$0xff] %vm725, %v710
  %730 = vst.msk [vmem:[#allocation5 + $0x18] sm:$0xff] %vm725, %v711
  %731 = vst.msk [vmem:[#allocation5 + $0x20] sm:$0xff] %vm725, %v712
  %732 = vst.msk [vmem:[#allocation5 + $0x28] sm:$0xff] %vm725, %v713
  %733 = vst.msk [vmem:[#allocation5 + $0x30] sm:$0xff] %vm725, %v714
  %734 = vst.msk [vmem:[#allocation5 + $0x38] sm:$0xff] %vm725, %v715
  %735 = vst.msk [vmem:[#allocation5 + $0x40] sm:$0xff] %vm725, %v716
  %736 = vst.msk [vmem:[#allocation5 + $0x48] sm:$0xff] %vm725, %v717
  %737 = vst.msk [vmem:[#allocation5 + $0x50] sm:$0xff] %vm725, %v718
  %738 = vst.msk [vmem:[#allocation5 + $0x58] sm:$0xff] %vm725, %v719
  %739 = vst.msk [vmem:[#allocation5 + $0x60] sm:$0xff] %vm725, %v720
  %740 = vst.msk [vmem:[#allocation5 + $0x68] sm:$0xff] %vm725, %v721
  %741 = vst.msk [vmem:[#allocation5 + $0x70] sm:$0xff] %vm725, %v722
  %742 = vst.msk [vmem:[#allocation5 + $0x78] sm:$0xff] %vm725, %v723
  %743 = vst.msk [vmem:[#allocation5 + $0x80] sm:$0xff] %vm725, %v724
  %v744 = vld [vmem:[#allocation5] sm:$0xff]
  %v745 = vld [vmem:[#allocation5 + $0x8] sm:$0xff]
  %v746 = vld [vmem:[#allocation5 + $0x10] sm:$0xff]
  %v747 = vld [vmem:[#allocation5 + $0x18] sm:$0xff]
  %v748 = vld [vmem:[#allocation5 + $0x20] sm:$0xff]
  %v749 = vld [vmem:[#allocation5 + $0x28] sm:$0xff]
  %v750 = vld [vmem:[#allocation5 + $0x30] sm:$0xff]
  %v751 = vld [vmem:[#allocation5 + $0x38] sm:$0xff]
  %v752 = vld [vmem:[#allocation5 + $0x40] sm:$0xff]
  %v753 = vld [vmem:[#allocation5 + $0x48] sm:$0xff]
  %v754 = vld [vmem:[#allocation5 + $0x50] sm:$0xff]
  %v755 = vld [vmem:[#allocation5 + $0x58] sm:$0xff]
  %v756 = vld [vmem:[#allocation5 + $0x60] sm:$0xff]
  %v757 = vld [vmem:[#allocation5 + $0x68] sm:$0xff]
  %v758 = vld [vmem:[#allocation5 + $0x70] sm:$0xff]
  %v759 = vld [vmem:[#allocation5 + $0x78] sm:$0xff]
  %v760 = vld [vmem:[%s4] sm:$0xff]
  %v761 = vld [vmem:[%s4 + $0x8] sm:$0xff]
  %v762 = vld [vmem:[#allocation5 + $0x80] sm:$0xff]
  %s763 = scalar_lea.vmem %s4, 16
  %v764 = vld [vmem:[%s763] sm:$0xff]
  %v765 = vld [vmem:[%s763 + $0x8] sm:$0xff]
  %v767 = vsel %vm725, %v745, 0
  %v770 = vsel %vm725, %v746, 0
  %v773 = vsel %vm725, %v747, 0
  %v776 = vsel %vm725, %v748, 0
  %v779 = vsel %vm725, %v749, 0
  %v782 = vsel %vm725, %v750, 0
  %v785 = vsel %vm725, %v751, 0
  %v788 = vsel %vm725, %v752, 0
  %v791 = vsel %vm725, %v753, 0
  %v794 = vsel %vm725, %v754, 0
  %v797 = vsel %vm725, %v755, 0
  %v800 = vsel %vm725, %v756, 0
  %v803 = vsel %vm725, %v757, 0
  %v806 = vsel %vm725, %v758, 0
  %v809 = vsel %vm725, %v759, 0
  %v812 = vsel %vm725, %v762, 0
  %814 = vmatprep.subr.mxu0 0.0
  %815 = vmatpush1.msra.mxu0 %v764
  %816 = vmatprep.subr.mxu0 0.0
  %817 = vmatpush1.msra.mxu0 %v765
  %818 = vmatprep.subr.mxu0 0.0
  %819 = vmatpush1.msra.mxu0 0.0
  %820 = vmatprep.subr.mxu0 0.0
  %821 = vmatpush1.msra.mxu0 0.0
  %822 = vmatprep.subr.mxu0 0.0
  %823 = vmatpush1.msra.mxu0 0.0
  %824 = vmatprep.subr.mxu0 0.0
  %825 = vmatpush1.msra.mxu0 0.0
  %826 = vmatprep.subr.mxu0 0.0
  %827 = vmatpush1.msra.mxu0 0.0
  %828 = vmatprep.subr.mxu0 0.0
  %829 = vmatpush1.msra.mxu0 0.0
  %830 = vmatprep.subr.mxu0 0.0
  %831 = vmatpush1.msra.mxu0 0.0
  %832 = vmatprep.subr.mxu0 0.0
  %833 = vmatpush1.msra.mxu0 0.0
  %834 = vmatprep.subr.mxu0 0.0
  %835 = vmatpush1.msra.mxu0 0.0
  %836 = vmatprep.subr.mxu0 0.0
  %837 = vmatpush1.msra.mxu0 0.0
  %838 = vmatprep.subr.mxu0 0.0
  %839 = vmatpush1.msra.mxu0 0.0
  %840 = vmatprep.subr.mxu0 0.0
  %841 = vmatpush1.msra.mxu0 0.0
  %842 = vmatprep.subr.mxu0 0.0
  %843 = vmatpush1.msra.mxu0 0.0
  %844 = vmatprep.subr.mxu0 0.0
  %845 = vmatpush1.msra.mxu0 0.0
  %846 = vmatprep.subr.mxu0 0.0
  %847 = vmatpush1.msra.mxu0 0.0
  %848 = vmatprep.subr.mxu0 0.0
  %849 = vmatpush1.msra.mxu0 0.0
  %850 = vmatprep.subr.mxu0 0.0
  %851 = vmatpush1.msra.mxu0 0.0
  %852 = vmatprep.subr.mxu0 0.0
  %853 = vmatpush1.msra.mxu0 0.0
  %854 = vmatprep.subr.mxu0 0.0
  %855 = vmatpush1.msra.mxu0 0.0
  %856 = vmatprep.subr.mxu0 0.0
  %857 = vmatpush1.msra.mxu0 0.0
  %858 = vmatprep.subr.mxu0 0.0
  %859 = vmatpush1.msra.mxu0 0.0
  %860 = vmatprep.subr.mxu0 0.0
  %861 = vmatpush1.msra.mxu0 0.0
  %862 = vmatprep.subr.mxu0 0.0
  %863 = vmatpush1.msra.mxu0 0.0
  %864 = vmatprep.subr.mxu0 0.0
  %865 = vmatpush1.msra.mxu0 0.0
  %866 = vmatprep.subr.mxu0 0.0
  %867 = vmatpush1.msra.mxu0 0.0
  %868 = vmatprep.subr.mxu0 0.0
  %869 = vmatpush1.msra.mxu0 0.0
  %870 = vmatprep.subr.mxu0 0.0
  %871 = vmatpush1.msra.mxu0 0.0
  %872 = vmatprep.subr.mxu0 0.0
  %873 = vmatpush1.msra.mxu0 0.0
  %874 = vmatprep.subr.mxu0 0.0
  %875 = vmatpush1.msra.mxu0 0.0
  %876 = vmatprep.subr.mxu0 0.0
  %877 = vmatpush1.msra.mxu0 0.0
  %878 = vmatprep.mubr.f32.mxu0 0.0
  %879 = vmatmul.mubr.f32.gmra.mrb[0].mxu0 %v767
  %v880 = vpop.f32.mrb[0].mxu0
  %v881 = vadd.f32 0.0, %v880
  %v882 = vpop.f32.mrb[0].mxu0
  %883 = vmatprep.mubr.f32.mxu0 0.0
  %884 = vmatmul.mubr.f32.gmra.mrb[0].mxu0 %v770
  %v885 = vpop.f32.mrb[0].mxu0
  %v886 = vadd.f32 0.0, %v885
  %v887 = vpop.f32.mrb[0].mxu0
  %888 = vmatprep.mubr.f32.mxu0 0.0
  %889 = vmatmul.mubr.f32.gmra.mrb[0].mxu0 %v773
  %v890 = vpop.f32.mrb[0].mxu0
  %v891 = vadd.f32 0.0, %v890
  %v892 = vpop.f32.mrb[0].mxu0
  %893 = vmatprep.mubr.f32.mxu0 0.0
  %894 = vmatmul.mubr.f32.gmra.mrb[0].mxu0 %v776
  %v895 = vpop.f32.mrb[0].mxu0
  %v896 = vadd.f32 0.0, %v895
  %v897 = vpop.f32.mrb[0].mxu0
  %898 = vmatprep.mubr.f32.mxu0 0.0
  %899 = vmatmul.mubr.f32.gmra.mrb[0].mxu0 %v779
  %v900 = vpop.f32.mrb[0].mxu0
  %v901 = vadd.f32 0.0, %v900
  %v902 = vpop.f32.mrb[0].mxu0
  %903 = vmatprep.mubr.f32.mxu0 0.0
  %904 = vmatmul.mubr.f32.gmra.mrb[0].mxu0 %v782
  %v905 = vpop.f32.mrb[0].mxu0
  %v906 = vadd.f32 0.0, %v905
  %v907 = vpop.f32.mrb[0].mxu0
  %908 = vmatprep.mubr.f32.mxu0 0.0
  %909 = vmatmul.mubr.f32.gmra.mrb[0].mxu0 %v785
  %v910 = vpop.f32.mrb[0].mxu0
  %v911 = vadd.f32 0.0, %v910
  %v912 = vpop.f32.mrb[0].mxu0
  %913 = vmatprep.mubr.f32.mxu0 0.0
  %914 = vmatmul.mubr.f32.gmra.mrb[0].mxu0 %v788
  %v915 = vpop.f32.mrb[0].mxu0
  %v916 = vadd.f32 0.0, %v915
  %v917 = vpop.f32.mrb[0].mxu0
  %918 = vmatprep.mubr.f32.mxu0 0.0
  %919 = vmatmul.mubr.f32.gmra.mrb[0].mxu0 %v791
  %v920 = vpop.f32.mrb[0].mxu0
  %v921 = vadd.f32 0.0, %v920
  %v922 = vpop.f32.mrb[0].mxu0
  %923 = vmatprep.mubr.f32.mxu0 0.0
  %924 = vmatmul.mubr.f32.gmra.mrb[0].mxu0 %v794
  %v925 = vpop.f32.mrb[0].mxu0
  %v926 = vadd.f32 0.0, %v925
  %v927 = vpop.f32.mrb[0].mxu0
  %928 = vmatprep.mubr.f32.mxu0 0.0
  %929 = vmatmul.mubr.f32.gmra.mrb[0].mxu0 %v797
  %v930 = vpop.f32.mrb[0].mxu0
  %v931 = vadd.f32 0.0, %v930
  %v932 = vpop.f32.mrb[0].mxu0
  %933 = vmatprep.mubr.f32.mxu0 0.0
  %934 = vmatmul.mubr.f32.gmra.mrb[0].mxu0 %v800
  %v935 = vpop.f32.mrb[0].mxu0
  %v936 = vadd.f32 0.0, %v935
  %v937 = vpop.f32.mrb[0].mxu0
  %938 = vmatprep.mubr.f32.mxu0 0.0
  %939 = vmatmul.mubr.f32.gmra.mrb[0].mxu0 %v803
  %v940 = vpop.f32.mrb[0].mxu0
  %v941 = vadd.f32 0.0, %v940
  %v942 = vpop.f32.mrb[0].mxu0
  %943 = vmatprep.mubr.f32.mxu0 0.0
  %944 = vmatmul.mubr.f32.gmra.mrb[0].mxu0 %v806
  %v945 = vpop.f32.mrb[0].mxu0
  %v946 = vadd.f32 0.0, %v945
  %v947 = vpop.f32.mrb[0].mxu0
  %948 = vmatprep.mubr.f32.mxu0 0.0
  %949 = vmatmul.mubr.f32.gmra.mrb[0].mxu0 %v809
  %v950 = vpop.f32.mrb[0].mxu0
  %v951 = vadd.f32 0.0, %v950
  %v952 = vpop.f32.mrb[0].mxu0
  %953 = vmatprep.mubr.f32.mxu0 0.0
  %954 = vmatmul.mubr.f32.gmra.mrb[0].mxu0 %v812
  %v955 = vpop.f32.mrb[0].mxu0
  %v956 = vadd.f32 0.0, %v955
  %v957 = vpop.f32.mrb[0].mxu0
  %958 = vdwg.mxu0
  %v960 = vsel %vm725, %v744, 0
  %962 = vmatprep.subr.mxu0 0.0
  %963 = vmatpush1.msra.mxu0 %v760
  %964 = vmatprep.subr.mxu0 0.0
  %965 = vmatpush1.msra.mxu0 %v761
  %966 = vmatprep.subr.mxu0 0.0
  %967 = vmatpush1.msra.mxu0 0.0
  %968 = vmatprep.subr.mxu0 0.0
  %969 = vmatpush1.msra.mxu0 0.0
  %970 = vmatprep.subr.mxu0 0.0
  %971 = vmatpush1.msra.mxu0 0.0
  %972 = vmatprep.subr.mxu0 0.0
  %973 = vmatpush1.msra.mxu0 0.0
  %974 = vmatprep.subr.mxu0 0.0
  %975 = vmatpush1.msra.mxu0 0.0
  %976 = vmatprep.subr.mxu0 0.0
  %977 = vmatpush1.msra.mxu0 0.0
  %978 = vmatprep.subr.mxu0 0.0
  %979 = vmatpush1.msra.mxu0 0.0
  %980 = vmatprep.subr.mxu0 0.0
  %981 = vmatpush1.msra.mxu0 0.0
  %982 = vmatprep.subr.mxu0 0.0
  %983 = vmatpush1.msra.mxu0 0.0
  %984 = vmatprep.subr.mxu0 0.0
  %985 = vmatpush1.msra.mxu0 0.0
  %986 = vmatprep.subr.mxu0 0.0
  %987 = vmatpush1.msra.mxu0 0.0
  %988 = vmatprep.subr.mxu0 0.0
  %989 = vmatpush1.msra.mxu0 0.0
  %990 = vmatprep.subr.mxu0 0.0
  %991 = vmatpush1.msra.mxu0 0.0
  %992 = vmatprep.subr.mxu0 0.0
  %993 = vmatpush1.msra.mxu0 0.0
  %994 = vmatprep.subr.mxu0 0.0
  %995 = vmatpush1.msra.mxu0 0.0
  %996 = vmatprep.subr.mxu0 0.0
  %997 = vmatpush1.msra.mxu0 0.0
  %998 = vmatprep.subr.mxu0 0.0
  %999 = vmatpush1.msra.mxu0 0.0
  %1000 = vmatprep.subr.mxu0 0.0
  %1001 = vmatpush1.msra.mxu0 0.0
  %1002 = vmatprep.subr.mxu0 0.0
  %1003 = vmatpush1.msra.mxu0 0.0
  %1004 = vmatprep.subr.mxu0 0.0
  %1005 = vmatpush1.msra.mxu0 0.0
  %1006 = vmatprep.subr.mxu0 0.0
  %1007 = vmatpush1.msra.mxu0 0.0
  %1008 = vmatprep.subr.mxu0 0.0
  %1009 = vmatpush1.msra.mxu0 0.0
  %1010 = vmatprep.subr.mxu0 0.0
  %1011 = vmatpush1.msra.mxu0 0.0
  %1012 = vmatprep.subr.mxu0 0.0
  %1013 = vmatpush1.msra.mxu0 0.0
  %1014 = vmatprep.subr.mxu0 0.0
  %1015 = vmatpush1.msra.mxu0 0.0
  %1016 = vmatprep.subr.mxu0 0.0
  %1017 = vmatpush1.msra.mxu0 0.0
  %1018 = vmatprep.subr.mxu0 0.0
  %1019 = vmatpush1.msra.mxu0 0.0
  %1020 = vmatprep.subr.mxu0 0.0
  %1021 = vmatpush1.msra.mxu0 0.0
  %1022 = vmatprep.subr.mxu0 0.0
  %1023 = vmatpush1.msra.mxu0 0.0
  %1024 = vmatprep.subr.mxu0 0.0
  %1025 = vmatpush1.msra.mxu0 0.0
  %1026 = vmatprep.mubr.f32.mxu0 0.0
  %1027 = vmatmul.mubr.f32.gmra.mrb[0].mxu0 %v960
  %v1028 = vpop.f32.mrb[0].mxu0
  %v1029 = vadd.f32 %v881, %v1028
  %v1030 = vpop.f32.mrb[0].mxu0
  %1031 = vmatprep.mubr.f32.mxu0 0.0
  %1032 = vmatmul.mubr.f32.gmra.mrb[0].mxu0 %v767
  %v1033 = vpop.f32.mrb[0].mxu0
  %v1034 = vadd.f32 %v886, %v1033
  %v1035 = vpop.f32.mrb[0].mxu0
  %1036 = vmatprep.mubr.f32.mxu0 0.0
  %1037 = vmatmul.mubr.f32.gmra.mrb[0].mxu0 %v770
  %v1038 = vpop.f32.mrb[0].mxu0
  %v1039 = vadd.f32 %v891, %v1038
  %v1040 = vpop.f32.mrb[0].mxu0
  %1041 = vmatprep.mubr.f32.mxu0 0.0
  %1042 = vmatmul.mubr.f32.gmra.mrb[0].mxu0 %v773
  %v1043 = vpop.f32.mrb[0].mxu0
  %v1044 = vadd.f32 %v896, %v1043
  %v1045 = vpop.f32.mrb[0].mxu0
  %1046 = vmatprep.mubr.f32.mxu0 0.0
  %1047 = vmatmul.mubr.f32.gmra.mrb[0].mxu0 %v776
  %v1048 = vpop.f32.mrb[0].mxu0
  %v1049 = vadd.f32 %v901, %v1048
  %v1050 = vpop.f32.mrb[0].mxu0
  %1051 = vmatprep.mubr.f32.mxu0 0.0
  %1052 = vmatmul.mubr.f32.gmra.mrb[0].mxu0 %v779
  %v1053 = vpop.f32.mrb[0].mxu0
  %v1054 = vadd.f32 %v906, %v1053
  %v1055 = vpop.f32.mrb[0].mxu0
  %1056 = vmatprep.mubr.f32.mxu0 0.0
  %1057 = vmatmul.mubr.f32.gmra.mrb[0].mxu0 %v782
  %v1058 = vpop.f32.mrb[0].mxu0
  %v1059 = vadd.f32 %v911, %v1058
  %v1060 = vpop.f32.mrb[0].mxu0
  %1061 = vmatprep.mubr.f32.mxu0 0.0
  %1062 = vmatmul.mubr.f32.gmra.mrb[0].mxu0 %v785
  %v1063 = vpop.f32.mrb[0].mxu0
  %v1064 = vadd.f32 %v916, %v1063
  %v1065 = vpop.f32.mrb[0].mxu0
  %1066 = vmatprep.mubr.f32.mxu0 0.0
  %1067 = vmatmul.mubr.f32.gmra.mrb[0].mxu0 %v788
  %v1068 = vpop.f32.mrb[0].mxu0
  %v1069 = vadd.f32 %v921, %v1068
  %v1070 = vpop.f32.mrb[0].mxu0
  %1071 = vmatprep.mubr.f32.mxu0 0.0
  %1072 = vmatmul.mubr.f32.gmra.mrb[0].mxu0 %v791
  %v1073 = vpop.f32.mrb[0].mxu0
  %v1074 = vadd.f32 %v926, %v1073
  %v1075 = vpop.f32.mrb[0].mxu0
  %1076 = vmatprep.mubr.f32.mxu0 0.0
  %1077 = vmatmul.mubr.f32.gmra.mrb[0].mxu0 %v794
  %v1078 = vpop.f32.mrb[0].mxu0
  %v1079 = vadd.f32 %v931, %v1078
  %v1080 = vpop.f32.mrb[0].mxu0
  %1081 = vmatprep.mubr.f32.mxu0 0.0
  %1082 = vmatmul.mubr.f32.gmra.mrb[0].mxu0 %v797
  %v1083 = vpop.f32.mrb[0].mxu0
  %v1084 = vadd.f32 %v936, %v1083
  %v1085 = vpop.f32.mrb[0].mxu0
  %1086 = vmatprep.mubr.f32.mxu0 0.0
  %1087 = vmatmul.mubr.f32.gmra.mrb[0].mxu0 %v800
  %v1088 = vpop.f32.mrb[0].mxu0
  %v1089 = vadd.f32 %v941, %v1088
  %v1090 = vpop.f32.mrb[0].mxu0
  %1091 = vmatprep.mubr.f32.mxu0 0.0
  %1092 = vmatmul.mubr.f32.gmra.mrb[0].mxu0 %v803
  %v1093 = vpop.f32.mrb[0].mxu0
  %v1094 = vadd.f32 %v946, %v1093
  %v1095 = vpop.f32.mrb[0].mxu0
  %1096 = vmatprep.mubr.f32.mxu0 0.0
  %1097 = vmatmul.mubr.f32.gmra.mrb[0].mxu0 %v806
  %v1098 = vpop.f32.mrb[0].mxu0
  %v1099 = vadd.f32 %v951, %v1098
  %v1100 = vpop.f32.mrb[0].mxu0
  %1101 = vmatprep.mubr.f32.mxu0 0.0
  %1102 = vmatmul.mubr.f32.gmra.mrb[0].mxu0 %v809
  %v1103 = vpop.f32.mrb[0].mxu0
  %v1104 = vadd.f32 %v956, %v1103
  %v1105 = vpop.f32.mrb[0].mxu0
  %1106 = vdwg.mxu0
  %v1107 = vld [vmem:[#allocation5 + $0x10] sm:$0xff]
  %v1108 = vld [vmem:[#allocation5 + $0x18] sm:$0xff]
  %v1109 = vld [vmem:[#allocation5 + $0x20] sm:$0xff]
  %v1110 = vld [vmem:[#allocation5 + $0x28] sm:$0xff]
  %v1111 = vld [vmem:[#allocation5 + $0x30] sm:$0xff]
  %v1112 = vld [vmem:[#allocation5 + $0x38] sm:$0xff]
  %v1113 = vld [vmem:[#allocation5 + $0x40] sm:$0xff]
  %v1114 = vld [vmem:[#allocation5 + $0x48] sm:$0xff]
  %v1115 = vld [vmem:[#allocation5 + $0x50] sm:$0xff]
  %v1116 = vld [vmem:[#allocation5 + $0x58] sm:$0xff]
  %v1117 = vld [vmem:[#allocation5 + $0x60] sm:$0xff]
  %v1118 = vld [vmem:[#allocation5 + $0x68] sm:$0xff]
  %v1119 = vld [vmem:[#allocation5 + $0x70] sm:$0xff]
  %v1120 = vld [vmem:[#allocation5 + $0x78] sm:$0xff]
  %v1121 = vld [vmem:[#allocation5 + $0x80] sm:$0xff]
  %v1122 = vld [vmem:[#allocation5 + $0x88] sm:$0xff]
  %s1123 = scalar_lea.vmem %s4, 32
  %v1124 = vld [vmem:[%s1123] sm:$0xff]
  %v1125 = vld [vmem:[%s1123 + $0x8] sm:$0xff]
  %v1127 = vsel %vm725, %v1107, 0
  %v1130 = vsel %vm725, %v1108, 0
  %v1133 = vsel %vm725, %v1109, 0
  %v1136 = vsel %vm725, %v1110, 0
  %v1139 = vsel %vm725, %v1111, 0
  %v1142 = vsel %vm725, %v1112, 0
  %v1145 = vsel %vm725, %v1113, 0
  %v1148 = vsel %vm725, %v1114, 0
  %v1151 = vsel %vm725, %v1115, 0
  %v1154 = vsel %vm725, %v1116, 0
  %v1157 = vsel %vm725, %v1117, 0
  %v1160 = vsel %vm725, %v1118, 0
  %v1163 = vsel %vm725, %v1119, 0
  %v1166 = vsel %vm725, %v1120, 0
  %v1169 = vsel %vm725, %v1121, 0
  %v1172 = vsel %vm725, %v1122, 0
  %1174 = vmatprep.subr.mxu0 0.0
  %1175 = vmatpush1.msra.mxu0 %v1124
  %1176 = vmatprep.subr.mxu0 0.0
  %1177 = vmatpush1.msra.mxu0 %v1125
  %1178 = vmatprep.subr.mxu0 0.0
  %1179 = vmatpush1.msra.mxu0 0.0
  %1180 = vmatprep.subr.mxu0 0.0
  %1181 = vmatpush1.msra.mxu0 0.0
  %1182 = vmatprep.subr.mxu0 0.0
  %1183 = vmatpush1.msra.mxu0 0.0
  %1184 = vmatprep.subr.mxu0 0.0
  %1185 = vmatpush1.msra.mxu0 0.0
  %1186 = vmatprep.subr.mxu0 0.0
  %1187 = vmatpush1.msra.mxu0 0.0
  %1188 = vmatprep.subr.mxu0 0.0
  %1189 = vmatpush1.msra.mxu0 0.0
  %1190 = vmatprep.subr.mxu0 0.0
  %1191 = vmatpush1.msra.mxu0 0.0
  %1192 = vmatprep.subr.mxu0 0.0
  %1193 = vmatpush1.msra.mxu0 0.0
  %1194 = vmatprep.subr.mxu0 0.0
  %1195 = vmatpush1.msra.mxu0 0.0
  %1196 = vmatprep.subr.mxu0 0.0
  %1197 = vmatpush1.msra.mxu0 0.0
  %1198 = vmatprep.subr.mxu0 0.0
  %1199 = vmatpush1.msra.mxu0 0.0
  %1200 = vmatprep.subr.mxu0 0.0
  %1201 = vmatpush1.msra.mxu0 0.0
  %1202 = vmatprep.subr.mxu0 0.0
  %1203 = vmatpush1.msra.mxu0 0.0
  %1204 = vmatprep.subr.mxu0 0.0
  %1205 = vmatpush1.msra.mxu0 0.0
  %1206 = vmatprep.subr.mxu0 0.0
  %1207 = vmatpush1.msra.mxu0 0.0
  %1208 = vmatprep.subr.mxu0 0.0
  %1209 = vmatpush1.msra.mxu0 0.0
  %1210 = vmatprep.subr.mxu0 0.0
  %1211 = vmatpush1.msra.mxu0 0.0
  %1212 = vmatprep.subr.mxu0 0.0
  %1213 = vmatpush1.msra.mxu0 0.0
  %1214 = vmatprep.subr.mxu0 0.0
  %1215 = vmatpush1.msra.mxu0 0.0
  %1216 = vmatprep.subr.mxu0 0.0
  %1217 = vmatpush1.msra.mxu0 0.0
  %1218 = vmatprep.subr.mxu0 0.0
  %1219 = vmatpush1.msra.mxu0 0.0
  %1220 = vmatprep.subr.mxu0 0.0
  %1221 = vmatpush1.msra.mxu0 0.0
  %1222 = vmatprep.subr.mxu0 0.0
  %1223 = vmatpush1.msra.mxu0 0.0
  %1224 = vmatprep.subr.mxu0 0.0
  %1225 = vmatpush1.msra.mxu0 0.0
  %1226 = vmatprep.subr.mxu0 0.0
  %1227 = vmatpush1.msra.mxu0 0.0
  %1228 = vmatprep.subr.mxu0 0.0
  %1229 = vmatpush1.msra.mxu0 0.0
  %1230 = vmatprep.subr.mxu0 0.0
  %1231 = vmatpush1.msra.mxu0 0.0
  %1232 = vmatprep.subr.mxu0 0.0
  %1233 = vmatpush1.msra.mxu0 0.0
  %1234 = vmatprep.subr.mxu0 0.0
  %1235 = vmatpush1.msra.mxu0 0.0
  %1236 = vmatprep.subr.mxu0 0.0
  %1237 = vmatpush1.msra.mxu0 0.0
  %1238 = vmatprep.mubr.f32.mxu0 0.0
  %1239 = vmatmul.mubr.f32.gmra.mrb[0].mxu0 %v1127
  %v1240 = vpop.f32.mrb[0].mxu0
  %v1241 = vadd.f32 0.0, %v1240
  %v1242 = vpop.f32.mrb[0].mxu0
  %1243 = vmatprep.mubr.f32.mxu0 0.0
  %1244 = vmatmul.mubr.f32.gmra.mrb[0].mxu0 %v1130
  %v1245 = vpop.f32.mrb[0].mxu0
  %v1246 = vadd.f32 0.0, %v1245
  %v1247 = vpop.f32.mrb[0].mxu0
  %1248 = vmatprep.mubr.f32.mxu0 0.0
  %1249 = vmatmul.mubr.f32.gmra.mrb[0].mxu0 %v1133
  %v1250 = vpop.f32.mrb[0].mxu0
  %v1251 = vadd.f32 0.0, %v1250
  %v1252 = vpop.f32.mrb[0].mxu0
  %1253 = vmatprep.mubr.f32.mxu0 0.0
  %1254 = vmatmul.mubr.f32.gmra.mrb[0].mxu0 %v1136
  %v1255 = vpop.f32.mrb[0].mxu0
  %v1256 = vadd.f32 0.0, %v1255
  %v1257 = vpop.f32.mrb[0].mxu0
  %1258 = vmatprep.mubr.f32.mxu0 0.0
  %1259 = vmatmul.mubr.f32.gmra.mrb[0].mxu0 %v1139
  %v1260 = vpop.f32.mrb[0].mxu0
  %v1261 = vadd.f32 0.0, %v1260
  %v1262 = vpop.f32.mrb[0].mxu0
  %1263 = vmatprep.mubr.f32.mxu0 0.0
  %1264 = vmatmul.mubr.f32.gmra.mrb[0].mxu0 %v1142
  %v1265 = vpop.f32.mrb[0].mxu0
  %v1266 = vadd.f32 0.0, %v1265
  %v1267 = vpop.f32.mrb[0].mxu0
  %1268 = vmatprep.mubr.f32.mxu0 0.0
  %1269 = vmatmul.mubr.f32.gmra.mrb[0].mxu0 %v1145
  %v1270 = vpop.f32.mrb[0].mxu0
  %v1271 = vadd.f32 0.0, %v1270
  %v1272 = vpop.f32.mrb[0].mxu0
  %1273 = vmatprep.mubr.f32.mxu0 0.0
  %1274 = vmatmul.mubr.f32.gmra.mrb[0].mxu0 %v1148
  %v1275 = vpop.f32.mrb[0].mxu0
  %v1276 = vadd.f32 0.0, %v1275
  %v1277 = vpop.f32.mrb[0].mxu0
  %1278 = vmatprep.mubr.f32.mxu0 0.0
  %1279 = vmatmul.mubr.f32.gmra.mrb[0].mxu0 %v1151
  %v1280 = vpop.f32.mrb[0].mxu0
  %v1281 = vadd.f32 0.0, %v1280
  %v1282 = vpop.f32.mrb[0].mxu0
  %1283 = vmatprep.mubr.f32.mxu0 0.0
  %1284 = vmatmul.mubr.f32.gmra.mrb[0].mxu0 %v1154
  %v1285 = vpop.f32.mrb[0].mxu0
  %v1286 = vadd.f32 0.0, %v1285
  %v1287 = vpop.f32.mrb[0].mxu0
  %1288 = vmatprep.mubr.f32.mxu0 0.0
  %1289 = vmatmul.mubr.f32.gmra.mrb[0].mxu0 %v1157
  %v1290 = vpop.f32.mrb[0].mxu0
  %v1291 = vadd.f32 0.0, %v1290
  %v1292 = vpop.f32.mrb[0].mxu0
  %1293 = vmatprep.mubr.f32.mxu0 0.0
  %1294 = vmatmul.mubr.f32.gmra.mrb[0].mxu0 %v1160
  %v1295 = vpop.f32.mrb[0].mxu0
  %v1296 = vadd.f32 0.0, %v1295
  %v1297 = vpop.f32.mrb[0].mxu0
  %1298 = vmatprep.mubr.f32.mxu0 0.0
  %1299 = vmatmul.mubr.f32.gmra.mrb[0].mxu0 %v1163
  %v1300 = vpop.f32.mrb[0].mxu0
  %v1301 = vadd.f32 0.0, %v1300
  %v1302 = vpop.f32.mrb[0].mxu0
  %1303 = vmatprep.mubr.f32.mxu0 0.0
  %1304 = vmatmul.mubr.f32.gmra.mrb[0].mxu0 %v1166
  %v1305 = vpop.f32.mrb[0].mxu0
  %v1306 = vadd.f32 0.0, %v1305
  %v1307 = vpop.f32.mrb[0].mxu0
  %1308 = vmatprep.mubr.f32.mxu0 0.0
  %1309 = vmatmul.mubr.f32.gmra.mrb[0].mxu0 %v1169
  %v1310 = vpop.f32.mrb[0].mxu0
  %v1311 = vadd.f32 0.0, %v1310
  %v1312 = vpop.f32.mrb[0].mxu0
  %1313 = vmatprep.mubr.f32.mxu0 0.0
  %1314 = vmatmul.mubr.f32.gmra.mrb[0].mxu0 %v1172
  %v1315 = vpop.f32.mrb[0].mxu0
  %v1316 = vadd.f32 0.0, %v1315
  %v1317 = vpop.f32.mrb[0].mxu0
  %1318 = vdwg.mxu0
  %v1319 = vadd.f32 %v1029, %v1241
  %v1320 = vadd.f32 %v1034, %v1246
  %v1321 = vadd.f32 %v1039, %v1251
  %v1322 = vadd.f32 %v1044, %v1256
  %v1323 = vadd.f32 %v1049, %v1261
  %v1324 = vadd.f32 %v1054, %v1266
  %v1325 = vadd.f32 %v1059, %v1271
  %v1326 = vadd.f32 %v1064, %v1276
  %v1327 = vadd.f32 %v1069, %v1281
  %v1328 = vadd.f32 %v1074, %v1286
  %v1329 = vadd.f32 %v1079, %v1291
  %v1330 = vadd.f32 %v1084, %v1296
  %v1331 = vadd.f32 %v1089, %v1301
  %v1332 = vadd.f32 %v1094, %v1306
  %v1333 = vadd.f32 %v1099, %v1311
  %v1334 = vadd.f32 %v1104, %v1316
  %v1335 = vld [vmem:[%s5] sm:$0x1]
  %v1337 = vlaneseq
  %v1338 = vshrl.u32 %v1337, 7
  %v1339 = vsub.s32 0, %v1338
  %v1340 = vrot.slane %v1335, %v1339
  %v1342 = vadd.f32 %v1319, %v1340
  %v1343 = vadd.f32 %v1320, %v1340
  %v1344 = vadd.f32 %v1321, %v1340
  %v1345 = vadd.f32 %v1322, %v1340
  %v1346 = vadd.f32 %v1323, %v1340
  %v1347 = vadd.f32 %v1324, %v1340
  %v1348 = vadd.f32 %v1325, %v1340
  %v1349 = vadd.f32 %v1326, %v1340
  %v1350 = vadd.f32 %v1327, %v1340
  %v1351 = vadd.f32 %v1328, %v1340
  %v1352 = vadd.f32 %v1329, %v1340
  %v1353 = vadd.f32 %v1330, %v1340
  %v1354 = vadd.f32 %v1331, %v1340
  %v1355 = vadd.f32 %v1332, %v1340
  %v1356 = vadd.f32 %v1333, %v1340
  %v1357 = vadd.f32 %v1334, %v1340
  %vm1358 = vcmp.gt.f32.partialorder %v1342, 0.0
  %vm1359 = vcmp.gt.f32.partialorder %v1343, 0.0
  %vm1360 = vcmp.gt.f32.partialorder %v1344, 0.0
  %vm1361 = vcmp.gt.f32.partialorder %v1345, 0.0
  %vm1362 = vcmp.gt.f32.partialorder %v1346, 0.0
  %vm1363 = vcmp.gt.f32.partialorder %v1347, 0.0
  %vm1364 = vcmp.gt.f32.partialorder %v1348, 0.0
  %vm1365 = vcmp.gt.f32.partialorder %v1349, 0.0
  %vm1366 = vcmp.gt.f32.partialorder %v1350, 0.0
  %vm1367 = vcmp.gt.f32.partialorder %v1351, 0.0
  %vm1368 = vcmp.gt.f32.partialorder %v1352, 0.0
  %vm1369 = vcmp.gt.f32.partialorder %v1353, 0.0
  %vm1370 = vcmp.gt.f32.partialorder %v1354, 0.0
  %vm1371 = vcmp.gt.f32.partialorder %v1355, 0.0
  %vm1372 = vcmp.gt.f32.partialorder %v1356, 0.0
  %vm1373 = vcmp.gt.f32.partialorder %v1357, 0.0
  %v1374 = vmul.f32 %v1342, 0.01
  %v1375 = vmul.f32 %v1343, 0.01
  %v1376 = vmul.f32 %v1344, 0.01
  %v1377 = vmul.f32 %v1345, 0.01
  %v1378 = vmul.f32 %v1346, 0.01
  %v1379 = vmul.f32 %v1347, 0.01
  %v1380 = vmul.f32 %v1348, 0.01
  %v1381 = vmul.f32 %v1349, 0.01
  %v1382 = vmul.f32 %v1350, 0.01
  %v1383 = vmul.f32 %v1351, 0.01
  %v1384 = vmul.f32 %v1352, 0.01
  %v1385 = vmul.f32 %v1353, 0.01
  %v1386 = vmul.f32 %v1354, 0.01
  %v1387 = vmul.f32 %v1355, 0.01
  %v1388 = vmul.f32 %v1356, 0.01
  %v1389 = vmul.f32 %v1357, 0.01
  %v1390 = vsel %vm1358, %v1342, %v1374
  %v1391 = vsel %vm1359, %v1343, %v1375
  %v1392 = vsel %vm1360, %v1344, %v1376
  %v1393 = vsel %vm1361, %v1345, %v1377
  %v1394 = vsel %vm1362, %v1346, %v1378
  %v1395 = vsel %vm1363, %v1347, %v1379
  %v1396 = vsel %vm1364, %v1348, %v1380
  %v1397 = vsel %vm1365, %v1349, %v1381
  %v1398 = vsel %vm1366, %v1350, %v1382
  %v1399 = vsel %vm1367, %v1351, %v1383
  %v1400 = vsel %vm1368, %v1352, %v1384
  %v1401 = vsel %vm1369, %v1353, %v1385
  %v1402 = vsel %vm1370, %v1354, %v1386
  %v1403 = vsel %vm1371, %v1355, %v1387
  %v1404 = vsel %vm1372, %v1356, %v1388
  %v1405 = vsel %vm1373, %v1357, %v1389
  %vm1406 = vcmask 261120
  %1407 = vst.msk [vmem:[#allocation2] sm:$0xff] %vm1406, %v1390
  %1408 = vst.msk [vmem:[#allocation2 + $0x8] sm:$0xff] %vm1406, %v1391
  %1409 = vst.msk [vmem:[#allocation2 + $0x10] sm:$0xff] %vm1406, %v1392
  %1410 = vst.msk [vmem:[#allocation2 + $0x18] sm:$0xff] %vm1406, %v1393
  %1411 = vst.msk [vmem:[#allocation2 + $0x20] sm:$0xff] %vm1406, %v1394
  %1412 = vst.msk [vmem:[#allocation2 + $0x28] sm:$0xff] %vm1406, %v1395
  %1413 = vst.msk [vmem:[#allocation2 + $0x30] sm:$0xff] %vm1406, %v1396
  %1414 = vst.msk [vmem:[#allocation2 + $0x38] sm:$0xff] %vm1406, %v1397
  %1415 = vst.msk [vmem:[#allocation2 + $0x40] sm:$0xff] %vm1406, %v1398
  %1416 = vst.msk [vmem:[#allocation2 + $0x48] sm:$0xff] %vm1406, %v1399
  %1417 = vst.msk [vmem:[#allocation2 + $0x50] sm:$0xff] %vm1406, %v1400
  %1418 = vst.msk [vmem:[#allocation2 + $0x58] sm:$0xff] %vm1406, %v1401
  %1419 = vst.msk [vmem:[#allocation2 + $0x60] sm:$0xff] %vm1406, %v1402
  %1420 = vst.msk [vmem:[#allocation2 + $0x68] sm:$0xff] %vm1406, %v1403
  %1421 = vst.msk [vmem:[#allocation2 + $0x70] sm:$0xff] %vm1406, %v1404
  %1422 = vst.msk [vmem:[#allocation2 + $0x78] sm:$0xff] %vm1406, %v1405
  %s1423 = sadd.s32 %s54, 1
  %s1424 = smul.u32 %s1423, 8
  %s1425 = scalar_lea.vmem [#allocation2], %s1424
  %v1426 = vld [vmem:[%s1425] sm:$0xff]
  %v1427 = vld [vmem:[%s1425 + $0x8] sm:$0xff]
  %v1428 = vld [vmem:[%s1425 + $0x10] sm:$0xff]
  %1429 = vst.msk [vmem:[%s15] sm:$0xff] %vm1406, %v1426
  %1430 = vst.msk [vmem:[%s15 + $0x8] sm:$0xff] %vm1406, %v1427
  %1431 = vst.msk [vmem:[%s15 + $0x10] sm:$0xff] %vm1406, %v1428
  %1432 = vst.msk [vmem:[%s15 + $0x18] sm:$0xff] %vm1406, 0.0
  %v1433 = vld [vmem:[#allocation2] sm:$0xff]
  %v1434 = vld [vmem:[#allocation2 + $0x8] sm:$0xff]
  %v1435 = vld [vmem:[#allocation2 + $0x10] sm:$0xff]
  %v1436 = vld [vmem:[#allocation2 + $0x18] sm:$0xff]
  %v1437 = vld [vmem:[#allocation2 + $0x20] sm:$0xff]
  %v1438 = vld [vmem:[#allocation2 + $0x28] sm:$0xff]
  %v1439 = vld [vmem:[#allocation2 + $0x30] sm:$0xff]
  %v1440 = vld [vmem:[#allocation2 + $0x38] sm:$0xff]
  %v1441 = vld [vmem:[#allocation2 + $0x40] sm:$0xff]
  %v1442 = vld [vmem:[#allocation2 + $0x48] sm:$0xff]
  %v1443 = vld [vmem:[#allocation2 + $0x50] sm:$0xff]
  %v1444 = vld [vmem:[#allocation2 + $0x58] sm:$0xff]
  %v1445 = vld [vmem:[%s7] sm:$0xff]
  %v1446 = vld [vmem:[%s7 + $0x8] sm:$0xff]
  %v1447 = vld [vmem:[%s7 + $0x10] sm:$0xff]
  %v1448 = vld [vmem:[%s7 + $0x18] sm:$0xff]
  %v1449 = vld [vmem:[%s9] sm:$0x1]
  %v1451 = vlaneseq
  %v1452 = vshrl.u32 %v1451, 7
  %v1453 = vsub.s32 0, %v1452
  %v1454 = vrot.slane %v1449, %v1453
  %v1457 = vsel %vm1406, %v1433, 0
  %v1460 = vsel %vm1406, %v1434, 0
  %v1463 = vsel %vm1406, %v1435, 0
  %v1466 = vsel %vm1406, %v1436, 0
  %v1469 = vsel %vm1406, %v1437, 0
  %v1472 = vsel %vm1406, %v1438, 0
  %v1475 = vsel %vm1406, %v1439, 0
  %v1478 = vsel %vm1406, %v1440, 0
  %v1481 = vsel %vm1406, %v1441, 0
  %v1484 = vsel %vm1406, %v1442, 0
  %v1487 = vsel %vm1406, %v1443, 0
  %v1490 = vsel %vm1406, %v1444, 0
  %1492 = vmatprep.subr.mxu0 0.0
  %1493 = vmatpush1.msra.mxu0 %v1445
  %1494 = vmatprep.subr.mxu0 0.0
  %1495 = vmatpush1.msra.mxu0 %v1446
  %1496 = vmatprep.subr.mxu0 0.0
  %1497 = vmatpush1.msra.mxu0 %v1447
  %1498 = vmatprep.subr.mxu0 0.0
  %1499 = vmatpush1.msra.mxu0 %v1448
  %1500 = vmatprep.subr.mxu0 0.0
  %1501 = vmatpush1.msra.mxu0 0.0
  %1502 = vmatprep.subr.mxu0 0.0
  %1503 = vmatpush1.msra.mxu0 0.0
  %1504 = vmatprep.subr.mxu0 0.0
  %1505 = vmatpush1.msra.mxu0 0.0
  %1506 = vmatprep.subr.mxu0 0.0
  %1507 = vmatpush1.msra.mxu0 0.0
  %1508 = vmatprep.subr.mxu0 0.0
  %1509 = vmatpush1.msra.mxu0 0.0
  %1510 = vmatprep.subr.mxu0 0.0
  %1511 = vmatpush1.msra.mxu0 0.0
  %1512 = vmatprep.subr.mxu0 0.0
  %1513 = vmatpush1.msra.mxu0 0.0
  %1514 = vmatprep.subr.mxu0 0.0
  %1515 = vmatpush1.msra.mxu0 0.0
  %1516 = vmatprep.subr.mxu0 0.0
  %1517 = vmatpush1.msra.mxu0 0.0
  %1518 = vmatprep.subr.mxu0 0.0
  %1519 = vmatpush1.msra.mxu0 0.0
  %1520 = vmatprep.subr.mxu0 0.0
  %1521 = vmatpush1.msra.mxu0 0.0
  %1522 = vmatprep.subr.mxu0 0.0
  %1523 = vmatpush1.msra.mxu0 0.0
  %1524 = vmatprep.subr.mxu0 0.0
  %1525 = vmatpush1.msra.mxu0 0.0
  %1526 = vmatprep.subr.mxu0 0.0
  %1527 = vmatpush1.msra.mxu0 0.0
  %1528 = vmatprep.subr.mxu0 0.0
  %1529 = vmatpush1.msra.mxu0 0.0
  %1530 = vmatprep.subr.mxu0 0.0
  %1531 = vmatpush1.msra.mxu0 0.0
  %1532 = vmatprep.subr.mxu0 0.0
  %1533 = vmatpush1.msra.mxu0 0.0
  %1534 = vmatprep.subr.mxu0 0.0
  %1535 = vmatpush1.msra.mxu0 0.0
  %1536 = vmatprep.subr.mxu0 0.0
  %1537 = vmatpush1.msra.mxu0 0.0
  %1538 = vmatprep.subr.mxu0 0.0
  %1539 = vmatpush1.msra.mxu0 0.0
  %1540 = vmatprep.subr.mxu0 0.0
  %1541 = vmatpush1.msra.mxu0 0.0
  %1542 = vmatprep.subr.mxu0 0.0
  %1543 = vmatpush1.msra.mxu0 0.0
  %1544 = vmatprep.subr.mxu0 0.0
  %1545 = vmatpush1.msra.mxu0 0.0
  %1546 = vmatprep.subr.mxu0 0.0
  %1547 = vmatpush1.msra.mxu0 0.0
  %1548 = vmatprep.subr.mxu0 0.0
  %1549 = vmatpush1.msra.mxu0 0.0
  %1550 = vmatprep.subr.mxu0 0.0
  %1551 = vmatpush1.msra.mxu0 0.0
  %1552 = vmatprep.subr.mxu0 0.0
  %1553 = vmatpush1.msra.mxu0 0.0
  %1554 = vmatprep.subr.mxu0 0.0
  %1555 = vmatpush1.msra.mxu0 0.0
  %1556 = vmatprep.mubr.f32.mxu0 0.0
  %1557 = vmatmul.mubr.f32.gmra.mrb[0].mxu0 %v1457
  %v1558 = vpop.f32.mrb[0].mxu0
  %v1559 = vadd.f32 %v1454, %v1558
  %v1560 = vpop.f32.mrb[0].mxu0
  %1561 = vmatprep.mubr.f32.mxu0 0.0
  %1562 = vmatmul.mubr.f32.gmra.mrb[0].mxu0 %v1460
  %v1563 = vpop.f32.mrb[0].mxu0
  %v1564 = vadd.f32 %v1454, %v1563
  %v1565 = vpop.f32.mrb[0].mxu0
  %1566 = vmatprep.mubr.f32.mxu0 0.0
  %1567 = vmatmul.mubr.f32.gmra.mrb[0].mxu0 %v1463
  %v1568 = vpop.f32.mrb[0].mxu0
  %v1569 = vadd.f32 %v1454, %v1568
  %v1570 = vpop.f32.mrb[0].mxu0
  %1571 = vmatprep.mubr.f32.mxu0 0.0
  %1572 = vmatmul.mubr.f32.gmra.mrb[0].mxu0 %v1466
  %v1573 = vpop.f32.mrb[0].mxu0
  %v1574 = vadd.f32 %v1454, %v1573
  %v1575 = vpop.f32.mrb[0].mxu0
  %1576 = vmatprep.mubr.f32.mxu0 0.0
  %1577 = vmatmul.mubr.f32.gmra.mrb[0].mxu0 %v1469
  %v1578 = vpop.f32.mrb[0].mxu0
  %v1579 = vadd.f32 %v1454, %v1578
  %v1580 = vpop.f32.mrb[0].mxu0
  %1581 = vmatprep.mubr.f32.mxu0 0.0
  %1582 = vmatmul.mubr.f32.gmra.mrb[0].mxu0 %v1472
  %v1583 = vpop.f32.mrb[0].mxu0
  %v1584 = vadd.f32 %v1454, %v1583
  %v1585 = vpop.f32.mrb[0].mxu0
  %1586 = vmatprep.mubr.f32.mxu0 0.0
  %1587 = vmatmul.mubr.f32.gmra.mrb[0].mxu0 %v1475
  %v1588 = vpop.f32.mrb[0].mxu0
  %v1589 = vadd.f32 %v1454, %v1588
  %v1590 = vpop.f32.mrb[0].mxu0
  %1591 = vmatprep.mubr.f32.mxu0 0.0
  %1592 = vmatmul.mubr.f32.gmra.mrb[0].mxu0 %v1478
  %v1593 = vpop.f32.mrb[0].mxu0
  %v1594 = vadd.f32 %v1454, %v1593
  %v1595 = vpop.f32.mrb[0].mxu0
  %1596 = vmatprep.mubr.f32.mxu0 0.0
  %1597 = vmatmul.mubr.f32.gmra.mrb[0].mxu0 %v1481
  %v1598 = vpop.f32.mrb[0].mxu0
  %v1599 = vadd.f32 %v1454, %v1598
  %v1600 = vpop.f32.mrb[0].mxu0
  %1601 = vmatprep.mubr.f32.mxu0 0.0
  %1602 = vmatmul.mubr.f32.gmra.mrb[0].mxu0 %v1484
  %v1603 = vpop.f32.mrb[0].mxu0
  %v1604 = vadd.f32 %v1454, %v1603
  %v1605 = vpop.f32.mrb[0].mxu0
  %1606 = vmatprep.mubr.f32.mxu0 0.0
  %1607 = vmatmul.mubr.f32.gmra.mrb[0].mxu0 %v1487
  %v1608 = vpop.f32.mrb[0].mxu0
  %v1609 = vadd.f32 %v1454, %v1608
  %v1610 = vpop.f32.mrb[0].mxu0
  %1611 = vmatprep.mubr.f32.mxu0 0.0
  %1612 = vmatmul.mubr.f32.gmra.mrb[0].mxu0 %v1490
  %v1613 = vpop.f32.mrb[0].mxu0
  %v1614 = vadd.f32 %v1454, %v1613
  %v1615 = vpop.f32.mrb[0].mxu0
  %1616 = vdwg.mxu0
  %vm1617 = vcmask 785408
  %1618 = vst.msk [vmem:[#allocation3] sm:$0xff] %vm1617, %v1559
  %1619 = vst.msk [vmem:[#allocation3 + $0x8] sm:$0xff] %vm1617, %v1564
  %1620 = vst.msk [vmem:[#allocation3 + $0x10] sm:$0xff] %vm1617, %v1569
  %1621 = vst.msk [vmem:[#allocation3 + $0x18] sm:$0xff] %vm1617, %v1574
  %1622 = vst.msk [vmem:[#allocation3 + $0x20] sm:$0xff] %vm1617, %v1579
  %1623 = vst.msk [vmem:[#allocation3 + $0x28] sm:$0xff] %vm1617, %v1584
  %1624 = vst.msk [vmem:[#allocation3 + $0x30] sm:$0xff] %vm1617, %v1589
  %1625 = vst.msk [vmem:[#allocation3 + $0x38] sm:$0xff] %vm1617, %v1594
  %1626 = vst.msk [vmem:[#allocation3 + $0x40] sm:$0xff] %vm1617, %v1599
  %1627 = vst.msk [vmem:[#allocation3 + $0x48] sm:$0xff] %vm1617, %v1604
  %1628 = vst.msk [vmem:[#allocation3 + $0x50] sm:$0xff] %vm1617, %v1609
  %1629 = vst.msk [vmem:[#allocation3 + $0x58] sm:$0xff] %vm1617, %v1614
  %v1630 = vld [vmem:[%s8] sm:$0xff]
  %v1631 = vld [vmem:[%s8 + $0x8] sm:$0xff]
  %v1632 = vld [vmem:[%s8 + $0x10] sm:$0xff]
  %v1633 = vld [vmem:[%s8 + $0x18] sm:$0xff]
  %v1634 = vld [vmem:[%s8 + $0x20] sm:$0xff]
  %v1635 = vld [vmem:[%s8 + $0x28] sm:$0xff]
  %v1636 = vld [vmem:[%s8 + $0x30] sm:$0xff]
  %v1637 = vld [vmem:[%s8 + $0x38] sm:$0xff]
  %v1638 = vld [vmem:[%s8 + $0x40] sm:$0xff]
  %v1639 = vld [vmem:[%s8 + $0x48] sm:$0xff]
  %v1640 = vld [vmem:[%s8 + $0x50] sm:$0xff]
  %v1641 = vld [vmem:[%s8 + $0x58] sm:$0xff]
  %v1642 = vld [vmem:[%s8 + $0x60] sm:$0xff]
  %v1643 = vld [vmem:[%s8 + $0x68] sm:$0xff]
  %v1644 = vld [vmem:[%s8 + $0x70] sm:$0xff]
  %v1645 = vld [vmem:[%s8 + $0x78] sm:$0xff]
  %v1646 = vld [vmem:[%s11] sm:$0xff]
  %v1647 = vld [vmem:[%s11 + $0x8] sm:$0xff]
  %v1648 = vld [vmem:[%s11 + $0x10] sm:$0xff]
  %v1649 = vld [vmem:[%s11 + $0x18] sm:$0xff]
  %v1650 = vld [vmem:[%s10] sm:$0x3]
  %v1652 = vlaneseq
  %v1653 = vshrl.u32 %v1652, 7
  %v1654 = vsub.s32 0, %v1653
  %v1655 = vrot.slane %v1650, %v1654
  %v1656 = vlaneseq
  %v1657 = vshrl.u32 %v1656, 7
  %v1658 = vsub.s32 1, %v1657
  %v1659 = vrot.slane %v1650, %v1658
  %v1662 = vld [vmem:[%s12] sm:$0x1]
  %v1664 = vlaneseq
  %v1665 = vshrl.u32 %v1664, 7
  %v1666 = vsub.s32 0, %v1665
  %v1667 = vrot.slane %v1662, %v1666
  %v1669 = vld [vmem:[%s6] sm:$0xff]
  %vm1670 = vcmask 523264
  %1671 = vst.msk [vmem:[#allocation4] sm:$0xff] %vm1670, %v1669
  %p1672 = scmp.ge.s32.totalorder %s54, 0
  // Predicated region
  $region62: #{cpc_forward.1} parent=0 // pred_check
    %p1673 = pneg %p1672
  $region63: #{cpc_forward.1} parent=0 // pred_check_branch
    %1675 = sbr.rel (%p1673) target = $region65
  $region64: #{cpc_forward.1} parent=0 // pred_region
    %v1676 = vld [vmem:[#allocation3] sm:$0xff]
    %v1677 = vld [vmem:[#allocation4] sm:$0xff]
    %v1679 = vsel %vm1670, %v1677, 0
    %1681 = vmatprep.subr.mxu0 %v1631
    %1682 = vmatpush1.msra.mxu0 %v1630
    %1683 = vmatprep.subr.mxu0 %v1633
    %1684 = vmatpush1.msra.mxu0 %v1632
    %1685 = vmatprep.subr.mxu0 %v1635
    %1686 = vmatpush1.msra.mxu0 %v1634
    %1687 = vmatprep.subr.mxu0 %v1637
    %1688 = vmatpush1.msra.mxu0 %v1636
    %1689 = vmatprep.subr.mxu0 %v1639
    %1690 = vmatpush1.msra.mxu0 %v1638
    %1691 = vmatprep.subr.mxu0 %v1641
    %1692 = vmatpush1.msra.mxu0 %v1640
    %1693 = vmatprep.subr.mxu0 %v1643
    %1694 = vmatpush1.msra.mxu0 %v1642
    %1695 = vmatprep.subr.mxu0 %v1645
    %1696 = vmatpush1.msra.mxu0 %v1644
    %1697 = vmatprep.subr.mxu0 0.0
    %1698 = vmatpush1.msra.mxu0 0.0
    %1699 = vmatprep.subr.mxu0 0.0
    %1700 = vmatpush1.msra.mxu0 0.0
    %1701 = vmatprep.subr.mxu0 0.0
    %1702 = vmatpush1.msra.mxu0 0.0
    %1703 = vmatprep.subr.mxu0 0.0
    %1704 = vmatpush1.msra.mxu0 0.0
    %1705 = vmatprep.subr.mxu0 0.0
    %1706 = vmatpush1.msra.mxu0 0.0
    %1707 = vmatprep.subr.mxu0 0.0
    %1708 = vmatpush1.msra.mxu0 0.0
    %1709 = vmatprep.subr.mxu0 0.0
    %1710 = vmatpush1.msra.mxu0 0.0
    %1711 = vmatprep.subr.mxu0 0.0
    %1712 = vmatpush1.msra.mxu0 0.0
    %1713 = vmatprep.subr.mxu0 0.0
    %1714 = vmatpush1.msra.mxu0 0.0
    %1715 = vmatprep.subr.mxu0 0.0
    %1716 = vmatpush1.msra.mxu0 0.0
    %1717 = vmatprep.subr.mxu0 0.0
    %1718 = vmatpush1.msra.mxu0 0.0
    %1719 = vmatprep.subr.mxu0 0.0
    %1720 = vmatpush1.msra.mxu0 0.0
    %1721 = vmatprep.subr.mxu0 0.0
    %1722 = vmatpush1.msra.mxu0 0.0
    %1723 = vmatprep.subr.mxu0 0.0
    %1724 = vmatpush1.msra.mxu0 0.0
    %1725 = vmatprep.subr.mxu0 0.0
    %1726 = vmatpush1.msra.mxu0 0.0
    %1727 = vmatprep.subr.mxu0 0.0
    %1728 = vmatpush1.msra.mxu0 0.0
    %1729 = vmatprep.subr.mxu0 0.0
    %1730 = vmatpush1.msra.mxu0 0.0
    %1731 = vmatprep.subr.mxu0 0.0
    %1732 = vmatpush1.msra.mxu0 0.0
    %1733 = vmatprep.subr.mxu0 0.0
    %1734 = vmatpush1.msra.mxu0 0.0
    %1735 = vmatprep.subr.mxu0 0.0
    %1736 = vmatpush1.msra.mxu0 0.0
    %1737 = vmatprep.subr.mxu0 0.0
    %1738 = vmatpush1.msra.mxu0 0.0
    %1739 = vmatprep.subr.mxu0 0.0
    %1740 = vmatpush1.msra.mxu0 0.0
    %1741 = vmatprep.subr.mxu0 0.0
    %1742 = vmatpush1.msra.mxu0 0.0
    %1743 = vmatprep.subr.mxu0 0.0
    %1744 = vmatpush1.msra.mxu0 0.0
    %1745 = vmatprep.mubr.f32.mxu0 0.0
    %1746 = vmatmul.mubr.f32.gmra.mrb[0].mxu0 %v1679
    %v1747 = vpop.f32.mrb[0].mxu0
    %v1748 = vadd.f32 %v1655, %v1747
    %v1749 = vpop.f32.mrb[0].mxu0
    %v1750 = vadd.f32 %v1659, %v1749
    %1751 = vdwg.mxu0
    %v1752 = vadd.f32 %v1676, %v1748
    %v1753 = vxor.u32 %v1752, 2147483648
    %v1754 = vmul.f32 %v1753, 1.442695
    %v1755 = vpow.pop %v1754
    %v1756 = vadd.f32 %v1755, 1.0
    %v1757 = vrcp.pop %v1756
    %v1758 = vmul.f32 1.0, %v1757
    %1760 = vrot.lane.b32.xlu0 %v1748, 64
    %v1761 = vpop.permute.xlu0 %1760
    %v1763 = vmul.f32 %v1758, %v1761
    %1765 = vrot.lane.b32.xlu0 %v1763, 64
    %v1766 = vpop.permute.xlu0 %1765
    %v1768 = vadd.f32 %v1676, %v1766
    %v1769 = vtanh.pop %v1768
    %v1770 = vsub.f32 1.0, %v1758
    %1772 = vrot.lane.b32.xlu0 %v1769, 96
    %v1773 = vpop.permute.xlu0 %1772
    %v1775 = vmul.f32 %v1770, %v1773
    %1776 = vrot.lane.b32.xlu0 %v1677, 32
    %v1777 = vpop.permute.xlu0 %1776
    %v1779 = vmul.f32 %v1758, %v1777
    %v1780 = vadd.f32 %v1775, %v1779
    %1782 = vrot.lane.b32.xlu0 %v1780, 96
    %v1783 = vpop.permute.xlu0 %1782
    %v1784 = vsel %vm1406, %v1783, 0
    %1786 = vmatprep.subr.mxu0 0.0
    %1787 = vmatpush1.msra.mxu0 %v1646
    %1788 = vmatprep.subr.mxu0 0.0
    %1789 = vmatpush1.msra.mxu0 %v1647
    %1790 = vmatprep.subr.mxu0 0.0
    %1791 = vmatpush1.msra.mxu0 %v1648
    %1792 = vmatprep.subr.mxu0 0.0
    %1793 = vmatpush1.msra.mxu0 %v1649
    %1794 = vmatprep.subr.mxu0 0.0
    %1795 = vmatpush1.msra.mxu0 0.0
    %1796 = vmatprep.subr.mxu0 0.0
    %1797 = vmatpush1.msra.mxu0 0.0
    %1798 = vmatprep.subr.mxu0 0.0
    %1799 = vmatpush1.msra.mxu0 0.0
    %1800 = vmatprep.subr.mxu0 0.0
    %1801 = vmatpush1.msra.mxu0 0.0
    %1802 = vmatprep.subr.mxu0 0.0
    %1803 = vmatpush1.msra.mxu0 0.0
    %1804 = vmatprep.subr.mxu0 0.0
    %1805 = vmatpush1.msra.mxu0 0.0
    %1806 = vmatprep.subr.mxu0 0.0
    %1807 = vmatpush1.msra.mxu0 0.0
    %1808 = vmatprep.subr.mxu0 0.0
    %1809 = vmatpush1.msra.mxu0 0.0
    %1810 = vmatprep.subr.mxu0 0.0
    %1811 = vmatpush1.msra.mxu0 0.0
    %1812 = vmatprep.subr.mxu0 0.0
    %1813 = vmatpush1.msra.mxu0 0.0
    %1814 = vmatprep.subr.mxu0 0.0
    %1815 = vmatpush1.msra.mxu0 0.0
    %1816 = vmatprep.subr.mxu0 0.0
    %1817 = vmatpush1.msra.mxu0 0.0
    %1818 = vmatprep.subr.mxu0 0.0
    %1819 = vmatpush1.msra.mxu0 0.0
    %1820 = vmatprep.subr.mxu0 0.0
    %1821 = vmatpush1.msra.mxu0 0.0
    %1822 = vmatprep.subr.mxu0 0.0
    %1823 = vmatpush1.msra.mxu0 0.0
    %1824 = vmatprep.subr.mxu0 0.0
    %1825 = vmatpush1.msra.mxu0 0.0
    %1826 = vmatprep.subr.mxu0 0.0
    %1827 = vmatpush1.msra.mxu0 0.0
    %1828 = vmatprep.subr.mxu0 0.0
    %1829 = vmatpush1.msra.mxu0 0.0
    %1830 = vmatprep.subr.mxu0 0.0
    %1831 = vmatpush1.msra.mxu0 0.0
    %1832 = vmatprep.subr.mxu0 0.0
    %1833 = vmatpush1.msra.mxu0 0.0
    %1834 = vmatprep.subr.mxu0 0.0
    %1835 = vmatpush1.msra.mxu0 0.0
    %1836 = vmatprep.subr.mxu0 0.0
    %1837 = vmatpush1.msra.mxu0 0.0
    %1838 = vmatprep.subr.mxu0 0.0
    %1839 = vmatpush1.msra.mxu0 0.0
    %1840 = vmatprep.subr.mxu0 0.0
    %1841 = vmatpush1.msra.mxu0 0.0
    %1842 = vmatprep.subr.mxu0 0.0
    %1843 = vmatpush1.msra.mxu0 0.0
    %1844 = vmatprep.subr.mxu0 0.0
    %1845 = vmatpush1.msra.mxu0 0.0
    %1846 = vmatprep.subr.mxu0 0.0
    %1847 = vmatpush1.msra.mxu0 0.0
    %1848 = vmatprep.subr.mxu0 0.0
    %1849 = vmatpush1.msra.mxu0 0.0
    %1850 = vmatprep.mubr.f32.mxu0 0.0
    %1851 = vmatmul.mubr.f32.gmra.mrb[0].mxu0 %v1784
    %v1852 = vpop.f32.mrb[0].mxu0
    %v1853 = vadd.f32 %v1667, %v1852
    %v1854 = vpop.f32.mrb[0].mxu0
    %1855 = vdwg.mxu0
    %1856 = vrot.lane.b32.xlu0 %v1748, 32
    %v1857 = vpop.permute.xlu0 %1856
    %v1859 = vadd.f32 %v1853, %v1857
    %v1860 = vxor.u32 %v1859, 2147483648
    %v1861 = vmul.f32 %v1860, 1.442695
    %v1862 = vpow.pop %v1861
    %v1863 = vadd.f32 %v1862, 1.0
    %v1864 = vrcp.pop %v1863
    %v1865 = vmul.f32 1.0, %v1864
    %1867 = vrot.lane.b32.xlu0 %v1750, 32
    %v1868 = vpop.permute.xlu0 %1867
    %v1870 = vadd.f32 %v1853, %v1868
    %v1871 = vxor.u32 %v1870, 2147483648
    %v1872 = vmul.f32 %v1871, 1.442695
    %v1873 = vpow.pop %v1872
    %v1874 = vadd.f32 %v1873, 1.0
    %v1875 = vrcp.pop %v1874
    %v1876 = vmul.f32 1.0, %v1875
    %1877 = vrot.lane.b32.xlu0 %v1750, 96
    %v1878 = vpop.permute.xlu0 %1877
    %v1880 = vmul.f32 %v1865, %v1878
    %1882 = vrot.lane.b32.xlu0 %v1880, 64
    %v1883 = vpop.permute.xlu0 %1882
    %v1885 = vadd.f32 %v1853, %v1883
    %v1886 = vtanh.pop %v1885
    %v1887 = vsub.f32 1.0, %v1876
    %1889 = vrot.lane.b32.xlu0 %v1886, 96
    %v1890 = vpop.permute.xlu0 %1889
    %v1892 = vmul.f32 %v1887, %v1890
    %v1893 = vmul.f32 %v1876, %v1677
    %v1894 = vadd.f32 %v1892, %v1893
    %v1896 = vsel %vm1406, %v1783, %v1894
    %1897 = vst.msk [vmem:[#allocation4] sm:$0xff] %vm1670, %v1896
  $region65: #{cpc_forward.1} parent=0 // pred_fallthru
    _
  %p1898 = scmp.ge.s32.totalorder %s54, 1
  // Predicated region
  $region66: #{cpc_forward.1} parent=0 // pred_check
    %p1899 = pneg %p1898
  $region67: #{cpc_forward.1} parent=0 // pred_check_branch
    %1901 = sbr.rel (%p1899) target = $region69
  $region68: #{cpc_forward.1} parent=0 // pred_region
    %v1902 = vld [vmem:[#allocation3 + $0x8] sm:$0xff]
    %v1903 = vld [vmem:[#allocation4] sm:$0xff]
    %v1905 = vsel %vm1670, %v1903, 0
    %1907 = vmatprep.subr.mxu0 %v1631
    %1908 = vmatpush1.msra.mxu0 %v1630
    %1909 = vmatprep.subr.mxu0 %v1633
    %1910 = vmatpush1.msra.mxu0 %v1632
    %1911 = vmatprep.subr.mxu0 %v1635
    %1912 = vmatpush1.msra.mxu0 %v1634
    %1913 = vmatprep.subr.mxu0 %v1637
    %1914 = vmatpush1.msra.mxu0 %v1636
    %1915 = vmatprep.subr.mxu0 %v1639
    %1916 = vmatpush1.msra.mxu0 %v1638
    %1917 = vmatprep.subr.mxu0 %v1641
    %1918 = vmatpush1.msra.mxu0 %v1640
    %1919 = vmatprep.subr.mxu0 %v1643
    %1920 = vmatpush1.msra.mxu0 %v1642
    %1921 = vmatprep.subr.mxu0 %v1645
    %1922 = vmatpush1.msra.mxu0 %v1644
    %1923 = vmatprep.subr.mxu0 0.0
    %1924 = vmatpush1.msra.mxu0 0.0
    %1925 = vmatprep.subr.mxu0 0.0
    %1926 = vmatpush1.msra.mxu0 0.0
    %1927 = vmatprep.subr.mxu0 0.0
    %1928 = vmatpush1.msra.mxu0 0.0
    %1929 = vmatprep.subr.mxu0 0.0
    %1930 = vmatpush1.msra.mxu0 0.0
    %1931 = vmatprep.subr.mxu0 0.0
    %1932 = vmatpush1.msra.mxu0 0.0
    %1933 = vmatprep.subr.mxu0 0.0
    %1934 = vmatpush1.msra.mxu0 0.0
    %1935 = vmatprep.subr.mxu0 0.0
    %1936 = vmatpush1.msra.mxu0 0.0
    %1937 = vmatprep.subr.mxu0 0.0
    %1938 = vmatpush1.msra.mxu0 0.0
    %1939 = vmatprep.subr.mxu0 0.0
    %1940 = vmatpush1.msra.mxu0 0.0
    %1941 = vmatprep.subr.mxu0 0.0
    %1942 = vmatpush1.msra.mxu0 0.0
    %1943 = vmatprep.subr.mxu0 0.0
    %1944 = vmatpush1.msra.mxu0 0.0
    %1945 = vmatprep.subr.mxu0 0.0
    %1946 = vmatpush1.msra.mxu0 0.0
    %1947 = vmatprep.subr.mxu0 0.0
    %1948 = vmatpush1.msra.mxu0 0.0
    %1949 = vmatprep.subr.mxu0 0.0
    %1950 = vmatpush1.msra.mxu0 0.0
    %1951 = vmatprep.subr.mxu0 0.0
    %1952 = vmatpush1.msra.mxu0 0.0
    %1953 = vmatprep.subr.mxu0 0.0
    %1954 = vmatpush1.msra.mxu0 0.0
    %1955 = vmatprep.subr.mxu0 0.0
    %1956 = vmatpush1.msra.mxu0 0.0
    %1957 = vmatprep.subr.mxu0 0.0
    %1958 = vmatpush1.msra.mxu0 0.0
    %1959 = vmatprep.subr.mxu0 0.0
    %1960 = vmatpush1.msra.mxu0 0.0
    %1961 = vmatprep.subr.mxu0 0.0
    %1962 = vmatpush1.msra.mxu0 0.0
    %1963 = vmatprep.subr.mxu0 0.0
    %1964 = vmatpush1.msra.mxu0 0.0
    %1965 = vmatprep.subr.mxu0 0.0
    %1966 = vmatpush1.msra.mxu0 0.0
    %1967 = vmatprep.subr.mxu0 0.0
    %1968 = vmatpush1.msra.mxu0 0.0
    %1969 = vmatprep.subr.mxu0 0.0
    %1970 = vmatpush1.msra.mxu0 0.0
    %1971 = vmatprep.mubr.f32.mxu0 0.0
    %1972 = vmatmul.mubr.f32.gmra.mrb[0].mxu0 %v1905
    %v1973 = vpop.f32.mrb[0].mxu0
    %v1974 = vadd.f32 %v1655, %v1973
    %v1975 = vpop.f32.mrb[0].mxu0
    %v1976 = vadd.f32 %v1659, %v1975
    %1977 = vdwg.mxu0
    %v1978 = vadd.f32 %v1902, %v1974
    %v1979 = vxor.u32 %v1978, 2147483648
    %v1980 = vmul.f32 %v1979, 1.442695
    %v1981 = vpow.pop %v1980
    %v1982 = vadd.f32 %v1981, 1.0
    %v1983 = vrcp.pop %v1982
    %v1984 = vmul.f32 1.0, %v1983
    %1986 = vrot.lane.b32.xlu0 %v1974, 64
    %v1987 = vpop.permute.xlu0 %1986
    %v1989 = vmul.f32 %v1984, %v1987
    %1991 = vrot.lane.b32.xlu0 %v1989, 64
    %v1992 = vpop.permute.xlu0 %1991
    %v1994 = vadd.f32 %v1902, %v1992
    %v1995 = vtanh.pop %v1994
    %v1996 = vsub.f32 1.0, %v1984
    %1998 = vrot.lane.b32.xlu0 %v1995, 96
    %v1999 = vpop.permute.xlu0 %1998
    %v2001 = vmul.f32 %v1996, %v1999
    %2002 = vrot.lane.b32.xlu0 %v1903, 32
    %v2003 = vpop.permute.xlu0 %2002
    %v2005 = vmul.f32 %v1984, %v2003
    %v2006 = vadd.f32 %v2001, %v2005
    %2008 = vrot.lane.b32.xlu0 %v2006, 96
    %v2009 = vpop.permute.xlu0 %2008
    %v2010 = vsel %vm1406, %v2009, 0
    %2012 = vmatprep.subr.mxu0 0.0
    %2013 = vmatpush1.msra.mxu0 %v1646
    %2014 = vmatprep.subr.mxu0 0.0
    %2015 = vmatpush1.msra.mxu0 %v1647
    %2016 = vmatprep.subr.mxu0 0.0
    %2017 = vmatpush1.msra.mxu0 %v1648
    %2018 = vmatprep.subr.mxu0 0.0
    %2019 = vmatpush1.msra.mxu0 %v1649
    %2020 = vmatprep.subr.mxu0 0.0
    %2021 = vmatpush1.msra.mxu0 0.0
    %2022 = vmatprep.subr.mxu0 0.0
    %2023 = vmatpush1.msra.mxu0 0.0
    %2024 = vmatprep.subr.mxu0 0.0
    %2025 = vmatpush1.msra.mxu0 0.0
    %2026 = vmatprep.subr.mxu0 0.0
    %2027 = vmatpush1.msra.mxu0 0.0
    %2028 = vmatprep.subr.mxu0 0.0
    %2029 = vmatpush1.msra.mxu0 0.0
    %2030 = vmatprep.subr.mxu0 0.0
    %2031 = vmatpush1.msra.mxu0 0.0
    %2032 = vmatprep.subr.mxu0 0.0
    %2033 = vmatpush1.msra.mxu0 0.0
    %2034 = vmatprep.subr.mxu0 0.0
    %2035 = vmatpush1.msra.mxu0 0.0
    %2036 = vmatprep.subr.mxu0 0.0
    %2037 = vmatpush1.msra.mxu0 0.0
    %2038 = vmatprep.subr.mxu0 0.0
    %2039 = vmatpush1.msra.mxu0 0.0
    %2040 = vmatprep.subr.mxu0 0.0
    %2041 = vmatpush1.msra.mxu0 0.0
    %2042 = vmatprep.subr.mxu0 0.0
    %2043 = vmatpush1.msra.mxu0 0.0
    %2044 = vmatprep.subr.mxu0 0.0
    %2045 = vmatpush1.msra.mxu0 0.0
    %2046 = vmatprep.subr.mxu0 0.0
    %2047 = vmatpush1.msra.mxu0 0.0
    %2048 = vmatprep.subr.mxu0 0.0
    %2049 = vmatpush1.msra.mxu0 0.0
    %2050 = vmatprep.subr.mxu0 0.0
    %2051 = vmatpush1.msra.mxu0 0.0
    %2052 = vmatprep.subr.mxu0 0.0
    %2053 = vmatpush1.msra.mxu0 0.0
    %2054 = vmatprep.subr.mxu0 0.0
    %2055 = vmatpush1.msra.mxu0 0.0
    %2056 = vmatprep.subr.mxu0 0.0
    %2057 = vmatpush1.msra.mxu0 0.0
    %2058 = vmatprep.subr.mxu0 0.0
    %2059 = vmatpush1.msra.mxu0 0.0
    %2060 = vmatprep.subr.mxu0 0.0
    %2061 = vmatpush1.msra.mxu0 0.0
    %2062 = vmatprep.subr.mxu0 0.0
    %2063 = vmatpush1.msra.mxu0 0.0
    %2064 = vmatprep.subr.mxu0 0.0
    %2065 = vmatpush1.msra.mxu0 0.0
    %2066 = vmatprep.subr.mxu0 0.0
    %2067 = vmatpush1.msra.mxu0 0.0
    %2068 = vmatprep.subr.mxu0 0.0
    %2069 = vmatpush1.msra.mxu0 0.0
    %2070 = vmatprep.subr.mxu0 0.0
    %2071 = vmatpush1.msra.mxu0 0.0
    %2072 = vmatprep.subr.mxu0 0.0
    %2073 = vmatpush1.msra.mxu0 0.0
    %2074 = vmatprep.subr.mxu0 0.0
    %2075 = vmatpush1.msra.mxu0 0.0
    %2076 = vmatprep.mubr.f32.mxu0 0.0
    %2077 = vmatmul.mubr.f32.gmra.mrb[0].mxu0 %v2010
    %v2078 = vpop.f32.mrb[0].mxu0
    %v2079 = vadd.f32 %v1667, %v2078
    %v2080 = vpop.f32.mrb[0].mxu0
    %2081 = vdwg.mxu0
    %2082 = vrot.lane.b32.xlu0 %v1974, 32
    %v2083 = vpop.permute.xlu0 %2082
    %v2085 = vadd.f32 %v2079, %v2083
    %v2086 = vxor.u32 %v2085, 2147483648
    %v2087 = vmul.f32 %v2086, 1.442695
    %v2088 = vpow.pop %v2087
    %v2089 = vadd.f32 %v2088, 1.0
    %v2090 = vrcp.pop %v2089
    %v2091 = vmul.f32 1.0, %v2090
    %2093 = vrot.lane.b32.xlu0 %v1976, 32
    %v2094 = vpop.permute.xlu0 %2093
    %v2096 = vadd.f32 %v2079, %v2094
    %v2097 = vxor.u32 %v2096, 2147483648
    %v2098 = vmul.f32 %v2097, 1.442695
    %v2099 = vpow.pop %v2098
    %v2100 = vadd.f32 %v2099, 1.0
    %v2101 = vrcp.pop %v2100
    %v2102 = vmul.f32 1.0, %v2101
    %2103 = vrot.lane.b32.xlu0 %v1976, 96
    %v2104 = vpop.permute.xlu0 %2103
    %v2106 = vmul.f32 %v2091, %v2104
    %2108 = vrot.lane.b32.xlu0 %v2106, 64
    %v2109 = vpop.permute.xlu0 %2108
    %v2111 = vadd.f32 %v2079, %v2109
    %v2112 = vtanh.pop %v2111
    %v2113 = vsub.f32 1.0, %v2102
    %2115 = vrot.lane.b32.xlu0 %v2112, 96
    %v2116 = vpop.permute.xlu0 %2115
    %v2118 = vmul.f32 %v2113, %v2116
    %v2119 = vmul.f32 %v2102, %v1903
    %v2120 = vadd.f32 %v2118, %v2119
    %v2122 = vsel %vm1406, %v2009, %v2120
    %2123 = vst.msk [vmem:[#allocation4] sm:$0xff] %vm1670, %v2122
  $region69: #{cpc_forward.1} parent=0 // pred_fallthru
    _
  %p2124 = scmp.ge.s32.totalorder %s54, 2
  // Predicated region
  $region70: #{cpc_forward.1} parent=0 // pred_check
    %p2125 = pneg %p2124
  $region71: #{cpc_forward.1} parent=0 // pred_check_branch
    %2127 = sbr.rel (%p2125) target = $region73
  $region72: #{cpc_forward.1} parent=0 // pred_region
    %v2128 = vld [vmem:[#allocation3 + $0x10] sm:$0xff]
    %v2129 = vld [vmem:[#allocation4] sm:$0xff]
    %v2131 = vsel %vm1670, %v2129, 0
    %2133 = vmatprep.subr.mxu0 %v1631
    %2134 = vmatpush1.msra.mxu0 %v1630
    %2135 = vmatprep.subr.mxu0 %v1633
    %2136 = vmatpush1.msra.mxu0 %v1632
    %2137 = vmatprep.subr.mxu0 %v1635
    %2138 = vmatpush1.msra.mxu0 %v1634
    %2139 = vmatprep.subr.mxu0 %v1637
    %2140 = vmatpush1.msra.mxu0 %v1636
    %2141 = vmatprep.subr.mxu0 %v1639
    %2142 = vmatpush1.msra.mxu0 %v1638
    %2143 = vmatprep.subr.mxu0 %v1641
    %2144 = vmatpush1.msra.mxu0 %v1640
    %2145 = vmatprep.subr.mxu0 %v1643
    %2146 = vmatpush1.msra.mxu0 %v1642
    %2147 = vmatprep.subr.mxu0 %v1645
    %2148 = vmatpush1.msra.mxu0 %v1644
    %2149 = vmatprep.subr.mxu0 0.0
    %2150 = vmatpush1.msra.mxu0 0.0
    %2151 = vmatprep.subr.mxu0 0.0
    %2152 = vmatpush1.msra.mxu0 0.0
    %2153 = vmatprep.subr.mxu0 0.0
    %2154 = vmatpush1.msra.mxu0 0.0
    %2155 = vmatprep.subr.mxu0 0.0
    %2156 = vmatpush1.msra.mxu0 0.0
    %2157 = vmatprep.subr.mxu0 0.0
    %2158 = vmatpush1.msra.mxu0 0.0
    %2159 = vmatprep.subr.mxu0 0.0
    %2160 = vmatpush1.msra.mxu0 0.0
    %2161 = vmatprep.subr.mxu0 0.0
    %2162 = vmatpush1.msra.mxu0 0.0
    %2163 = vmatprep.subr.mxu0 0.0
    %2164 = vmatpush1.msra.mxu0 0.0
    %2165 = vmatprep.subr.mxu0 0.0
    %2166 = vmatpush1.msra.mxu0 0.0
    %2167 = vmatprep.subr.mxu0 0.0
    %2168 = vmatpush1.msra.mxu0 0.0
    %2169 = vmatprep.subr.mxu0 0.0
    %2170 = vmatpush1.msra.mxu0 0.0
    %2171 = vmatprep.subr.mxu0 0.0
    %2172 = vmatpush1.msra.mxu0 0.0
    %2173 = vmatprep.subr.mxu0 0.0
    %2174 = vmatpush1.msra.mxu0 0.0
    %2175 = vmatprep.subr.mxu0 0.0
    %2176 = vmatpush1.msra.mxu0 0.0
    %2177 = vmatprep.subr.mxu0 0.0
    %2178 = vmatpush1.msra.mxu0 0.0
    %2179 = vmatprep.subr.mxu0 0.0
    %2180 = vmatpush1.msra.mxu0 0.0
    %2181 = vmatprep.subr.mxu0 0.0
    %2182 = vmatpush1.msra.mxu0 0.0
    %2183 = vmatprep.subr.mxu0 0.0
    %2184 = vmatpush1.msra.mxu0 0.0
    %2185 = vmatprep.subr.mxu0 0.0
    %2186 = vmatpush1.msra.mxu0 0.0
    %2187 = vmatprep.subr.mxu0 0.0
    %2188 = vmatpush1.msra.mxu0 0.0
    %2189 = vmatprep.subr.mxu0 0.0
    %2190 = vmatpush1.msra.mxu0 0.0
    %2191 = vmatprep.subr.mxu0 0.0
    %2192 = vmatpush1.msra.mxu0 0.0
    %2193 = vmatprep.subr.mxu0 0.0
    %2194 = vmatpush1.msra.mxu0 0.0
    %2195 = vmatprep.subr.mxu0 0.0
    %2196 = vmatpush1.msra.mxu0 0.0
    %2197 = vmatprep.mubr.f32.mxu0 0.0
    %2198 = vmatmul.mubr.f32.gmra.mrb[0].mxu0 %v2131
    %v2199 = vpop.f32.mrb[0].mxu0
    %v2200 = vadd.f32 %v1655, %v2199
    %v2201 = vpop.f32.mrb[0].mxu0
    %v2202 = vadd.f32 %v1659, %v2201
    %2203 = vdwg.mxu0
    %v2204 = vadd.f32 %v2128, %v2200
    %v2205 = vxor.u32 %v2204, 2147483648
    %v2206 = vmul.f32 %v2205, 1.442695
    %v2207 = vpow.pop %v2206
    %v2208 = vadd.f32 %v2207, 1.0
    %v2209 = vrcp.pop %v2208
    %v2210 = vmul.f32 1.0, %v2209
    %2212 = vrot.lane.b32.xlu0 %v2200, 64
    %v2213 = vpop.permute.xlu0 %2212
    %v2215 = vmul.f32 %v2210, %v2213
    %2217 = vrot.lane.b32.xlu0 %v2215, 64
    %v2218 = vpop.permute.xlu0 %2217
    %v2220 = vadd.f32 %v2128, %v2218
    %v2221 = vtanh.pop %v2220
    %v2222 = vsub.f32 1.0, %v2210
    %2224 = vrot.lane.b32.xlu0 %v2221, 96
    %v2225 = vpop.permute.xlu0 %2224
    %v2227 = vmul.f32 %v2222, %v2225
    %2228 = vrot.lane.b32.xlu0 %v2129, 32
    %v2229 = vpop.permute.xlu0 %2228
    %v2231 = vmul.f32 %v2210, %v2229
    %v2232 = vadd.f32 %v2227, %v2231
    %2234 = vrot.lane.b32.xlu0 %v2232, 96
    %v2235 = vpop.permute.xlu0 %2234
    %v2236 = vsel %vm1406, %v2235, 0
    %2238 = vmatprep.subr.mxu0 0.0
    %2239 = vmatpush1.msra.mxu0 %v1646
    %2240 = vmatprep.subr.mxu0 0.0
    %2241 = vmatpush1.msra.mxu0 %v1647
    %2242 = vmatprep.subr.mxu0 0.0
    %2243 = vmatpush1.msra.mxu0 %v1648
    %2244 = vmatprep.subr.mxu0 0.0
    %2245 = vmatpush1.msra.mxu0 %v1649
    %2246 = vmatprep.subr.mxu0 0.0
    %2247 = vmatpush1.msra.mxu0 0.0
    %2248 = vmatprep.subr.mxu0 0.0
    %2249 = vmatpush1.msra.mxu0 0.0
    %2250 = vmatprep.subr.mxu0 0.0
    %2251 = vmatpush1.msra.mxu0 0.0
    %2252 = vmatprep.subr.mxu0 0.0
    %2253 = vmatpush1.msra.mxu0 0.0
    %2254 = vmatprep.subr.mxu0 0.0
    %2255 = vmatpush1.msra.mxu0 0.0
    %2256 = vmatprep.subr.mxu0 0.0
    %2257 = vmatpush1.msra.mxu0 0.0
    %2258 = vmatprep.subr.mxu0 0.0
    %2259 = vmatpush1.msra.mxu0 0.0
    %2260 = vmatprep.subr.mxu0 0.0
    %2261 = vmatpush1.msra.mxu0 0.0
    %2262 = vmatprep.subr.mxu0 0.0
    %2263 = vmatpush1.msra.mxu0 0.0
    %2264 = vmatprep.subr.mxu0 0.0
    %2265 = vmatpush1.msra.mxu0 0.0
    %2266 = vmatprep.subr.mxu0 0.0
    %2267 = vmatpush1.msra.mxu0 0.0
    %2268 = vmatprep.subr.mxu0 0.0
    %2269 = vmatpush1.msra.mxu0 0.0
    %2270 = vmatprep.subr.mxu0 0.0
    %2271 = vmatpush1.msra.mxu0 0.0
    %2272 = vmatprep.subr.mxu0 0.0
    %2273 = vmatpush1.msra.mxu0 0.0
    %2274 = vmatprep.subr.mxu0 0.0
    %2275 = vmatpush1.msra.mxu0 0.0
    %2276 = vmatprep.subr.mxu0 0.0
    %2277 = vmatpush1.msra.mxu0 0.0
    %2278 = vmatprep.subr.mxu0 0.0
    %2279 = vmatpush1.msra.mxu0 0.0
    %2280 = vmatprep.subr.mxu0 0.0
    %2281 = vmatpush1.msra.mxu0 0.0
    %2282 = vmatprep.subr.mxu0 0.0
    %2283 = vmatpush1.msra.mxu0 0.0
    %2284 = vmatprep.subr.mxu0 0.0
    %2285 = vmatpush1.msra.mxu0 0.0
    %2286 = vmatprep.subr.mxu0 0.0
    %2287 = vmatpush1.msra.mxu0 0.0
    %2288 = vmatprep.subr.mxu0 0.0
    %2289 = vmatpush1.msra.mxu0 0.0
    %2290 = vmatprep.subr.mxu0 0.0
    %2291 = vmatpush1.msra.mxu0 0.0
    %2292 = vmatprep.subr.mxu0 0.0
    %2293 = vmatpush1.msra.mxu0 0.0
    %2294 = vmatprep.subr.mxu0 0.0
    %2295 = vmatpush1.msra.mxu0 0.0
    %2296 = vmatprep.subr.mxu0 0.0
    %2297 = vmatpush1.msra.mxu0 0.0
    %2298 = vmatprep.subr.mxu0 0.0
    %2299 = vmatpush1.msra.mxu0 0.0
    %2300 = vmatprep.subr.mxu0 0.0
    %2301 = vmatpush1.msra.mxu0 0.0
    %2302 = vmatprep.mubr.f32.mxu0 0.0
    %2303 = vmatmul.mubr.f32.gmra.mrb[0].mxu0 %v2236
    %v2304 = vpop.f32.mrb[0].mxu0
    %v2305 = vadd.f32 %v1667, %v2304
    %v2306 = vpop.f32.mrb[0].mxu0
    %2307 = vdwg.mxu0
    %2308 = vrot.lane.b32.xlu0 %v2200, 32
    %v2309 = vpop.permute.xlu0 %2308
    %v2311 = vadd.f32 %v2305, %v2309
    %v2312 = vxor.u32 %v2311, 2147483648
    %v2313 = vmul.f32 %v2312, 1.442695
    %v2314 = vpow.pop %v2313
    %v2315 = vadd.f32 %v2314, 1.0
    %v2316 = vrcp.pop %v2315
    %v2317 = vmul.f32 1.0, %v2316
    %2319 = vrot.lane.b32.xlu0 %v2202, 32
    %v2320 = vpop.permute.xlu0 %2319
    %v2322 = vadd.f32 %v2305, %v2320
    %v2323 = vxor.u32 %v2322, 2147483648
    %v2324 = vmul.f32 %v2323, 1.442695
    %v2325 = vpow.pop %v2324
    %v2326 = vadd.f32 %v2325, 1.0
    %v2327 = vrcp.pop %v2326
    %v2328 = vmul.f32 1.0, %v2327
    %2329 = vrot.lane.b32.xlu0 %v2202, 96
    %v2330 = vpop.permute.xlu0 %2329
    %v2332 = vmul.f32 %v2317, %v2330
    %2334 = vrot.lane.b32.xlu0 %v2332, 64
    %v2335 = vpop.permute.xlu0 %2334
    %v2337 = vadd.f32 %v2305, %v2335
    %v2338 = vtanh.pop %v2337
    %v2339 = vsub.f32 1.0, %v2328
    %2341 = vrot.lane.b32.xlu0 %v2338, 96
    %v2342 = vpop.permute.xlu0 %2341
    %v2344 = vmul.f32 %v2339, %v2342
    %v2345 = vmul.f32 %v2328, %v2129
    %v2346 = vadd.f32 %v2344, %v2345
    %v2348 = vsel %vm1406, %v2235, %v2346
    %2349 = vst.msk [vmem:[#allocation4] sm:$0xff] %vm1670, %v2348
  $region73: #{cpc_forward.1} parent=0 // pred_fallthru
    _
  %p2350 = scmp.ge.s32.totalorder %s54, 3
  // Predicated region
  $region74: #{cpc_forward.1} parent=0 // pred_check
    %p2351 = pneg %p2350
  $region75: #{cpc_forward.1} parent=0 // pred_check_branch
    %2353 = sbr.rel (%p2351) target = $region77
  $region76: #{cpc_forward.1} parent=0 // pred_region
    %v2354 = vld [vmem:[#allocation3 + $0x18] sm:$0xff]
    %v2355 = vld [vmem:[#allocation4] sm:$0xff]
    %v2357 = vsel %vm1670, %v2355, 0
    %2359 = vmatprep.subr.mxu0 %v1631
    %2360 = vmatpush1.msra.mxu0 %v1630
    %2361 = vmatprep.subr.mxu0 %v1633
    %2362 = vmatpush1.msra.mxu0 %v1632
    %2363 = vmatprep.subr.mxu0 %v1635
    %2364 = vmatpush1.msra.mxu0 %v1634
    %2365 = vmatprep.subr.mxu0 %v1637
    %2366 = vmatpush1.msra.mxu0 %v1636
    %2367 = vmatprep.subr.mxu0 %v1639
    %2368 = vmatpush1.msra.mxu0 %v1638
    %2369 = vmatprep.subr.mxu0 %v1641
    %2370 = vmatpush1.msra.mxu0 %v1640
    %2371 = vmatprep.subr.mxu0 %v1643
    %2372 = vmatpush1.msra.mxu0 %v1642
    %2373 = vmatprep.subr.mxu0 %v1645
    %2374 = vmatpush1.msra.mxu0 %v1644
    %2375 = vmatprep.subr.mxu0 0.0
    %2376 = vmatpush1.msra.mxu0 0.0
    %2377 = vmatprep.subr.mxu0 0.0
    %2378 = vmatpush1.msra.mxu0 0.0
    %2379 = vmatprep.subr.mxu0 0.0
    %2380 = vmatpush1.msra.mxu0 0.0
    %2381 = vmatprep.subr.mxu0 0.0
    %2382 = vmatpush1.msra.mxu0 0.0
    %2383 = vmatprep.subr.mxu0 0.0
    %2384 = vmatpush1.msra.mxu0 0.0
    %2385 = vmatprep.subr.mxu0 0.0
    %2386 = vmatpush1.msra.mxu0 0.0
    %2387 = vmatprep.subr.mxu0 0.0
    %2388 = vmatpush1.msra.mxu0 0.0
    %2389 = vmatprep.subr.mxu0 0.0
    %2390 = vmatpush1.msra.mxu0 0.0
    %2391 = vmatprep.subr.mxu0 0.0
    %2392 = vmatpush1.msra.mxu0 0.0
    %2393 = vmatprep.subr.mxu0 0.0
    %2394 = vmatpush1.msra.mxu0 0.0
    %2395 = vmatprep.subr.mxu0 0.0
    %2396 = vmatpush1.msra.mxu0 0.0
    %2397 = vmatprep.subr.mxu0 0.0
    %2398 = vmatpush1.msra.mxu0 0.0
    %2399 = vmatprep.subr.mxu0 0.0
    %2400 = vmatpush1.msra.mxu0 0.0
    %2401 = vmatprep.subr.mxu0 0.0
    %2402 = vmatpush1.msra.mxu0 0.0
    %2403 = vmatprep.subr.mxu0 0.0
    %2404 = vmatpush1.msra.mxu0 0.0
    %2405 = vmatprep.subr.mxu0 0.0
    %2406 = vmatpush1.msra.mxu0 0.0
    %2407 = vmatprep.subr.mxu0 0.0
    %2408 = vmatpush1.msra.mxu0 0.0
    %2409 = vmatprep.subr.mxu0 0.0
    %2410 = vmatpush1.msra.mxu0 0.0
    %2411 = vmatprep.subr.mxu0 0.0
    %2412 = vmatpush1.msra.mxu0 0.0
    %2413 = vmatprep.subr.mxu0 0.0
    %2414 = vmatpush1.msra.mxu0 0.0
    %2415 = vmatprep.subr.mxu0 0.0
    %2416 = vmatpush1.msra.mxu0 0.0
    %2417 = vmatprep.subr.mxu0 0.0
    %2418 = vmatpush1.msra.mxu0 0.0
    %2419 = vmatprep.subr.mxu0 0.0
    %2420 = vmatpush1.msra.mxu0 0.0
    %2421 = vmatprep.subr.mxu0 0.0
    %2422 = vmatpush1.msra.mxu0 0.0
    %2423 = vmatprep.mubr.f32.mxu0 0.0
    %2424 = vmatmul.mubr.f32.gmra.mrb[0].mxu0 %v2357
    %v2425 = vpop.f32.mrb[0].mxu0
    %v2426 = vadd.f32 %v1655, %v2425
    %v2427 = vpop.f32.mrb[0].mxu0
    %v2428 = vadd.f32 %v1659, %v2427
    %2429 = vdwg.mxu0
    %v2430 = vadd.f32 %v2354, %v2426
    %v2431 = vxor.u32 %v2430, 2147483648
    %v2432 = vmul.f32 %v2431, 1.442695
    %v2433 = vpow.pop %v2432
    %v2434 = vadd.f32 %v2433, 1.0
    %v2435 = vrcp.pop %v2434
    %v2436 = vmul.f32 1.0, %v2435
    %2438 = vrot.lane.b32.xlu0 %v2426, 64
    %v2439 = vpop.permute.xlu0 %2438
    %v2441 = vmul.f32 %v2436, %v2439
    %2443 = vrot.lane.b32.xlu0 %v2441, 64
    %v2444 = vpop.permute.xlu0 %2443
    %v2446 = vadd.f32 %v2354, %v2444
    %v2447 = vtanh.pop %v2446
    %v2448 = vsub.f32 1.0, %v2436
    %2450 = vrot.lane.b32.xlu0 %v2447, 96
    %v2451 = vpop.permute.xlu0 %2450
    %v2453 = vmul.f32 %v2448, %v2451
    %2454 = vrot.lane.b32.xlu0 %v2355, 32
    %v2455 = vpop.permute.xlu0 %2454
    %v2457 = vmul.f32 %v2436, %v2455
    %v2458 = vadd.f32 %v2453, %v2457
    %2460 = vrot.lane.b32.xlu0 %v2458, 96
    %v2461 = vpop.permute.xlu0 %2460
    %v2462 = vsel %vm1406, %v2461, 0
    %2464 = vmatprep.subr.mxu0 0.0
    %2465 = vmatpush1.msra.mxu0 %v1646
    %2466 = vmatprep.subr.mxu0 0.0
    %2467 = vmatpush1.msra.mxu0 %v1647
    %2468 = vmatprep.subr.mxu0 0.0
    %2469 = vmatpush1.msra.mxu0 %v1648
    %2470 = vmatprep.subr.mxu0 0.0
    %2471 = vmatpush1.msra.mxu0 %v1649
    %2472 = vmatprep.subr.mxu0 0.0
    %2473 = vmatpush1.msra.mxu0 0.0
    %2474 = vmatprep.subr.mxu0 0.0
    %2475 = vmatpush1.msra.mxu0 0.0
    %2476 = vmatprep.subr.mxu0 0.0
    %2477 = vmatpush1.msra.mxu0 0.0
    %2478 = vmatprep.subr.mxu0 0.0
    %2479 = vmatpush1.msra.mxu0 0.0
    %2480 = vmatprep.subr.mxu0 0.0
    %2481 = vmatpush1.msra.mxu0 0.0
    %2482 = vmatprep.subr.mxu0 0.0
    %2483 = vmatpush1.msra.mxu0 0.0
    %2484 = vmatprep.subr.mxu0 0.0
    %2485 = vmatpush1.msra.mxu0 0.0
    %2486 = vmatprep.subr.mxu0 0.0
    %2487 = vmatpush1.msra.mxu0 0.0
    %2488 = vmatprep.subr.mxu0 0.0
    %2489 = vmatpush1.msra.mxu0 0.0
    %2490 = vmatprep.subr.mxu0 0.0
    %2491 = vmatpush1.msra.mxu0 0.0
    %2492 = vmatprep.subr.mxu0 0.0
    %2493 = vmatpush1.msra.mxu0 0.0
    %2494 = vmatprep.subr.mxu0 0.0
    %2495 = vmatpush1.msra.mxu0 0.0
    %2496 = vmatprep.subr.mxu0 0.0
    %2497 = vmatpush1.msra.mxu0 0.0
    %2498 = vmatprep.subr.mxu0 0.0
    %2499 = vmatpush1.msra.mxu0 0.0
    %2500 = vmatprep.subr.mxu0 0.0
    %2501 = vmatpush1.msra.mxu0 0.0
    %2502 = vmatprep.subr.mxu0 0.0
    %2503 = vmatpush1.msra.mxu0 0.0
    %2504 = vmatprep.subr.mxu0 0.0
    %2505 = vmatpush1.msra.mxu0 0.0
    %2506 = vmatprep.subr.mxu0 0.0
    %2507 = vmatpush1.msra.mxu0 0.0
    %2508 = vmatprep.subr.mxu0 0.0
    %2509 = vmatpush1.msra.mxu0 0.0
    %2510 = vmatprep.subr.mxu0 0.0
    %2511 = vmatpush1.msra.mxu0 0.0
    %2512 = vmatprep.subr.mxu0 0.0
    %2513 = vmatpush1.msra.mxu0 0.0
    %2514 = vmatprep.subr.mxu0 0.0
    %2515 = vmatpush1.msra.mxu0 0.0
    %2516 = vmatprep.subr.mxu0 0.0
    %2517 = vmatpush1.msra.mxu0 0.0
    %2518 = vmatprep.subr.mxu0 0.0
    %2519 = vmatpush1.msra.mxu0 0.0
    %2520 = vmatprep.subr.mxu0 0.0
    %2521 = vmatpush1.msra.mxu0 0.0
    %2522 = vmatprep.subr.mxu0 0.0
    %2523 = vmatpush1.msra.mxu0 0.0
    %2524 = vmatprep.subr.mxu0 0.0
    %2525 = vmatpush1.msra.mxu0 0.0
    %2526 = vmatprep.subr.mxu0 0.0
    %2527 = vmatpush1.msra.mxu0 0.0
    %2528 = vmatprep.mubr.f32.mxu0 0.0
    %2529 = vmatmul.mubr.f32.gmra.mrb[0].mxu0 %v2462
    %v2530 = vpop.f32.mrb[0].mxu0
    %v2531 = vadd.f32 %v1667, %v2530
    %v2532 = vpop.f32.mrb[0].mxu0
    %2533 = vdwg.mxu0
    %2534 = vrot.lane.b32.xlu0 %v2426, 32
    %v2535 = vpop.permute.xlu0 %2534
    %v2537 = vadd.f32 %v2531, %v2535
    %v2538 = vxor.u32 %v2537, 2147483648
    %v2539 = vmul.f32 %v2538, 1.442695
    %v2540 = vpow.pop %v2539
    %v2541 = vadd.f32 %v2540, 1.0
    %v2542 = vrcp.pop %v2541
    %v2543 = vmul.f32 1.0, %v2542
    %2545 = vrot.lane.b32.xlu0 %v2428, 32
    %v2546 = vpop.permute.xlu0 %2545
    %v2548 = vadd.f32 %v2531, %v2546
    %v2549 = vxor.u32 %v2548, 2147483648
    %v2550 = vmul.f32 %v2549, 1.442695
    %v2551 = vpow.pop %v2550
    %v2552 = vadd.f32 %v2551, 1.0
    %v2553 = vrcp.pop %v2552
    %v2554 = vmul.f32 1.0, %v2553
    %2555 = vrot.lane.b32.xlu0 %v2428, 96
    %v2556 = vpop.permute.xlu0 %2555
    %v2558 = vmul.f32 %v2543, %v2556
    %2560 = vrot.lane.b32.xlu0 %v2558, 64
    %v2561 = vpop.permute.xlu0 %2560
    %v2563 = vadd.f32 %v2531, %v2561
    %v2564 = vtanh.pop %v2563
    %v2565 = vsub.f32 1.0, %v2554
    %2567 = vrot.lane.b32.xlu0 %v2564, 96
    %v2568 = vpop.permute.xlu0 %2567
    %v2570 = vmul.f32 %v2565, %v2568
    %v2571 = vmul.f32 %v2554, %v2355
    %v2572 = vadd.f32 %v2570, %v2571
    %v2574 = vsel %vm1406, %v2461, %v2572
    %2575 = vst.msk [vmem:[#allocation4] sm:$0xff] %vm1670, %v2574
  $region77: #{cpc_forward.1} parent=0 // pred_fallthru
    _
  %p2576 = scmp.ge.s32.totalorder %s54, 4
  // Predicated region
  $region78: #{cpc_forward.1} parent=0 // pred_check
    %p2577 = pneg %p2576
  $region79: #{cpc_forward.1} parent=0 // pred_check_branch
    %2579 = sbr.rel (%p2577) target = $region81
  $region80: #{cpc_forward.1} parent=0 // pred_region
    %v2580 = vld [vmem:[#allocation3 + $0x20] sm:$0xff]
    %v2581 = vld [vmem:[#allocation4] sm:$0xff]
    %v2583 = vsel %vm1670, %v2581, 0
    %2585 = vmatprep.subr.mxu0 %v1631
    %2586 = vmatpush1.msra.mxu0 %v1630
    %2587 = vmatprep.subr.mxu0 %v1633
    %2588 = vmatpush1.msra.mxu0 %v1632
    %2589 = vmatprep.subr.mxu0 %v1635
    %2590 = vmatpush1.msra.mxu0 %v1634
    %2591 = vmatprep.subr.mxu0 %v1637
    %2592 = vmatpush1.msra.mxu0 %v1636
    %2593 = vmatprep.subr.mxu0 %v1639
    %2594 = vmatpush1.msra.mxu0 %v1638
    %2595 = vmatprep.subr.mxu0 %v1641
    %2596 = vmatpush1.msra.mxu0 %v1640
    %2597 = vmatprep.subr.mxu0 %v1643
    %2598 = vmatpush1.msra.mxu0 %v1642
    %2599 = vmatprep.subr.mxu0 %v1645
    %2600 = vmatpush1.msra.mxu0 %v1644
    %2601 = vmatprep.subr.mxu0 0.0
    %2602 = vmatpush1.msra.mxu0 0.0
    %2603 = vmatprep.subr.mxu0 0.0
    %2604 = vmatpush1.msra.mxu0 0.0
    %2605 = vmatprep.subr.mxu0 0.0
    %2606 = vmatpush1.msra.mxu0 0.0
    %2607 = vmatprep.subr.mxu0 0.0
    %2608 = vmatpush1.msra.mxu0 0.0
    %2609 = vmatprep.subr.mxu0 0.0
    %2610 = vmatpush1.msra.mxu0 0.0
    %2611 = vmatprep.subr.mxu0 0.0
    %2612 = vmatpush1.msra.mxu0 0.0
    %2613 = vmatprep.subr.mxu0 0.0
    %2614 = vmatpush1.msra.mxu0 0.0
    %2615 = vmatprep.subr.mxu0 0.0
    %2616 = vmatpush1.msra.mxu0 0.0
    %2617 = vmatprep.subr.mxu0 0.0
    %2618 = vmatpush1.msra.mxu0 0.0
    %2619 = vmatprep.subr.mxu0 0.0
    %2620 = vmatpush1.msra.mxu0 0.0
    %2621 = vmatprep.subr.mxu0 0.0
    %2622 = vmatpush1.msra.mxu0 0.0
    %2623 = vmatprep.subr.mxu0 0.0
    %2624 = vmatpush1.msra.mxu0 0.0
    %2625 = vmatprep.subr.mxu0 0.0
    %2626 = vmatpush1.msra.mxu0 0.0
    %2627 = vmatprep.subr.mxu0 0.0
    %2628 = vmatpush1.msra.mxu0 0.0
    %2629 = vmatprep.subr.mxu0 0.0
    %2630 = vmatpush1.msra.mxu0 0.0
    %2631 = vmatprep.subr.mxu0 0.0
    %2632 = vmatpush1.msra.mxu0 0.0
    %2633 = vmatprep.subr.mxu0 0.0
    %2634 = vmatpush1.msra.mxu0 0.0
    %2635 = vmatprep.subr.mxu0 0.0
    %2636 = vmatpush1.msra.mxu0 0.0
    %2637 = vmatprep.subr.mxu0 0.0
    %2638 = vmatpush1.msra.mxu0 0.0
    %2639 = vmatprep.subr.mxu0 0.0
    %2640 = vmatpush1.msra.mxu0 0.0
    %2641 = vmatprep.subr.mxu0 0.0
    %2642 = vmatpush1.msra.mxu0 0.0
    %2643 = vmatprep.subr.mxu0 0.0
    %2644 = vmatpush1.msra.mxu0 0.0
    %2645 = vmatprep.subr.mxu0 0.0
    %2646 = vmatpush1.msra.mxu0 0.0
    %2647 = vmatprep.subr.mxu0 0.0
    %2648 = vmatpush1.msra.mxu0 0.0
    %2649 = vmatprep.mubr.f32.mxu0 0.0
    %2650 = vmatmul.mubr.f32.gmra.mrb[0].mxu0 %v2583
    %v2651 = vpop.f32.mrb[0].mxu0
    %v2652 = vadd.f32 %v1655, %v2651
    %v2653 = vpop.f32.mrb[0].mxu0
    %v2654 = vadd.f32 %v1659, %v2653
    %2655 = vdwg.mxu0
    %v2656 = vadd.f32 %v2580, %v2652
    %v2657 = vxor.u32 %v2656, 2147483648
    %v2658 = vmul.f32 %v2657, 1.442695
    %v2659 = vpow.pop %v2658
    %v2660 = vadd.f32 %v2659, 1.0
    %v2661 = vrcp.pop %v2660
    %v2662 = vmul.f32 1.0, %v2661
    %2664 = vrot.lane.b32.xlu0 %v2652, 64
    %v2665 = vpop.permute.xlu0 %2664
    %v2667 = vmul.f32 %v2662, %v2665
    %2669 = vrot.lane.b32.xlu0 %v2667, 64
    %v2670 = vpop.permute.xlu0 %2669
    %v2672 = vadd.f32 %v2580, %v2670
    %v2673 = vtanh.pop %v2672
    %v2674 = vsub.f32 1.0, %v2662
    %2676 = vrot.lane.b32.xlu0 %v2673, 96
    %v2677 = vpop.permute.xlu0 %2676
    %v2679 = vmul.f32 %v2674, %v2677
    %2680 = vrot.lane.b32.xlu0 %v2581, 32
    %v2681 = vpop.permute.xlu0 %2680
    %v2683 = vmul.f32 %v2662, %v2681
    %v2684 = vadd.f32 %v2679, %v2683
    %2686 = vrot.lane.b32.xlu0 %v2684, 96
    %v2687 = vpop.permute.xlu0 %2686
    %v2688 = vsel %vm1406, %v2687, 0
    %2690 = vmatprep.subr.mxu0 0.0
    %2691 = vmatpush1.msra.mxu0 %v1646
    %2692 = vmatprep.subr.mxu0 0.0
    %2693 = vmatpush1.msra.mxu0 %v1647
    %2694 = vmatprep.subr.mxu0 0.0
    %2695 = vmatpush1.msra.mxu0 %v1648
    %2696 = vmatprep.subr.mxu0 0.0
    %2697 = vmatpush1.msra.mxu0 %v1649
    %2698 = vmatprep.subr.mxu0 0.0
    %2699 = vmatpush1.msra.mxu0 0.0
    %2700 = vmatprep.subr.mxu0 0.0
    %2701 = vmatpush1.msra.mxu0 0.0
    %2702 = vmatprep.subr.mxu0 0.0
    %2703 = vmatpush1.msra.mxu0 0.0
    %2704 = vmatprep.subr.mxu0 0.0
    %2705 = vmatpush1.msra.mxu0 0.0
    %2706 = vmatprep.subr.mxu0 0.0
    %2707 = vmatpush1.msra.mxu0 0.0
    %2708 = vmatprep.subr.mxu0 0.0
    %2709 = vmatpush1.msra.mxu0 0.0
    %2710 = vmatprep.subr.mxu0 0.0
    %2711 = vmatpush1.msra.mxu0 0.0
    %2712 = vmatprep.subr.mxu0 0.0
    %2713 = vmatpush1.msra.mxu0 0.0
    %2714 = vmatprep.subr.mxu0 0.0
    %2715 = vmatpush1.msra.mxu0 0.0
    %2716 = vmatprep.subr.mxu0 0.0
    %2717 = vmatpush1.msra.mxu0 0.0
    %2718 = vmatprep.subr.mxu0 0.0
    %2719 = vmatpush1.msra.mxu0 0.0
    %2720 = vmatprep.subr.mxu0 0.0
    %2721 = vmatpush1.msra.mxu0 0.0
    %2722 = vmatprep.subr.mxu0 0.0
    %2723 = vmatpush1.msra.mxu0 0.0
    %2724 = vmatprep.subr.mxu0 0.0
    %2725 = vmatpush1.msra.mxu0 0.0
    %2726 = vmatprep.subr.mxu0 0.0
    %2727 = vmatpush1.msra.mxu0 0.0
    %2728 = vmatprep.subr.mxu0 0.0
    %2729 = vmatpush1.msra.mxu0 0.0
    %2730 = vmatprep.subr.mxu0 0.0
    %2731 = vmatpush1.msra.mxu0 0.0
    %2732 = vmatprep.subr.mxu0 0.0
    %2733 = vmatpush1.msra.mxu0 0.0
    %2734 = vmatprep.subr.mxu0 0.0
    %2735 = vmatpush1.msra.mxu0 0.0
    %2736 = vmatprep.subr.mxu0 0.0
    %2737 = vmatpush1.msra.mxu0 0.0
    %2738 = vmatprep.subr.mxu0 0.0
    %2739 = vmatpush1.msra.mxu0 0.0
    %2740 = vmatprep.subr.mxu0 0.0
    %2741 = vmatpush1.msra.mxu0 0.0
    %2742 = vmatprep.subr.mxu0 0.0
    %2743 = vmatpush1.msra.mxu0 0.0
    %2744 = vmatprep.subr.mxu0 0.0
    %2745 = vmatpush1.msra.mxu0 0.0
    %2746 = vmatprep.subr.mxu0 0.0
    %2747 = vmatpush1.msra.mxu0 0.0
    %2748 = vmatprep.subr.mxu0 0.0
    %2749 = vmatpush1.msra.mxu0 0.0
    %2750 = vmatprep.subr.mxu0 0.0
    %2751 = vmatpush1.msra.mxu0 0.0
    %2752 = vmatprep.subr.mxu0 0.0
    %2753 = vmatpush1.msra.mxu0 0.0
    %2754 = vmatprep.mubr.f32.mxu0 0.0
    %2755 = vmatmul.mubr.f32.gmra.mrb[0].mxu0 %v2688
    %v2756 = vpop.f32.mrb[0].mxu0
    %v2757 = vadd.f32 %v1667, %v2756
    %v2758 = vpop.f32.mrb[0].mxu0
    %2759 = vdwg.mxu0
    %2760 = vrot.lane.b32.xlu0 %v2652, 32
    %v2761 = vpop.permute.xlu0 %2760
    %v2763 = vadd.f32 %v2757, %v2761
    %v2764 = vxor.u32 %v2763, 2147483648
    %v2765 = vmul.f32 %v2764, 1.442695
    %v2766 = vpow.pop %v2765
    %v2767 = vadd.f32 %v2766, 1.0
    %v2768 = vrcp.pop %v2767
    %v2769 = vmul.f32 1.0, %v2768
    %2771 = vrot.lane.b32.xlu0 %v2654, 32
    %v2772 = vpop.permute.xlu0 %2771
    %v2774 = vadd.f32 %v2757, %v2772
    %v2775 = vxor.u32 %v2774, 2147483648
    %v2776 = vmul.f32 %v2775, 1.442695
    %v2777 = vpow.pop %v2776
    %v2778 = vadd.f32 %v2777, 1.0
    %v2779 = vrcp.pop %v2778
    %v2780 = vmul.f32 1.0, %v2779
    %2781 = vrot.lane.b32.xlu0 %v2654, 96
    %v2782 = vpop.permute.xlu0 %2781
    %v2784 = vmul.f32 %v2769, %v2782
    %2786 = vrot.lane.b32.xlu0 %v2784, 64
    %v2787 = vpop.permute.xlu0 %2786
    %v2789 = vadd.f32 %v2757, %v2787
    %v2790 = vtanh.pop %v2789
    %v2791 = vsub.f32 1.0, %v2780
    %2793 = vrot.lane.b32.xlu0 %v2790, 96
    %v2794 = vpop.permute.xlu0 %2793
    %v2796 = vmul.f32 %v2791, %v2794
    %v2797 = vmul.f32 %v2780, %v2581
    %v2798 = vadd.f32 %v2796, %v2797
    %v2800 = vsel %vm1406, %v2687, %v2798
    %2801 = vst.msk [vmem:[#allocation4] sm:$0xff] %vm1670, %v2800
  $region81: #{cpc_forward.1} parent=0 // pred_fallthru
    _
  %p2802 = scmp.ge.s32.totalorder %s54, 5
  // Predicated region
  $region82: #{cpc_forward.1} parent=0 // pred_check
    %p2803 = pneg %p2802
  $region83: #{cpc_forward.1} parent=0 // pred_check_branch
    %2805 = sbr.rel (%p2803) target = $region85
  $region84: #{cpc_forward.1} parent=0 // pred_region
    %v2806 = vld [vmem:[#allocation3 + $0x28] sm:$0xff]
    %v2807 = vld [vmem:[#allocation4] sm:$0xff]
    %v2809 = vsel %vm1670, %v2807, 0
    %2811 = vmatprep.subr.mxu0 %v1631
    %2812 = vmatpush1.msra.mxu0 %v1630
    %2813 = vmatprep.subr.mxu0 %v1633
    %2814 = vmatpush1.msra.mxu0 %v1632
    %2815 = vmatprep.subr.mxu0 %v1635
    %2816 = vmatpush1.msra.mxu0 %v1634
    %2817 = vmatprep.subr.mxu0 %v1637
    %2818 = vmatpush1.msra.mxu0 %v1636
    %2819 = vmatprep.subr.mxu0 %v1639
    %2820 = vmatpush1.msra.mxu0 %v1638
    %2821 = vmatprep.subr.mxu0 %v1641
    %2822 = vmatpush1.msra.mxu0 %v1640
    %2823 = vmatprep.subr.mxu0 %v1643
    %2824 = vmatpush1.msra.mxu0 %v1642
    %2825 = vmatprep.subr.mxu0 %v1645
    %2826 = vmatpush1.msra.mxu0 %v1644
    %2827 = vmatprep.subr.mxu0 0.0
    %2828 = vmatpush1.msra.mxu0 0.0
    %2829 = vmatprep.subr.mxu0 0.0
    %2830 = vmatpush1.msra.mxu0 0.0
    %2831 = vmatprep.subr.mxu0 0.0
    %2832 = vmatpush1.msra.mxu0 0.0
    %2833 = vmatprep.subr.mxu0 0.0
    %2834 = vmatpush1.msra.mxu0 0.0
    %2835 = vmatprep.subr.mxu0 0.0
    %2836 = vmatpush1.msra.mxu0 0.0
    %2837 = vmatprep.subr.mxu0 0.0
    %2838 = vmatpush1.msra.mxu0 0.0
    %2839 = vmatprep.subr.mxu0 0.0
    %2840 = vmatpush1.msra.mxu0 0.0
    %2841 = vmatprep.subr.mxu0 0.0
    %2842 = vmatpush1.msra.mxu0 0.0
    %2843 = vmatprep.subr.mxu0 0.0
    %2844 = vmatpush1.msra.mxu0 0.0
    %2845 = vmatprep.subr.mxu0 0.0
    %2846 = vmatpush1.msra.mxu0 0.0
    %2847 = vmatprep.subr.mxu0 0.0
    %2848 = vmatpush1.msra.mxu0 0.0
    %2849 = vmatprep.subr.mxu0 0.0
    %2850 = vmatpush1.msra.mxu0 0.0
    %2851 = vmatprep.subr.mxu0 0.0
    %2852 = vmatpush1.msra.mxu0 0.0
    %2853 = vmatprep.subr.mxu0 0.0
    %2854 = vmatpush1.msra.mxu0 0.0
    %2855 = vmatprep.subr.mxu0 0.0
    %2856 = vmatpush1.msra.mxu0 0.0
    %2857 = vmatprep.subr.mxu0 0.0
    %2858 = vmatpush1.msra.mxu0 0.0
    %2859 = vmatprep.subr.mxu0 0.0
    %2860 = vmatpush1.msra.mxu0 0.0
    %2861 = vmatprep.subr.mxu0 0.0
    %2862 = vmatpush1.msra.mxu0 0.0
    %2863 = vmatprep.subr.mxu0 0.0
    %2864 = vmatpush1.msra.mxu0 0.0
    %2865 = vmatprep.subr.mxu0 0.0
    %2866 = vmatpush1.msra.mxu0 0.0
    %2867 = vmatprep.subr.mxu0 0.0
    %2868 = vmatpush1.msra.mxu0 0.0
    %2869 = vmatprep.subr.mxu0 0.0
    %2870 = vmatpush1.msra.mxu0 0.0
    %2871 = vmatprep.subr.mxu0 0.0
    %2872 = vmatpush1.msra.mxu0 0.0
    %2873 = vmatprep.subr.mxu0 0.0
    %2874 = vmatpush1.msra.mxu0 0.0
    %2875 = vmatprep.mubr.f32.mxu0 0.0
    %2876 = vmatmul.mubr.f32.gmra.mrb[0].mxu0 %v2809
    %v2877 = vpop.f32.mrb[0].mxu0
    %v2878 = vadd.f32 %v1655, %v2877
    %v2879 = vpop.f32.mrb[0].mxu0
    %v2880 = vadd.f32 %v1659, %v2879
    %2881 = vdwg.mxu0
    %v2882 = vadd.f32 %v2806, %v2878
    %v2883 = vxor.u32 %v2882, 2147483648
    %v2884 = vmul.f32 %v2883, 1.442695
    %v2885 = vpow.pop %v2884
    %v2886 = vadd.f32 %v2885, 1.0
    %v2887 = vrcp.pop %v2886
    %v2888 = vmul.f32 1.0, %v2887
    %2890 = vrot.lane.b32.xlu0 %v2878, 64
    %v2891 = vpop.permute.xlu0 %2890
    %v2893 = vmul.f32 %v2888, %v2891
    %2895 = vrot.lane.b32.xlu0 %v2893, 64
    %v2896 = vpop.permute.xlu0 %2895
    %v2898 = vadd.f32 %v2806, %v2896
    %v2899 = vtanh.pop %v2898
    %v2900 = vsub.f32 1.0, %v2888
    %2902 = vrot.lane.b32.xlu0 %v2899, 96
    %v2903 = vpop.permute.xlu0 %2902
    %v2905 = vmul.f32 %v2900, %v2903
    %2906 = vrot.lane.b32.xlu0 %v2807, 32
    %v2907 = vpop.permute.xlu0 %2906
    %v2909 = vmul.f32 %v2888, %v2907
    %v2910 = vadd.f32 %v2905, %v2909
    %2912 = vrot.lane.b32.xlu0 %v2910, 96
    %v2913 = vpop.permute.xlu0 %2912
    %v2914 = vsel %vm1406, %v2913, 0
    %2916 = vmatprep.subr.mxu0 0.0
    %2917 = vmatpush1.msra.mxu0 %v1646
    %2918 = vmatprep.subr.mxu0 0.0
    %2919 = vmatpush1.msra.mxu0 %v1647
    %2920 = vmatprep.subr.mxu0 0.0
    %2921 = vmatpush1.msra.mxu0 %v1648
    %2922 = vmatprep.subr.mxu0 0.0
    %2923 = vmatpush1.msra.mxu0 %v1649
    %2924 = vmatprep.subr.mxu0 0.0
    %2925 = vmatpush1.msra.mxu0 0.0
    %2926 = vmatprep.subr.mxu0 0.0
    %2927 = vmatpush1.msra.mxu0 0.0
    %2928 = vmatprep.subr.mxu0 0.0
    %2929 = vmatpush1.msra.mxu0 0.0
    %2930 = vmatprep.subr.mxu0 0.0
    %2931 = vmatpush1.msra.mxu0 0.0
    %2932 = vmatprep.subr.mxu0 0.0
    %2933 = vmatpush1.msra.mxu0 0.0
    %2934 = vmatprep.subr.mxu0 0.0
    %2935 = vmatpush1.msra.mxu0 0.0
    %2936 = vmatprep.subr.mxu0 0.0
    %2937 = vmatpush1.msra.mxu0 0.0
    %2938 = vmatprep.subr.mxu0 0.0
    %2939 = vmatpush1.msra.mxu0 0.0
    %2940 = vmatprep.subr.mxu0 0.0
    %2941 = vmatpush1.msra.mxu0 0.0
    %2942 = vmatprep.subr.mxu0 0.0
    %2943 = vmatpush1.msra.mxu0 0.0
    %2944 = vmatprep.subr.mxu0 0.0
    %2945 = vmatpush1.msra.mxu0 0.0
    %2946 = vmatprep.subr.mxu0 0.0
    %2947 = vmatpush1.msra.mxu0 0.0
    %2948 = vmatprep.subr.mxu0 0.0
    %2949 = vmatpush1.msra.mxu0 0.0
    %2950 = vmatprep.subr.mxu0 0.0
    %2951 = vmatpush1.msra.mxu0 0.0
    %2952 = vmatprep.subr.mxu0 0.0
    %2953 = vmatpush1.msra.mxu0 0.0
    %2954 = vmatprep.subr.mxu0 0.0
    %2955 = vmatpush1.msra.mxu0 0.0
    %2956 = vmatprep.subr.mxu0 0.0
    %2957 = vmatpush1.msra.mxu0 0.0
    %2958 = vmatprep.subr.mxu0 0.0
    %2959 = vmatpush1.msra.mxu0 0.0
    %2960 = vmatprep.subr.mxu0 0.0
    %2961 = vmatpush1.msra.mxu0 0.0
    %2962 = vmatprep.subr.mxu0 0.0
    %2963 = vmatpush1.msra.mxu0 0.0
    %2964 = vmatprep.subr.mxu0 0.0
    %2965 = vmatpush1.msra.mxu0 0.0
    %2966 = vmatprep.subr.mxu0 0.0
    %2967 = vmatpush1.msra.mxu0 0.0
    %2968 = vmatprep.subr.mxu0 0.0
    %2969 = vmatpush1.msra.mxu0 0.0
    %2970 = vmatprep.subr.mxu0 0.0
    %2971 = vmatpush1.msra.mxu0 0.0
    %2972 = vmatprep.subr.mxu0 0.0
    %2973 = vmatpush1.msra.mxu0 0.0
    %2974 = vmatprep.subr.mxu0 0.0
    %2975 = vmatpush1.msra.mxu0 0.0
    %2976 = vmatprep.subr.mxu0 0.0
    %2977 = vmatpush1.msra.mxu0 0.0
    %2978 = vmatprep.subr.mxu0 0.0
    %2979 = vmatpush1.msra.mxu0 0.0
    %2980 = vmatprep.mubr.f32.mxu0 0.0
    %2981 = vmatmul.mubr.f32.gmra.mrb[0].mxu0 %v2914
    %v2982 = vpop.f32.mrb[0].mxu0
    %v2983 = vadd.f32 %v1667, %v2982
    %v2984 = vpop.f32.mrb[0].mxu0
    %2985 = vdwg.mxu0
    %2986 = vrot.lane.b32.xlu0 %v2878, 32
    %v2987 = vpop.permute.xlu0 %2986
    %v2989 = vadd.f32 %v2983, %v2987
    %v2990 = vxor.u32 %v2989, 2147483648
    %v2991 = vmul.f32 %v2990, 1.442695
    %v2992 = vpow.pop %v2991
    %v2993 = vadd.f32 %v2992, 1.0
    %v2994 = vrcp.pop %v2993
    %v2995 = vmul.f32 1.0, %v2994
    %2997 = vrot.lane.b32.xlu0 %v2880, 32
    %v2998 = vpop.permute.xlu0 %2997
    %v3000 = vadd.f32 %v2983, %v2998
    %v3001 = vxor.u32 %v3000, 2147483648
    %v3002 = vmul.f32 %v3001, 1.442695
    %v3003 = vpow.pop %v3002
    %v3004 = vadd.f32 %v3003, 1.0
    %v3005 = vrcp.pop %v3004
    %v3006 = vmul.f32 1.0, %v3005
    %3007 = vrot.lane.b32.xlu0 %v2880, 96
    %v3008 = vpop.permute.xlu0 %3007
    %v3010 = vmul.f32 %v2995, %v3008
    %3012 = vrot.lane.b32.xlu0 %v3010, 64
    %v3013 = vpop.permute.xlu0 %3012
    %v3015 = vadd.f32 %v2983, %v3013
    %v3016 = vtanh.pop %v3015
    %v3017 = vsub.f32 1.0, %v3006
    %3019 = vrot.lane.b32.xlu0 %v3016, 96
    %v3020 = vpop.permute.xlu0 %3019
    %v3022 = vmul.f32 %v3017, %v3020
    %v3023 = vmul.f32 %v3006, %v2807
    %v3024 = vadd.f32 %v3022, %v3023
    %v3026 = vsel %vm1406, %v2913, %v3024
    %3027 = vst.msk [vmem:[#allocation4] sm:$0xff] %vm1670, %v3026
  $region85: #{cpc_forward.1} parent=0 // pred_fallthru
    _
  %p3028 = scmp.ge.s32.totalorder %s54, 6
  // Predicated region
  $region86: #{cpc_forward.1} parent=0 // pred_check
    %p3029 = pneg %p3028
  $region87: #{cpc_forward.1} parent=0 // pred_check_branch
    %3031 = sbr.rel (%p3029) target = $region89
  $region88: #{cpc_forward.1} parent=0 // pred_region
    %v3032 = vld [vmem:[#allocation3 + $0x30] sm:$0xff]
    %v3033 = vld [vmem:[#allocation4] sm:$0xff]
    %v3035 = vsel %vm1670, %v3033, 0
    %3037 = vmatprep.subr.mxu0 %v1631
    %3038 = vmatpush1.msra.mxu0 %v1630
    %3039 = vmatprep.subr.mxu0 %v1633
    %3040 = vmatpush1.msra.mxu0 %v1632
    %3041 = vmatprep.subr.mxu0 %v1635
    %3042 = vmatpush1.msra.mxu0 %v1634
    %3043 = vmatprep.subr.mxu0 %v1637
    %3044 = vmatpush1.msra.mxu0 %v1636
    %3045 = vmatprep.subr.mxu0 %v1639
    %3046 = vmatpush1.msra.mxu0 %v1638
    %3047 = vmatprep.subr.mxu0 %v1641
    %3048 = vmatpush1.msra.mxu0 %v1640
    %3049 = vmatprep.subr.mxu0 %v1643
    %3050 = vmatpush1.msra.mxu0 %v1642
    %3051 = vmatprep.subr.mxu0 %v1645
    %3052 = vmatpush1.msra.mxu0 %v1644
    %3053 = vmatprep.subr.mxu0 0.0
    %3054 = vmatpush1.msra.mxu0 0.0
    %3055 = vmatprep.subr.mxu0 0.0
    %3056 = vmatpush1.msra.mxu0 0.0
    %3057 = vmatprep.subr.mxu0 0.0
    %3058 = vmatpush1.msra.mxu0 0.0
    %3059 = vmatprep.subr.mxu0 0.0
    %3060 = vmatpush1.msra.mxu0 0.0
    %3061 = vmatprep.subr.mxu0 0.0
    %3062 = vmatpush1.msra.mxu0 0.0
    %3063 = vmatprep.subr.mxu0 0.0
    %3064 = vmatpush1.msra.mxu0 0.0
    %3065 = vmatprep.subr.mxu0 0.0
    %3066 = vmatpush1.msra.mxu0 0.0
    %3067 = vmatprep.subr.mxu0 0.0
    %3068 = vmatpush1.msra.mxu0 0.0
    %3069 = vmatprep.subr.mxu0 0.0
    %3070 = vmatpush1.msra.mxu0 0.0
    %3071 = vmatprep.subr.mxu0 0.0
    %3072 = vmatpush1.msra.mxu0 0.0
    %3073 = vmatprep.subr.mxu0 0.0
    %3074 = vmatpush1.msra.mxu0 0.0
    %3075 = vmatprep.subr.mxu0 0.0
    %3076 = vmatpush1.msra.mxu0 0.0
    %3077 = vmatprep.subr.mxu0 0.0
    %3078 = vmatpush1.msra.mxu0 0.0
    %3079 = vmatprep.subr.mxu0 0.0
    %3080 = vmatpush1.msra.mxu0 0.0
    %3081 = vmatprep.subr.mxu0 0.0
    %3082 = vmatpush1.msra.mxu0 0.0
    %3083 = vmatprep.subr.mxu0 0.0
    %3084 = vmatpush1.msra.mxu0 0.0
    %3085 = vmatprep.subr.mxu0 0.0
    %3086 = vmatpush1.msra.mxu0 0.0
    %3087 = vmatprep.subr.mxu0 0.0
    %3088 = vmatpush1.msra.mxu0 0.0
    %3089 = vmatprep.subr.mxu0 0.0
    %3090 = vmatpush1.msra.mxu0 0.0
    %3091 = vmatprep.subr.mxu0 0.0
    %3092 = vmatpush1.msra.mxu0 0.0
    %3093 = vmatprep.subr.mxu0 0.0
    %3094 = vmatpush1.msra.mxu0 0.0
    %3095 = vmatprep.subr.mxu0 0.0
    %3096 = vmatpush1.msra.mxu0 0.0
    %3097 = vmatprep.subr.mxu0 0.0
    %3098 = vmatpush1.msra.mxu0 0.0
    %3099 = vmatprep.subr.mxu0 0.0
    %3100 = vmatpush1.msra.mxu0 0.0
    %3101 = vmatprep.mubr.f32.mxu0 0.0
    %3102 = vmatmul.mubr.f32.gmra.mrb[0].mxu0 %v3035
    %v3103 = vpop.f32.mrb[0].mxu0
    %v3104 = vadd.f32 %v1655, %v3103
    %v3105 = vpop.f32.mrb[0].mxu0
    %v3106 = vadd.f32 %v1659, %v3105
    %3107 = vdwg.mxu0
    %v3108 = vadd.f32 %v3032, %v3104
    %v3109 = vxor.u32 %v3108, 2147483648
    %v3110 = vmul.f32 %v3109, 1.442695
    %v3111 = vpow.pop %v3110
    %v3112 = vadd.f32 %v3111, 1.0
    %v3113 = vrcp.pop %v3112
    %v3114 = vmul.f32 1.0, %v3113
    %3116 = vrot.lane.b32.xlu0 %v3104, 64
    %v3117 = vpop.permute.xlu0 %3116
    %v3119 = vmul.f32 %v3114, %v3117
    %3121 = vrot.lane.b32.xlu0 %v3119, 64
    %v3122 = vpop.permute.xlu0 %3121
    %v3124 = vadd.f32 %v3032, %v3122
    %v3125 = vtanh.pop %v3124
    %v3126 = vsub.f32 1.0, %v3114
    %3128 = vrot.lane.b32.xlu0 %v3125, 96
    %v3129 = vpop.permute.xlu0 %3128
    %v3131 = vmul.f32 %v3126, %v3129
    %3132 = vrot.lane.b32.xlu0 %v3033, 32
    %v3133 = vpop.permute.xlu0 %3132
    %v3135 = vmul.f32 %v3114, %v3133
    %v3136 = vadd.f32 %v3131, %v3135
    %3138 = vrot.lane.b32.xlu0 %v3136, 96
    %v3139 = vpop.permute.xlu0 %3138
    %v3140 = vsel %vm1406, %v3139, 0
    %3142 = vmatprep.subr.mxu0 0.0
    %3143 = vmatpush1.msra.mxu0 %v1646
    %3144 = vmatprep.subr.mxu0 0.0
    %3145 = vmatpush1.msra.mxu0 %v1647
    %3146 = vmatprep.subr.mxu0 0.0
    %3147 = vmatpush1.msra.mxu0 %v1648
    %3148 = vmatprep.subr.mxu0 0.0
    %3149 = vmatpush1.msra.mxu0 %v1649
    %3150 = vmatprep.subr.mxu0 0.0
    %3151 = vmatpush1.msra.mxu0 0.0
    %3152 = vmatprep.subr.mxu0 0.0
    %3153 = vmatpush1.msra.mxu0 0.0
    %3154 = vmatprep.subr.mxu0 0.0
    %3155 = vmatpush1.msra.mxu0 0.0
    %3156 = vmatprep.subr.mxu0 0.0
    %3157 = vmatpush1.msra.mxu0 0.0
    %3158 = vmatprep.subr.mxu0 0.0
    %3159 = vmatpush1.msra.mxu0 0.0
    %3160 = vmatprep.subr.mxu0 0.0
    %3161 = vmatpush1.msra.mxu0 0.0
    %3162 = vmatprep.subr.mxu0 0.0
    %3163 = vmatpush1.msra.mxu0 0.0
    %3164 = vmatprep.subr.mxu0 0.0
    %3165 = vmatpush1.msra.mxu0 0.0
    %3166 = vmatprep.subr.mxu0 0.0
    %3167 = vmatpush1.msra.mxu0 0.0
    %3168 = vmatprep.subr.mxu0 0.0
    %3169 = vmatpush1.msra.mxu0 0.0
    %3170 = vmatprep.subr.mxu0 0.0
    %3171 = vmatpush1.msra.mxu0 0.0
    %3172 = vmatprep.subr.mxu0 0.0
    %3173 = vmatpush1.msra.mxu0 0.0
    %3174 = vmatprep.subr.mxu0 0.0
    %3175 = vmatpush1.msra.mxu0 0.0
    %3176 = vmatprep.subr.mxu0 0.0
    %3177 = vmatpush1.msra.mxu0 0.0
    %3178 = vmatprep.subr.mxu0 0.0
    %3179 = vmatpush1.msra.mxu0 0.0
    %3180 = vmatprep.subr.mxu0 0.0
    %3181 = vmatpush1.msra.mxu0 0.0
    %3182 = vmatprep.subr.mxu0 0.0
    %3183 = vmatpush1.msra.mxu0 0.0
    %3184 = vmatprep.subr.mxu0 0.0
    %3185 = vmatpush1.msra.mxu0 0.0
    %3186 = vmatprep.subr.mxu0 0.0
    %3187 = vmatpush1.msra.mxu0 0.0
    %3188 = vmatprep.subr.mxu0 0.0
    %3189 = vmatpush1.msra.mxu0 0.0
    %3190 = vmatprep.subr.mxu0 0.0
    %3191 = vmatpush1.msra.mxu0 0.0
    %3192 = vmatprep.subr.mxu0 0.0
    %3193 = vmatpush1.msra.mxu0 0.0
    %3194 = vmatprep.subr.mxu0 0.0
    %3195 = vmatpush1.msra.mxu0 0.0
    %3196 = vmatprep.subr.mxu0 0.0
    %3197 = vmatpush1.msra.mxu0 0.0
    %3198 = vmatprep.subr.mxu0 0.0
    %3199 = vmatpush1.msra.mxu0 0.0
    %3200 = vmatprep.subr.mxu0 0.0
    %3201 = vmatpush1.msra.mxu0 0.0
    %3202 = vmatprep.subr.mxu0 0.0
    %3203 = vmatpush1.msra.mxu0 0.0
    %3204 = vmatprep.subr.mxu0 0.0
    %3205 = vmatpush1.msra.mxu0 0.0
    %3206 = vmatprep.mubr.f32.mxu0 0.0
    %3207 = vmatmul.mubr.f32.gmra.mrb[0].mxu0 %v3140
    %v3208 = vpop.f32.mrb[0].mxu0
    %v3209 = vadd.f32 %v1667, %v3208
    %v3210 = vpop.f32.mrb[0].mxu0
    %3211 = vdwg.mxu0
    %3212 = vrot.lane.b32.xlu0 %v3104, 32
    %v3213 = vpop.permute.xlu0 %3212
    %v3215 = vadd.f32 %v3209, %v3213
    %v3216 = vxor.u32 %v3215, 2147483648
    %v3217 = vmul.f32 %v3216, 1.442695
    %v3218 = vpow.pop %v3217
    %v3219 = vadd.f32 %v3218, 1.0
    %v3220 = vrcp.pop %v3219
    %v3221 = vmul.f32 1.0, %v3220
    %3223 = vrot.lane.b32.xlu0 %v3106, 32
    %v3224 = vpop.permute.xlu0 %3223
    %v3226 = vadd.f32 %v3209, %v3224
    %v3227 = vxor.u32 %v3226, 2147483648
    %v3228 = vmul.f32 %v3227, 1.442695
    %v3229 = vpow.pop %v3228
    %v3230 = vadd.f32 %v3229, 1.0
    %v3231 = vrcp.pop %v3230
    %v3232 = vmul.f32 1.0, %v3231
    %3233 = vrot.lane.b32.xlu0 %v3106, 96
    %v3234 = vpop.permute.xlu0 %3233
    %v3236 = vmul.f32 %v3221, %v3234
    %3238 = vrot.lane.b32.xlu0 %v3236, 64
    %v3239 = vpop.permute.xlu0 %3238
    %v3241 = vadd.f32 %v3209, %v3239
    %v3242 = vtanh.pop %v3241
    %v3243 = vsub.f32 1.0, %v3232
    %3245 = vrot.lane.b32.xlu0 %v3242, 96
    %v3246 = vpop.permute.xlu0 %3245
    %v3248 = vmul.f32 %v3243, %v3246
    %v3249 = vmul.f32 %v3232, %v3033
    %v3250 = vadd.f32 %v3248, %v3249
    %v3252 = vsel %vm1406, %v3139, %v3250
    %3253 = vst.msk [vmem:[#allocation4] sm:$0xff] %vm1670, %v3252
  $region89: #{cpc_forward.1} parent=0 // pred_fallthru
    _
  %p3254 = scmp.ge.s32.totalorder %s54, 7
  // Predicated region
  $region90: #{cpc_forward.1} parent=0 // pred_check
    %p3255 = pneg %p3254
  $region91: #{cpc_forward.1} parent=0 // pred_check_branch
    %3257 = sbr.rel (%p3255) target = $region93
  $region92: #{cpc_forward.1} parent=0 // pred_region
    %v3258 = vld [vmem:[#allocation3 + $0x38] sm:$0xff]
    %v3259 = vld [vmem:[#allocation4] sm:$0xff]
    %v3261 = vsel %vm1670, %v3259, 0
    %3263 = vmatprep.subr.mxu0 %v1631
    %3264 = vmatpush1.msra.mxu0 %v1630
    %3265 = vmatprep.subr.mxu0 %v1633
    %3266 = vmatpush1.msra.mxu0 %v1632
    %3267 = vmatprep.subr.mxu0 %v1635
    %3268 = vmatpush1.msra.mxu0 %v1634
    %3269 = vmatprep.subr.mxu0 %v1637
    %3270 = vmatpush1.msra.mxu0 %v1636
    %3271 = vmatprep.subr.mxu0 %v1639
    %3272 = vmatpush1.msra.mxu0 %v1638
    %3273 = vmatprep.subr.mxu0 %v1641
    %3274 = vmatpush1.msra.mxu0 %v1640
    %3275 = vmatprep.subr.mxu0 %v1643
    %3276 = vmatpush1.msra.mxu0 %v1642
    %3277 = vmatprep.subr.mxu0 %v1645
    %3278 = vmatpush1.msra.mxu0 %v1644
    %3279 = vmatprep.subr.mxu0 0.0
    %3280 = vmatpush1.msra.mxu0 0.0
    %3281 = vmatprep.subr.mxu0 0.0
    %3282 = vmatpush1.msra.mxu0 0.0
    %3283 = vmatprep.subr.mxu0 0.0
    %3284 = vmatpush1.msra.mxu0 0.0
    %3285 = vmatprep.subr.mxu0 0.0
    %3286 = vmatpush1.msra.mxu0 0.0
    %3287 = vmatprep.subr.mxu0 0.0
    %3288 = vmatpush1.msra.mxu0 0.0
    %3289 = vmatprep.subr.mxu0 0.0
    %3290 = vmatpush1.msra.mxu0 0.0
    %3291 = vmatprep.subr.mxu0 0.0
    %3292 = vmatpush1.msra.mxu0 0.0
    %3293 = vmatprep.subr.mxu0 0.0
    %3294 = vmatpush1.msra.mxu0 0.0
    %3295 = vmatprep.subr.mxu0 0.0
    %3296 = vmatpush1.msra.mxu0 0.0
    %3297 = vmatprep.subr.mxu0 0.0
    %3298 = vmatpush1.msra.mxu0 0.0
    %3299 = vmatprep.subr.mxu0 0.0
    %3300 = vmatpush1.msra.mxu0 0.0
    %3301 = vmatprep.subr.mxu0 0.0
    %3302 = vmatpush1.msra.mxu0 0.0
    %3303 = vmatprep.subr.mxu0 0.0
    %3304 = vmatpush1.msra.mxu0 0.0
    %3305 = vmatprep.subr.mxu0 0.0
    %3306 = vmatpush1.msra.mxu0 0.0
    %3307 = vmatprep.subr.mxu0 0.0
    %3308 = vmatpush1.msra.mxu0 0.0
    %3309 = vmatprep.subr.mxu0 0.0
    %3310 = vmatpush1.msra.mxu0 0.0
    %3311 = vmatprep.subr.mxu0 0.0
    %3312 = vmatpush1.msra.mxu0 0.0
    %3313 = vmatprep.subr.mxu0 0.0
    %3314 = vmatpush1.msra.mxu0 0.0
    %3315 = vmatprep.subr.mxu0 0.0
    %3316 = vmatpush1.msra.mxu0 0.0
    %3317 = vmatprep.subr.mxu0 0.0
    %3318 = vmatpush1.msra.mxu0 0.0
    %3319 = vmatprep.subr.mxu0 0.0
    %3320 = vmatpush1.msra.mxu0 0.0
    %3321 = vmatprep.subr.mxu0 0.0
    %3322 = vmatpush1.msra.mxu0 0.0
    %3323 = vmatprep.subr.mxu0 0.0
    %3324 = vmatpush1.msra.mxu0 0.0
    %3325 = vmatprep.subr.mxu0 0.0
    %3326 = vmatpush1.msra.mxu0 0.0
    %3327 = vmatprep.mubr.f32.mxu0 0.0
    %3328 = vmatmul.mubr.f32.gmra.mrb[0].mxu0 %v3261
    %v3329 = vpop.f32.mrb[0].mxu0
    %v3330 = vadd.f32 %v1655, %v3329
    %v3331 = vpop.f32.mrb[0].mxu0
    %v3332 = vadd.f32 %v1659, %v3331
    %3333 = vdwg.mxu0
    %v3334 = vadd.f32 %v3258, %v3330
    %v3335 = vxor.u32 %v3334, 2147483648
    %v3336 = vmul.f32 %v3335, 1.442695
    %v3337 = vpow.pop %v3336
    %v3338 = vadd.f32 %v3337, 1.0
    %v3339 = vrcp.pop %v3338
    %v3340 = vmul.f32 1.0, %v3339
    %3342 = vrot.lane.b32.xlu0 %v3330, 64
    %v3343 = vpop.permute.xlu0 %3342
    %v3345 = vmul.f32 %v3340, %v3343
    %3347 = vrot.lane.b32.xlu0 %v3345, 64
    %v3348 = vpop.permute.xlu0 %3347
    %v3350 = vadd.f32 %v3258, %v3348
    %v3351 = vtanh.pop %v3350
    %v3352 = vsub.f32 1.0, %v3340
    %3354 = vrot.lane.b32.xlu0 %v3351, 96
    %v3355 = vpop.permute.xlu0 %3354
    %v3357 = vmul.f32 %v3352, %v3355
    %3358 = vrot.lane.b32.xlu0 %v3259, 32
    %v3359 = vpop.permute.xlu0 %3358
    %v3361 = vmul.f32 %v3340, %v3359
    %v3362 = vadd.f32 %v3357, %v3361
    %3364 = vrot.lane.b32.xlu0 %v3362, 96
    %v3365 = vpop.permute.xlu0 %3364
    %v3366 = vsel %vm1406, %v3365, 0
    %3368 = vmatprep.subr.mxu0 0.0
    %3369 = vmatpush1.msra.mxu0 %v1646
    %3370 = vmatprep.subr.mxu0 0.0
    %3371 = vmatpush1.msra.mxu0 %v1647
    %3372 = vmatprep.subr.mxu0 0.0
    %3373 = vmatpush1.msra.mxu0 %v1648
    %3374 = vmatprep.subr.mxu0 0.0
    %3375 = vmatpush1.msra.mxu0 %v1649
    %3376 = vmatprep.subr.mxu0 0.0
    %3377 = vmatpush1.msra.mxu0 0.0
    %3378 = vmatprep.subr.mxu0 0.0
    %3379 = vmatpush1.msra.mxu0 0.0
    %3380 = vmatprep.subr.mxu0 0.0
    %3381 = vmatpush1.msra.mxu0 0.0
    %3382 = vmatprep.subr.mxu0 0.0
    %3383 = vmatpush1.msra.mxu0 0.0
    %3384 = vmatprep.subr.mxu0 0.0
    %3385 = vmatpush1.msra.mxu0 0.0
    %3386 = vmatprep.subr.mxu0 0.0
    %3387 = vmatpush1.msra.mxu0 0.0
    %3388 = vmatprep.subr.mxu0 0.0
    %3389 = vmatpush1.msra.mxu0 0.0
    %3390 = vmatprep.subr.mxu0 0.0
    %3391 = vmatpush1.msra.mxu0 0.0
    %3392 = vmatprep.subr.mxu0 0.0
    %3393 = vmatpush1.msra.mxu0 0.0
    %3394 = vmatprep.subr.mxu0 0.0
    %3395 = vmatpush1.msra.mxu0 0.0
    %3396 = vmatprep.subr.mxu0 0.0
    %3397 = vmatpush1.msra.mxu0 0.0
    %3398 = vmatprep.subr.mxu0 0.0
    %3399 = vmatpush1.msra.mxu0 0.0
    %3400 = vmatprep.subr.mxu0 0.0
    %3401 = vmatpush1.msra.mxu0 0.0
    %3402 = vmatprep.subr.mxu0 0.0
    %3403 = vmatpush1.msra.mxu0 0.0
    %3404 = vmatprep.subr.mxu0 0.0
    %3405 = vmatpush1.msra.mxu0 0.0
    %3406 = vmatprep.subr.mxu0 0.0
    %3407 = vmatpush1.msra.mxu0 0.0
    %3408 = vmatprep.subr.mxu0 0.0
    %3409 = vmatpush1.msra.mxu0 0.0
    %3410 = vmatprep.subr.mxu0 0.0
    %3411 = vmatpush1.msra.mxu0 0.0
    %3412 = vmatprep.subr.mxu0 0.0
    %3413 = vmatpush1.msra.mxu0 0.0
    %3414 = vmatprep.subr.mxu0 0.0
    %3415 = vmatpush1.msra.mxu0 0.0
    %3416 = vmatprep.subr.mxu0 0.0
    %3417 = vmatpush1.msra.mxu0 0.0
    %3418 = vmatprep.subr.mxu0 0.0
    %3419 = vmatpush1.msra.mxu0 0.0
    %3420 = vmatprep.subr.mxu0 0.0
    %3421 = vmatpush1.msra.mxu0 0.0
    %3422 = vmatprep.subr.mxu0 0.0
    %3423 = vmatpush1.msra.mxu0 0.0
    %3424 = vmatprep.subr.mxu0 0.0
    %3425 = vmatpush1.msra.mxu0 0.0
    %3426 = vmatprep.subr.mxu0 0.0
    %3427 = vmatpush1.msra.mxu0 0.0
    %3428 = vmatprep.subr.mxu0 0.0
    %3429 = vmatpush1.msra.mxu0 0.0
    %3430 = vmatprep.subr.mxu0 0.0
    %3431 = vmatpush1.msra.mxu0 0.0
    %3432 = vmatprep.mubr.f32.mxu0 0.0
    %3433 = vmatmul.mubr.f32.gmra.mrb[0].mxu0 %v3366
    %v3434 = vpop.f32.mrb[0].mxu0
    %v3435 = vadd.f32 %v1667, %v3434
    %v3436 = vpop.f32.mrb[0].mxu0
    %3437 = vdwg.mxu0
    %3438 = vrot.lane.b32.xlu0 %v3330, 32
    %v3439 = vpop.permute.xlu0 %3438
    %v3441 = vadd.f32 %v3435, %v3439
    %v3442 = vxor.u32 %v3441, 2147483648
    %v3443 = vmul.f32 %v3442, 1.442695
    %v3444 = vpow.pop %v3443
    %v3445 = vadd.f32 %v3444, 1.0
    %v3446 = vrcp.pop %v3445
    %v3447 = vmul.f32 1.0, %v3446
    %3449 = vrot.lane.b32.xlu0 %v3332, 32
    %v3450 = vpop.permute.xlu0 %3449
    %v3452 = vadd.f32 %v3435, %v3450
    %v3453 = vxor.u32 %v3452, 2147483648
    %v3454 = vmul.f32 %v3453, 1.442695
    %v3455 = vpow.pop %v3454
    %v3456 = vadd.f32 %v3455, 1.0
    %v3457 = vrcp.pop %v3456
    %v3458 = vmul.f32 1.0, %v3457
    %3459 = vrot.lane.b32.xlu0 %v3332, 96
    %v3460 = vpop.permute.xlu0 %3459
    %v3462 = vmul.f32 %v3447, %v3460
    %3464 = vrot.lane.b32.xlu0 %v3462, 64
    %v3465 = vpop.permute.xlu0 %3464
    %v3467 = vadd.f32 %v3435, %v3465
    %v3468 = vtanh.pop %v3467
    %v3469 = vsub.f32 1.0, %v3458
    %3471 = vrot.lane.b32.xlu0 %v3468, 96
    %v3472 = vpop.permute.xlu0 %3471
    %v3474 = vmul.f32 %v3469, %v3472
    %v3475 = vmul.f32 %v3458, %v3259
    %v3476 = vadd.f32 %v3474, %v3475
    %v3478 = vsel %vm1406, %v3365, %v3476
    %3479 = vst.msk [vmem:[#allocation4] sm:$0xff] %vm1670, %v3478
  $region93: #{cpc_forward.1} parent=0 // pred_fallthru
    _
  %p3480 = scmp.ge.s32.totalorder %s54, 8
  // Predicated region
  $region94: #{cpc_forward.1} parent=0 // pred_check
    %p3481 = pneg %p3480
  $region95: #{cpc_forward.1} parent=0 // pred_check_branch
    %3483 = sbr.rel (%p3481) target = $region97
  $region96: #{cpc_forward.1} parent=0 // pred_region
    %v3484 = vld [vmem:[#allocation3 + $0x40] sm:$0xff]
    %v3485 = vld [vmem:[#allocation4] sm:$0xff]
    %v3487 = vsel %vm1670, %v3485, 0
    %3489 = vmatprep.subr.mxu0 %v1631
    %3490 = vmatpush1.msra.mxu0 %v1630
    %3491 = vmatprep.subr.mxu0 %v1633
    %3492 = vmatpush1.msra.mxu0 %v1632
    %3493 = vmatprep.subr.mxu0 %v1635
    %3494 = vmatpush1.msra.mxu0 %v1634
    %3495 = vmatprep.subr.mxu0 %v1637
    %3496 = vmatpush1.msra.mxu0 %v1636
    %3497 = vmatprep.subr.mxu0 %v1639
    %3498 = vmatpush1.msra.mxu0 %v1638
    %3499 = vmatprep.subr.mxu0 %v1641
    %3500 = vmatpush1.msra.mxu0 %v1640
    %3501 = vmatprep.subr.mxu0 %v1643
    %3502 = vmatpush1.msra.mxu0 %v1642
    %3503 = vmatprep.subr.mxu0 %v1645
    %3504 = vmatpush1.msra.mxu0 %v1644
    %3505 = vmatprep.subr.mxu0 0.0
    %3506 = vmatpush1.msra.mxu0 0.0
    %3507 = vmatprep.subr.mxu0 0.0
    %3508 = vmatpush1.msra.mxu0 0.0
    %3509 = vmatprep.subr.mxu0 0.0
    %3510 = vmatpush1.msra.mxu0 0.0
    %3511 = vmatprep.subr.mxu0 0.0
    %3512 = vmatpush1.msra.mxu0 0.0
    %3513 = vmatprep.subr.mxu0 0.0
    %3514 = vmatpush1.msra.mxu0 0.0
    %3515 = vmatprep.subr.mxu0 0.0
    %3516 = vmatpush1.msra.mxu0 0.0
    %3517 = vmatprep.subr.mxu0 0.0
    %3518 = vmatpush1.msra.mxu0 0.0
    %3519 = vmatprep.subr.mxu0 0.0
    %3520 = vmatpush1.msra.mxu0 0.0
    %3521 = vmatprep.subr.mxu0 0.0
    %3522 = vmatpush1.msra.mxu0 0.0
    %3523 = vmatprep.subr.mxu0 0.0
    %3524 = vmatpush1.msra.mxu0 0.0
    %3525 = vmatprep.subr.mxu0 0.0
    %3526 = vmatpush1.msra.mxu0 0.0
    %3527 = vmatprep.subr.mxu0 0.0
    %3528 = vmatpush1.msra.mxu0 0.0
    %3529 = vmatprep.subr.mxu0 0.0
    %3530 = vmatpush1.msra.mxu0 0.0
    %3531 = vmatprep.subr.mxu0 0.0
    %3532 = vmatpush1.msra.mxu0 0.0
    %3533 = vmatprep.subr.mxu0 0.0
    %3534 = vmatpush1.msra.mxu0 0.0
    %3535 = vmatprep.subr.mxu0 0.0
    %3536 = vmatpush1.msra.mxu0 0.0
    %3537 = vmatprep.subr.mxu0 0.0
    %3538 = vmatpush1.msra.mxu0 0.0
    %3539 = vmatprep.subr.mxu0 0.0
    %3540 = vmatpush1.msra.mxu0 0.0
    %3541 = vmatprep.subr.mxu0 0.0
    %3542 = vmatpush1.msra.mxu0 0.0
    %3543 = vmatprep.subr.mxu0 0.0
    %3544 = vmatpush1.msra.mxu0 0.0
    %3545 = vmatprep.subr.mxu0 0.0
    %3546 = vmatpush1.msra.mxu0 0.0
    %3547 = vmatprep.subr.mxu0 0.0
    %3548 = vmatpush1.msra.mxu0 0.0
    %3549 = vmatprep.subr.mxu0 0.0
    %3550 = vmatpush1.msra.mxu0 0.0
    %3551 = vmatprep.subr.mxu0 0.0
    %3552 = vmatpush1.msra.mxu0 0.0
    %3553 = vmatprep.mubr.f32.mxu0 0.0
    %3554 = vmatmul.mubr.f32.gmra.mrb[0].mxu0 %v3487
    %v3555 = vpop.f32.mrb[0].mxu0
    %v3556 = vadd.f32 %v1655, %v3555
    %v3557 = vpop.f32.mrb[0].mxu0
    %v3558 = vadd.f32 %v1659, %v3557
    %3559 = vdwg.mxu0
    %v3560 = vadd.f32 %v3484, %v3556
    %v3561 = vxor.u32 %v3560, 2147483648
    %v3562 = vmul.f32 %v3561, 1.442695
    %v3563 = vpow.pop %v3562
    %v3564 = vadd.f32 %v3563, 1.0
    %v3565 = vrcp.pop %v3564
    %v3566 = vmul.f32 1.0, %v3565
    %3568 = vrot.lane.b32.xlu0 %v3556, 64
    %v3569 = vpop.permute.xlu0 %3568
    %v3571 = vmul.f32 %v3566, %v3569
    %3573 = vrot.lane.b32.xlu0 %v3571, 64
    %v3574 = vpop.permute.xlu0 %3573
    %v3576 = vadd.f32 %v3484, %v3574
    %v3577 = vtanh.pop %v3576
    %v3578 = vsub.f32 1.0, %v3566
    %3580 = vrot.lane.b32.xlu0 %v3577, 96
    %v3581 = vpop.permute.xlu0 %3580
    %v3583 = vmul.f32 %v3578, %v3581
    %3584 = vrot.lane.b32.xlu0 %v3485, 32
    %v3585 = vpop.permute.xlu0 %3584
    %v3587 = vmul.f32 %v3566, %v3585
    %v3588 = vadd.f32 %v3583, %v3587
    %3590 = vrot.lane.b32.xlu0 %v3588, 96
    %v3591 = vpop.permute.xlu0 %3590
    %v3592 = vsel %vm1406, %v3591, 0
    %3594 = vmatprep.subr.mxu0 0.0
    %3595 = vmatpush1.msra.mxu0 %v1646
    %3596 = vmatprep.subr.mxu0 0.0
    %3597 = vmatpush1.msra.mxu0 %v1647
    %3598 = vmatprep.subr.mxu0 0.0
    %3599 = vmatpush1.msra.mxu0 %v1648
    %3600 = vmatprep.subr.mxu0 0.0
    %3601 = vmatpush1.msra.mxu0 %v1649
    %3602 = vmatprep.subr.mxu0 0.0
    %3603 = vmatpush1.msra.mxu0 0.0
    %3604 = vmatprep.subr.mxu0 0.0
    %3605 = vmatpush1.msra.mxu0 0.0
    %3606 = vmatprep.subr.mxu0 0.0
    %3607 = vmatpush1.msra.mxu0 0.0
    %3608 = vmatprep.subr.mxu0 0.0
    %3609 = vmatpush1.msra.mxu0 0.0
    %3610 = vmatprep.subr.mxu0 0.0
    %3611 = vmatpush1.msra.mxu0 0.0
    %3612 = vmatprep.subr.mxu0 0.0
    %3613 = vmatpush1.msra.mxu0 0.0
    %3614 = vmatprep.subr.mxu0 0.0
    %3615 = vmatpush1.msra.mxu0 0.0
    %3616 = vmatprep.subr.mxu0 0.0
    %3617 = vmatpush1.msra.mxu0 0.0
    %3618 = vmatprep.subr.mxu0 0.0
    %3619 = vmatpush1.msra.mxu0 0.0
    %3620 = vmatprep.subr.mxu0 0.0
    %3621 = vmatpush1.msra.mxu0 0.0
    %3622 = vmatprep.subr.mxu0 0.0
    %3623 = vmatpush1.msra.mxu0 0.0
    %3624 = vmatprep.subr.mxu0 0.0
    %3625 = vmatpush1.msra.mxu0 0.0
    %3626 = vmatprep.subr.mxu0 0.0
    %3627 = vmatpush1.msra.mxu0 0.0
    %3628 = vmatprep.subr.mxu0 0.0
    %3629 = vmatpush1.msra.mxu0 0.0
    %3630 = vmatprep.subr.mxu0 0.0
    %3631 = vmatpush1.msra.mxu0 0.0
    %3632 = vmatprep.subr.mxu0 0.0
    %3633 = vmatpush1.msra.mxu0 0.0
    %3634 = vmatprep.subr.mxu0 0.0
    %3635 = vmatpush1.msra.mxu0 0.0
    %3636 = vmatprep.subr.mxu0 0.0
    %3637 = vmatpush1.msra.mxu0 0.0
    %3638 = vmatprep.subr.mxu0 0.0
    %3639 = vmatpush1.msra.mxu0 0.0
    %3640 = vmatprep.subr.mxu0 0.0
    %3641 = vmatpush1.msra.mxu0 0.0
    %3642 = vmatprep.subr.mxu0 0.0
    %3643 = vmatpush1.msra.mxu0 0.0
    %3644 = vmatprep.subr.mxu0 0.0
    %3645 = vmatpush1.msra.mxu0 0.0
    %3646 = vmatprep.subr.mxu0 0.0
    %3647 = vmatpush1.msra.mxu0 0.0
    %3648 = vmatprep.subr.mxu0 0.0
    %3649 = vmatpush1.msra.mxu0 0.0
    %3650 = vmatprep.subr.mxu0 0.0
    %3651 = vmatpush1.msra.mxu0 0.0
    %3652 = vmatprep.subr.mxu0 0.0
    %3653 = vmatpush1.msra.mxu0 0.0
    %3654 = vmatprep.subr.mxu0 0.0
    %3655 = vmatpush1.msra.mxu0 0.0
    %3656 = vmatprep.subr.mxu0 0.0
    %3657 = vmatpush1.msra.mxu0 0.0
    %3658 = vmatprep.mubr.f32.mxu0 0.0
    %3659 = vmatmul.mubr.f32.gmra.mrb[0].mxu0 %v3592
    %v3660 = vpop.f32.mrb[0].mxu0
    %v3661 = vadd.f32 %v1667, %v3660
    %v3662 = vpop.f32.mrb[0].mxu0
    %3663 = vdwg.mxu0
    %3664 = vrot.lane.b32.xlu0 %v3556, 32
    %v3665 = vpop.permute.xlu0 %3664
    %v3667 = vadd.f32 %v3661, %v3665
    %v3668 = vxor.u32 %v3667, 2147483648
    %v3669 = vmul.f32 %v3668, 1.442695
    %v3670 = vpow.pop %v3669
    %v3671 = vadd.f32 %v3670, 1.0
    %v3672 = vrcp.pop %v3671
    %v3673 = vmul.f32 1.0, %v3672
    %3675 = vrot.lane.b32.xlu0 %v3558, 32
    %v3676 = vpop.permute.xlu0 %3675
    %v3678 = vadd.f32 %v3661, %v3676
    %v3679 = vxor.u32 %v3678, 2147483648
    %v3680 = vmul.f32 %v3679, 1.442695
    %v3681 = vpow.pop %v3680
    %v3682 = vadd.f32 %v3681, 1.0
    %v3683 = vrcp.pop %v3682
    %v3684 = vmul.f32 1.0, %v3683
    %3685 = vrot.lane.b32.xlu0 %v3558, 96
    %v3686 = vpop.permute.xlu0 %3685
    %v3688 = vmul.f32 %v3673, %v3686
    %3690 = vrot.lane.b32.xlu0 %v3688, 64
    %v3691 = vpop.permute.xlu0 %3690
    %v3693 = vadd.f32 %v3661, %v3691
    %v3694 = vtanh.pop %v3693
    %v3695 = vsub.f32 1.0, %v3684
    %3697 = vrot.lane.b32.xlu0 %v3694, 96
    %v3698 = vpop.permute.xlu0 %3697
    %v3700 = vmul.f32 %v3695, %v3698
    %v3701 = vmul.f32 %v3684, %v3485
    %v3702 = vadd.f32 %v3700, %v3701
    %v3704 = vsel %vm1406, %v3591, %v3702
    %3705 = vst.msk [vmem:[#allocation4] sm:$0xff] %vm1670, %v3704
  $region97: #{cpc_forward.1} parent=0 // pred_fallthru
    _
  %p3706 = scmp.ge.s32.totalorder %s54, 9
  // Predicated region
  $region98: #{cpc_forward.1} parent=0 // pred_check
    %p3707 = pneg %p3706
  $region99: #{cpc_forward.1} parent=0 // pred_check_branch
    %3709 = sbr.rel (%p3707) target = $region101
  $region100: #{cpc_forward.1} parent=0 // pred_region
    %v3710 = vld [vmem:[#allocation3 + $0x48] sm:$0xff]
    %v3711 = vld [vmem:[#allocation4] sm:$0xff]
    %v3713 = vsel %vm1670, %v3711, 0
    %3715 = vmatprep.subr.mxu0 %v1631
    %3716 = vmatpush1.msra.mxu0 %v1630
    %3717 = vmatprep.subr.mxu0 %v1633
    %3718 = vmatpush1.msra.mxu0 %v1632
    %3719 = vmatprep.subr.mxu0 %v1635
    %3720 = vmatpush1.msra.mxu0 %v1634
    %3721 = vmatprep.subr.mxu0 %v1637
    %3722 = vmatpush1.msra.mxu0 %v1636
    %3723 = vmatprep.subr.mxu0 %v1639
    %3724 = vmatpush1.msra.mxu0 %v1638
    %3725 = vmatprep.subr.mxu0 %v1641
    %3726 = vmatpush1.msra.mxu0 %v1640
    %3727 = vmatprep.subr.mxu0 %v1643
    %3728 = vmatpush1.msra.mxu0 %v1642
    %3729 = vmatprep.subr.mxu0 %v1645
    %3730 = vmatpush1.msra.mxu0 %v1644
    %3731 = vmatprep.subr.mxu0 0.0
    %3732 = vmatpush1.msra.mxu0 0.0
    %3733 = vmatprep.subr.mxu0 0.0
    %3734 = vmatpush1.msra.mxu0 0.0
    %3735 = vmatprep.subr.mxu0 0.0
    %3736 = vmatpush1.msra.mxu0 0.0
    %3737 = vmatprep.subr.mxu0 0.0
    %3738 = vmatpush1.msra.mxu0 0.0
    %3739 = vmatprep.subr.mxu0 0.0
    %3740 = vmatpush1.msra.mxu0 0.0
    %3741 = vmatprep.subr.mxu0 0.0
    %3742 = vmatpush1.msra.mxu0 0.0
    %3743 = vmatprep.subr.mxu0 0.0
    %3744 = vmatpush1.msra.mxu0 0.0
    %3745 = vmatprep.subr.mxu0 0.0
    %3746 = vmatpush1.msra.mxu0 0.0
    %3747 = vmatprep.subr.mxu0 0.0
    %3748 = vmatpush1.msra.mxu0 0.0
    %3749 = vmatprep.subr.mxu0 0.0
    %3750 = vmatpush1.msra.mxu0 0.0
    %3751 = vmatprep.subr.mxu0 0.0
    %3752 = vmatpush1.msra.mxu0 0.0
    %3753 = vmatprep.subr.mxu0 0.0
    %3754 = vmatpush1.msra.mxu0 0.0
    %3755 = vmatprep.subr.mxu0 0.0
    %3756 = vmatpush1.msra.mxu0 0.0
    %3757 = vmatprep.subr.mxu0 0.0
    %3758 = vmatpush1.msra.mxu0 0.0
    %3759 = vmatprep.subr.mxu0 0.0
    %3760 = vmatpush1.msra.mxu0 0.0
    %3761 = vmatprep.subr.mxu0 0.0
    %3762 = vmatpush1.msra.mxu0 0.0
    %3763 = vmatprep.subr.mxu0 0.0
    %3764 = vmatpush1.msra.mxu0 0.0
    %3765 = vmatprep.subr.mxu0 0.0
    %3766 = vmatpush1.msra.mxu0 0.0
    %3767 = vmatprep.subr.mxu0 0.0
    %3768 = vmatpush1.msra.mxu0 0.0
    %3769 = vmatprep.subr.mxu0 0.0
    %3770 = vmatpush1.msra.mxu0 0.0
    %3771 = vmatprep.subr.mxu0 0.0
    %3772 = vmatpush1.msra.mxu0 0.0
    %3773 = vmatprep.subr.mxu0 0.0
    %3774 = vmatpush1.msra.mxu0 0.0
    %3775 = vmatprep.subr.mxu0 0.0
    %3776 = vmatpush1.msra.mxu0 0.0
    %3777 = vmatprep.subr.mxu0 0.0
    %3778 = vmatpush1.msra.mxu0 0.0
    %3779 = vmatprep.mubr.f32.mxu0 0.0
    %3780 = vmatmul.mubr.f32.gmra.mrb[0].mxu0 %v3713
    %v3781 = vpop.f32.mrb[0].mxu0
    %v3782 = vadd.f32 %v1655, %v3781
    %v3783 = vpop.f32.mrb[0].mxu0
    %v3784 = vadd.f32 %v1659, %v3783
    %3785 = vdwg.mxu0
    %v3786 = vadd.f32 %v3710, %v3782
    %v3787 = vxor.u32 %v3786, 2147483648
    %v3788 = vmul.f32 %v3787, 1.442695
    %v3789 = vpow.pop %v3788
    %v3790 = vadd.f32 %v3789, 1.0
    %v3791 = vrcp.pop %v3790
    %v3792 = vmul.f32 1.0, %v3791
    %3794 = vrot.lane.b32.xlu0 %v3782, 64
    %v3795 = vpop.permute.xlu0 %3794
    %v3797 = vmul.f32 %v3792, %v3795
    %3799 = vrot.lane.b32.xlu0 %v3797, 64
    %v3800 = vpop.permute.xlu0 %3799
    %v3802 = vadd.f32 %v3710, %v3800
    %v3803 = vtanh.pop %v3802
    %v3804 = vsub.f32 1.0, %v3792
    %3806 = vrot.lane.b32.xlu0 %v3803, 96
    %v3807 = vpop.permute.xlu0 %3806
    %v3809 = vmul.f32 %v3804, %v3807
    %3810 = vrot.lane.b32.xlu0 %v3711, 32
    %v3811 = vpop.permute.xlu0 %3810
    %v3813 = vmul.f32 %v3792, %v3811
    %v3814 = vadd.f32 %v3809, %v3813
    %3816 = vrot.lane.b32.xlu0 %v3814, 96
    %v3817 = vpop.permute.xlu0 %3816
    %v3818 = vsel %vm1406, %v3817, 0
    %3820 = vmatprep.subr.mxu0 0.0
    %3821 = vmatpush1.msra.mxu0 %v1646
    %3822 = vmatprep.subr.mxu0 0.0
    %3823 = vmatpush1.msra.mxu0 %v1647
    %3824 = vmatprep.subr.mxu0 0.0
    %3825 = vmatpush1.msra.mxu0 %v1648
    %3826 = vmatprep.subr.mxu0 0.0
    %3827 = vmatpush1.msra.mxu0 %v1649
    %3828 = vmatprep.subr.mxu0 0.0
    %3829 = vmatpush1.msra.mxu0 0.0
    %3830 = vmatprep.subr.mxu0 0.0
    %3831 = vmatpush1.msra.mxu0 0.0
    %3832 = vmatprep.subr.mxu0 0.0
    %3833 = vmatpush1.msra.mxu0 0.0
    %3834 = vmatprep.subr.mxu0 0.0
    %3835 = vmatpush1.msra.mxu0 0.0
    %3836 = vmatprep.subr.mxu0 0.0
    %3837 = vmatpush1.msra.mxu0 0.0
    %3838 = vmatprep.subr.mxu0 0.0
    %3839 = vmatpush1.msra.mxu0 0.0
    %3840 = vmatprep.subr.mxu0 0.0
    %3841 = vmatpush1.msra.mxu0 0.0
    %3842 = vmatprep.subr.mxu0 0.0
    %3843 = vmatpush1.msra.mxu0 0.0
    %3844 = vmatprep.subr.mxu0 0.0
    %3845 = vmatpush1.msra.mxu0 0.0
    %3846 = vmatprep.subr.mxu0 0.0
    %3847 = vmatpush1.msra.mxu0 0.0
    %3848 = vmatprep.subr.mxu0 0.0
    %3849 = vmatpush1.msra.mxu0 0.0
    %3850 = vmatprep.subr.mxu0 0.0
    %3851 = vmatpush1.msra.mxu0 0.0
    %3852 = vmatprep.subr.mxu0 0.0
    %3853 = vmatpush1.msra.mxu0 0.0
    %3854 = vmatprep.subr.mxu0 0.0
    %3855 = vmatpush1.msra.mxu0 0.0
    %3856 = vmatprep.subr.mxu0 0.0
    %3857 = vmatpush1.msra.mxu0 0.0
    %3858 = vmatprep.subr.mxu0 0.0
    %3859 = vmatpush1.msra.mxu0 0.0
    %3860 = vmatprep.subr.mxu0 0.0
    %3861 = vmatpush1.msra.mxu0 0.0
    %3862 = vmatprep.subr.mxu0 0.0
    %3863 = vmatpush1.msra.mxu0 0.0
    %3864 = vmatprep.subr.mxu0 0.0
    %3865 = vmatpush1.msra.mxu0 0.0
    %3866 = vmatprep.subr.mxu0 0.0
    %3867 = vmatpush1.msra.mxu0 0.0
    %3868 = vmatprep.subr.mxu0 0.0
    %3869 = vmatpush1.msra.mxu0 0.0
    %3870 = vmatprep.subr.mxu0 0.0
    %3871 = vmatpush1.msra.mxu0 0.0
    %3872 = vmatprep.subr.mxu0 0.0
    %3873 = vmatpush1.msra.mxu0 0.0
    %3874 = vmatprep.subr.mxu0 0.0
    %3875 = vmatpush1.msra.mxu0 0.0
    %3876 = vmatprep.subr.mxu0 0.0
    %3877 = vmatpush1.msra.mxu0 0.0
    %3878 = vmatprep.subr.mxu0 0.0
    %3879 = vmatpush1.msra.mxu0 0.0
    %3880 = vmatprep.subr.mxu0 0.0
    %3881 = vmatpush1.msra.mxu0 0.0
    %3882 = vmatprep.subr.mxu0 0.0
    %3883 = vmatpush1.msra.mxu0 0.0
    %3884 = vmatprep.mubr.f32.mxu0 0.0
    %3885 = vmatmul.mubr.f32.gmra.mrb[0].mxu0 %v3818
    %v3886 = vpop.f32.mrb[0].mxu0
    %v3887 = vadd.f32 %v1667, %v3886
    %v3888 = vpop.f32.mrb[0].mxu0
    %3889 = vdwg.mxu0
    %3890 = vrot.lane.b32.xlu0 %v3782, 32
    %v3891 = vpop.permute.xlu0 %3890
    %v3893 = vadd.f32 %v3887, %v3891
    %v3894 = vxor.u32 %v3893, 2147483648
    %v3895 = vmul.f32 %v3894, 1.442695
    %v3896 = vpow.pop %v3895
    %v3897 = vadd.f32 %v3896, 1.0
    %v3898 = vrcp.pop %v3897
    %v3899 = vmul.f32 1.0, %v3898
    %3901 = vrot.lane.b32.xlu0 %v3784, 32
    %v3902 = vpop.permute.xlu0 %3901
    %v3904 = vadd.f32 %v3887, %v3902
    %v3905 = vxor.u32 %v3904, 2147483648
    %v3906 = vmul.f32 %v3905, 1.442695
    %v3907 = vpow.pop %v3906
    %v3908 = vadd.f32 %v3907, 1.0
    %v3909 = vrcp.pop %v3908
    %v3910 = vmul.f32 1.0, %v3909
    %3911 = vrot.lane.b32.xlu0 %v3784, 96
    %v3912 = vpop.permute.xlu0 %3911
    %v3914 = vmul.f32 %v3899, %v3912
    %3916 = vrot.lane.b32.xlu0 %v3914, 64
    %v3917 = vpop.permute.xlu0 %3916
    %v3919 = vadd.f32 %v3887, %v3917
    %v3920 = vtanh.pop %v3919
    %v3921 = vsub.f32 1.0, %v3910
    %3923 = vrot.lane.b32.xlu0 %v3920, 96
    %v3924 = vpop.permute.xlu0 %3923
    %v3926 = vmul.f32 %v3921, %v3924
    %v3927 = vmul.f32 %v3910, %v3711
    %v3928 = vadd.f32 %v3926, %v3927
    %v3930 = vsel %vm1406, %v3817, %v3928
    %3931 = vst.msk [vmem:[#allocation4] sm:$0xff] %vm1670, %v3930
  $region101: #{cpc_forward.1} parent=0 // pred_fallthru
    _
  %p3932 = scmp.ge.s32.totalorder %s54, 10
  // Predicated region
  $region102: #{cpc_forward.1} parent=0 // pred_check
    %p3933 = pneg %p3932
  $region103: #{cpc_forward.1} parent=0 // pred_check_branch
    %3935 = sbr.rel (%p3933) target = $region105
  $region104: #{cpc_forward.1} parent=0 // pred_region
    %v3936 = vld [vmem:[#allocation3 + $0x50] sm:$0xff]
    %v3937 = vld [vmem:[#allocation4] sm:$0xff]
    %v3939 = vsel %vm1670, %v3937, 0
    %3941 = vmatprep.subr.mxu0 %v1631
    %3942 = vmatpush1.msra.mxu0 %v1630
    %3943 = vmatprep.subr.mxu0 %v1633
    %3944 = vmatpush1.msra.mxu0 %v1632
    %3945 = vmatprep.subr.mxu0 %v1635
    %3946 = vmatpush1.msra.mxu0 %v1634
    %3947 = vmatprep.subr.mxu0 %v1637
    %3948 = vmatpush1.msra.mxu0 %v1636
    %3949 = vmatprep.subr.mxu0 %v1639
    %3950 = vmatpush1.msra.mxu0 %v1638
    %3951 = vmatprep.subr.mxu0 %v1641
    %3952 = vmatpush1.msra.mxu0 %v1640
    %3953 = vmatprep.subr.mxu0 %v1643
    %3954 = vmatpush1.msra.mxu0 %v1642
    %3955 = vmatprep.subr.mxu0 %v1645
    %3956 = vmatpush1.msra.mxu0 %v1644
    %3957 = vmatprep.subr.mxu0 0.0
    %3958 = vmatpush1.msra.mxu0 0.0
    %3959 = vmatprep.subr.mxu0 0.0
    %3960 = vmatpush1.msra.mxu0 0.0
    %3961 = vmatprep.subr.mxu0 0.0
    %3962 = vmatpush1.msra.mxu0 0.0
    %3963 = vmatprep.subr.mxu0 0.0
    %3964 = vmatpush1.msra.mxu0 0.0
    %3965 = vmatprep.subr.mxu0 0.0
    %3966 = vmatpush1.msra.mxu0 0.0
    %3967 = vmatprep.subr.mxu0 0.0
    %3968 = vmatpush1.msra.mxu0 0.0
    %3969 = vmatprep.subr.mxu0 0.0
    %3970 = vmatpush1.msra.mxu0 0.0
    %3971 = vmatprep.subr.mxu0 0.0
    %3972 = vmatpush1.msra.mxu0 0.0
    %3973 = vmatprep.subr.mxu0 0.0
    %3974 = vmatpush1.msra.mxu0 0.0
    %3975 = vmatprep.subr.mxu0 0.0
    %3976 = vmatpush1.msra.mxu0 0.0
    %3977 = vmatprep.subr.mxu0 0.0
    %3978 = vmatpush1.msra.mxu0 0.0
    %3979 = vmatprep.subr.mxu0 0.0
    %3980 = vmatpush1.msra.mxu0 0.0
    %3981 = vmatprep.subr.mxu0 0.0
    %3982 = vmatpush1.msra.mxu0 0.0
    %3983 = vmatprep.subr.mxu0 0.0
    %3984 = vmatpush1.msra.mxu0 0.0
    %3985 = vmatprep.subr.mxu0 0.0
    %3986 = vmatpush1.msra.mxu0 0.0
    %3987 = vmatprep.subr.mxu0 0.0
    %3988 = vmatpush1.msra.mxu0 0.0
    %3989 = vmatprep.subr.mxu0 0.0
    %3990 = vmatpush1.msra.mxu0 0.0
    %3991 = vmatprep.subr.mxu0 0.0
    %3992 = vmatpush1.msra.mxu0 0.0
    %3993 = vmatprep.subr.mxu0 0.0
    %3994 = vmatpush1.msra.mxu0 0.0
    %3995 = vmatprep.subr.mxu0 0.0
    %3996 = vmatpush1.msra.mxu0 0.0
    %3997 = vmatprep.subr.mxu0 0.0
    %3998 = vmatpush1.msra.mxu0 0.0
    %3999 = vmatprep.subr.mxu0 0.0
    %4000 = vmatpush1.msra.mxu0 0.0
    %4001 = vmatprep.subr.mxu0 0.0
    %4002 = vmatpush1.msra.mxu0 0.0
    %4003 = vmatprep.subr.mxu0 0.0
    %4004 = vmatpush1.msra.mxu0 0.0
    %4005 = vmatprep.mubr.f32.mxu0 0.0
    %4006 = vmatmul.mubr.f32.gmra.mrb[0].mxu0 %v3939
    %v4007 = vpop.f32.mrb[0].mxu0
    %v4008 = vadd.f32 %v1655, %v4007
    %v4009 = vpop.f32.mrb[0].mxu0
    %v4010 = vadd.f32 %v1659, %v4009
    %4011 = vdwg.mxu0
    %v4012 = vadd.f32 %v3936, %v4008
    %v4013 = vxor.u32 %v4012, 2147483648
    %v4014 = vmul.f32 %v4013, 1.442695
    %v4015 = vpow.pop %v4014
    %v4016 = vadd.f32 %v4015, 1.0
    %v4017 = vrcp.pop %v4016
    %v4018 = vmul.f32 1.0, %v4017
    %4020 = vrot.lane.b32.xlu0 %v4008, 64
    %v4021 = vpop.permute.xlu0 %4020
    %v4023 = vmul.f32 %v4018, %v4021
    %4025 = vrot.lane.b32.xlu0 %v4023, 64
    %v4026 = vpop.permute.xlu0 %4025
    %v4028 = vadd.f32 %v3936, %v4026
    %v4029 = vtanh.pop %v4028
    %v4030 = vsub.f32 1.0, %v4018
    %4032 = vrot.lane.b32.xlu0 %v4029, 96
    %v4033 = vpop.permute.xlu0 %4032
    %v4035 = vmul.f32 %v4030, %v4033
    %4036 = vrot.lane.b32.xlu0 %v3937, 32
    %v4037 = vpop.permute.xlu0 %4036
    %v4039 = vmul.f32 %v4018, %v4037
    %v4040 = vadd.f32 %v4035, %v4039
    %4042 = vrot.lane.b32.xlu0 %v4040, 96
    %v4043 = vpop.permute.xlu0 %4042
    %v4044 = vsel %vm1406, %v4043, 0
    %4046 = vmatprep.subr.mxu0 0.0
    %4047 = vmatpush1.msra.mxu0 %v1646
    %4048 = vmatprep.subr.mxu0 0.0
    %4049 = vmatpush1.msra.mxu0 %v1647
    %4050 = vmatprep.subr.mxu0 0.0
    %4051 = vmatpush1.msra.mxu0 %v1648
    %4052 = vmatprep.subr.mxu0 0.0
    %4053 = vmatpush1.msra.mxu0 %v1649
    %4054 = vmatprep.subr.mxu0 0.0
    %4055 = vmatpush1.msra.mxu0 0.0
    %4056 = vmatprep.subr.mxu0 0.0
    %4057 = vmatpush1.msra.mxu0 0.0
    %4058 = vmatprep.subr.mxu0 0.0
    %4059 = vmatpush1.msra.mxu0 0.0
    %4060 = vmatprep.subr.mxu0 0.0
    %4061 = vmatpush1.msra.mxu0 0.0
    %4062 = vmatprep.subr.mxu0 0.0
    %4063 = vmatpush1.msra.mxu0 0.0
    %4064 = vmatprep.subr.mxu0 0.0
    %4065 = vmatpush1.msra.mxu0 0.0
    %4066 = vmatprep.subr.mxu0 0.0
    %4067 = vmatpush1.msra.mxu0 0.0
    %4068 = vmatprep.subr.mxu0 0.0
    %4069 = vmatpush1.msra.mxu0 0.0
    %4070 = vmatprep.subr.mxu0 0.0
    %4071 = vmatpush1.msra.mxu0 0.0
    %4072 = vmatprep.subr.mxu0 0.0
    %4073 = vmatpush1.msra.mxu0 0.0
    %4074 = vmatprep.subr.mxu0 0.0
    %4075 = vmatpush1.msra.mxu0 0.0
    %4076 = vmatprep.subr.mxu0 0.0
    %4077 = vmatpush1.msra.mxu0 0.0
    %4078 = vmatprep.subr.mxu0 0.0
    %4079 = vmatpush1.msra.mxu0 0.0
    %4080 = vmatprep.subr.mxu0 0.0
    %4081 = vmatpush1.msra.mxu0 0.0
    %4082 = vmatprep.subr.mxu0 0.0
    %4083 = vmatpush1.msra.mxu0 0.0
    %4084 = vmatprep.subr.mxu0 0.0
    %4085 = vmatpush1.msra.mxu0 0.0
    %4086 = vmatprep.subr.mxu0 0.0
    %4087 = vmatpush1.msra.mxu0 0.0
    %4088 = vmatprep.subr.mxu0 0.0
    %4089 = vmatpush1.msra.mxu0 0.0
    %4090 = vmatprep.subr.mxu0 0.0
    %4091 = vmatpush1.msra.mxu0 0.0
    %4092 = vmatprep.subr.mxu0 0.0
    %4093 = vmatpush1.msra.mxu0 0.0
    %4094 = vmatprep.subr.mxu0 0.0
    %4095 = vmatpush1.msra.mxu0 0.0
    %4096 = vmatprep.subr.mxu0 0.0
    %4097 = vmatpush1.msra.mxu0 0.0
    %4098 = vmatprep.subr.mxu0 0.0
    %4099 = vmatpush1.msra.mxu0 0.0
    %4100 = vmatprep.subr.mxu0 0.0
    %4101 = vmatpush1.msra.mxu0 0.0
    %4102 = vmatprep.subr.mxu0 0.0
    %4103 = vmatpush1.msra.mxu0 0.0
    %4104 = vmatprep.subr.mxu0 0.0
    %4105 = vmatpush1.msra.mxu0 0.0
    %4106 = vmatprep.subr.mxu0 0.0
    %4107 = vmatpush1.msra.mxu0 0.0
    %4108 = vmatprep.subr.mxu0 0.0
    %4109 = vmatpush1.msra.mxu0 0.0
    %4110 = vmatprep.mubr.f32.mxu0 0.0
    %4111 = vmatmul.mubr.f32.gmra.mrb[0].mxu0 %v4044
    %v4112 = vpop.f32.mrb[0].mxu0
    %v4113 = vadd.f32 %v1667, %v4112
    %v4114 = vpop.f32.mrb[0].mxu0
    %4115 = vdwg.mxu0
    %4116 = vrot.lane.b32.xlu0 %v4008, 32
    %v4117 = vpop.permute.xlu0 %4116
    %v4119 = vadd.f32 %v4113, %v4117
    %v4120 = vxor.u32 %v4119, 2147483648
    %v4121 = vmul.f32 %v4120, 1.442695
    %v4122 = vpow.pop %v4121
    %v4123 = vadd.f32 %v4122, 1.0
    %v4124 = vrcp.pop %v4123
    %v4125 = vmul.f32 1.0, %v4124
    %4127 = vrot.lane.b32.xlu0 %v4010, 32
    %v4128 = vpop.permute.xlu0 %4127
    %v4130 = vadd.f32 %v4113, %v4128
    %v4131 = vxor.u32 %v4130, 2147483648
    %v4132 = vmul.f32 %v4131, 1.442695
    %v4133 = vpow.pop %v4132
    %v4134 = vadd.f32 %v4133, 1.0
    %v4135 = vrcp.pop %v4134
    %v4136 = vmul.f32 1.0, %v4135
    %4137 = vrot.lane.b32.xlu0 %v4010, 96
    %v4138 = vpop.permute.xlu0 %4137
    %v4140 = vmul.f32 %v4125, %v4138
    %4142 = vrot.lane.b32.xlu0 %v4140, 64
    %v4143 = vpop.permute.xlu0 %4142
    %v4145 = vadd.f32 %v4113, %v4143
    %v4146 = vtanh.pop %v4145
    %v4147 = vsub.f32 1.0, %v4136
    %4149 = vrot.lane.b32.xlu0 %v4146, 96
    %v4150 = vpop.permute.xlu0 %4149
    %v4152 = vmul.f32 %v4147, %v4150
    %v4153 = vmul.f32 %v4136, %v3937
    %v4154 = vadd.f32 %v4152, %v4153
    %v4156 = vsel %vm1406, %v4043, %v4154
    %4157 = vst.msk [vmem:[#allocation4] sm:$0xff] %vm1670, %v4156
  $region105: #{cpc_forward.1} parent=0 // pred_fallthru
    _
  %p4158 = scmp.ge.s32.totalorder %s54, 11
  // Predicated region
  $region106: #{cpc_forward.1} parent=0 // pred_check
    %p4159 = pneg %p4158
  $region107: #{cpc_forward.1} parent=0 // pred_check_branch
    %4161 = sbr.rel (%p4159) target = $region109
  $region108: #{cpc_forward.1} parent=0 // pred_region
    %v4162 = vld [vmem:[#allocation3 + $0x58] sm:$0xff]
    %v4163 = vld [vmem:[#allocation4] sm:$0xff]
    %v4165 = vsel %vm1670, %v4163, 0
    %4167 = vmatprep.subr.mxu0 %v1631
    %4168 = vmatpush1.msra.mxu0 %v1630
    %4169 = vmatprep.subr.mxu0 %v1633
    %4170 = vmatpush1.msra.mxu0 %v1632
    %4171 = vmatprep.subr.mxu0 %v1635
    %4172 = vmatpush1.msra.mxu0 %v1634
    %4173 = vmatprep.subr.mxu0 %v1637
    %4174 = vmatpush1.msra.mxu0 %v1636
    %4175 = vmatprep.subr.mxu0 %v1639
    %4176 = vmatpush1.msra.mxu0 %v1638
    %4177 = vmatprep.subr.mxu0 %v1641
    %4178 = vmatpush1.msra.mxu0 %v1640
    %4179 = vmatprep.subr.mxu0 %v1643
    %4180 = vmatpush1.msra.mxu0 %v1642
    %4181 = vmatprep.subr.mxu0 %v1645
    %4182 = vmatpush1.msra.mxu0 %v1644
    %4183 = vmatprep.subr.mxu0 0.0
    %4184 = vmatpush1.msra.mxu0 0.0
    %4185 = vmatprep.subr.mxu0 0.0
    %4186 = vmatpush1.msra.mxu0 0.0
    %4187 = vmatprep.subr.mxu0 0.0
    %4188 = vmatpush1.msra.mxu0 0.0
    %4189 = vmatprep.subr.mxu0 0.0
    %4190 = vmatpush1.msra.mxu0 0.0
    %4191 = vmatprep.subr.mxu0 0.0
    %4192 = vmatpush1.msra.mxu0 0.0
    %4193 = vmatprep.subr.mxu0 0.0
    %4194 = vmatpush1.msra.mxu0 0.0
    %4195 = vmatprep.subr.mxu0 0.0
    %4196 = vmatpush1.msra.mxu0 0.0
    %4197 = vmatprep.subr.mxu0 0.0
    %4198 = vmatpush1.msra.mxu0 0.0
    %4199 = vmatprep.subr.mxu0 0.0
    %4200 = vmatpush1.msra.mxu0 0.0
    %4201 = vmatprep.subr.mxu0 0.0
    %4202 = vmatpush1.msra.mxu0 0.0
    %4203 = vmatprep.subr.mxu0 0.0
    %4204 = vmatpush1.msra.mxu0 0.0
    %4205 = vmatprep.subr.mxu0 0.0
    %4206 = vmatpush1.msra.mxu0 0.0
    %4207 = vmatprep.subr.mxu0 0.0
    %4208 = vmatpush1.msra.mxu0 0.0
    %4209 = vmatprep.subr.mxu0 0.0
    %4210 = vmatpush1.msra.mxu0 0.0
    %4211 = vmatprep.subr.mxu0 0.0
    %4212 = vmatpush1.msra.mxu0 0.0
    %4213 = vmatprep.subr.mxu0 0.0
    %4214 = vmatpush1.msra.mxu0 0.0
    %4215 = vmatprep.subr.mxu0 0.0
    %4216 = vmatpush1.msra.mxu0 0.0
    %4217 = vmatprep.subr.mxu0 0.0
    %4218 = vmatpush1.msra.mxu0 0.0
    %4219 = vmatprep.subr.mxu0 0.0
    %4220 = vmatpush1.msra.mxu0 0.0
    %4221 = vmatprep.subr.mxu0 0.0
    %4222 = vmatpush1.msra.mxu0 0.0
    %4223 = vmatprep.subr.mxu0 0.0
    %4224 = vmatpush1.msra.mxu0 0.0
    %4225 = vmatprep.subr.mxu0 0.0
    %4226 = vmatpush1.msra.mxu0 0.0
    %4227 = vmatprep.subr.mxu0 0.0
    %4228 = vmatpush1.msra.mxu0 0.0
    %4229 = vmatprep.subr.mxu0 0.0
    %4230 = vmatpush1.msra.mxu0 0.0
    %4231 = vmatprep.mubr.f32.mxu0 0.0
    %4232 = vmatmul.mubr.f32.gmra.mrb[0].mxu0 %v4165
    %v4233 = vpop.f32.mrb[0].mxu0
    %v4234 = vadd.f32 %v1655, %v4233
    %v4235 = vpop.f32.mrb[0].mxu0
    %v4236 = vadd.f32 %v1659, %v4235
    %4237 = vdwg.mxu0
    %v4238 = vadd.f32 %v4162, %v4234
    %v4239 = vxor.u32 %v4238, 2147483648
    %v4240 = vmul.f32 %v4239, 1.442695
    %v4241 = vpow.pop %v4240
    %v4242 = vadd.f32 %v4241, 1.0
    %v4243 = vrcp.pop %v4242
    %v4244 = vmul.f32 1.0, %v4243
    %4246 = vrot.lane.b32.xlu0 %v4234, 64
    %v4247 = vpop.permute.xlu0 %4246
    %v4249 = vmul.f32 %v4244, %v4247
    %4251 = vrot.lane.b32.xlu0 %v4249, 64
    %v4252 = vpop.permute.xlu0 %4251
    %v4254 = vadd.f32 %v4162, %v4252
    %v4255 = vtanh.pop %v4254
    %v4256 = vsub.f32 1.0, %v4244
    %4258 = vrot.lane.b32.xlu0 %v4255, 96
    %v4259 = vpop.permute.xlu0 %4258
    %v4261 = vmul.f32 %v4256, %v4259
    %4262 = vrot.lane.b32.xlu0 %v4163, 32
    %v4263 = vpop.permute.xlu0 %4262
    %v4265 = vmul.f32 %v4244, %v4263
    %v4266 = vadd.f32 %v4261, %v4265
    %4268 = vrot.lane.b32.xlu0 %v4266, 96
    %v4269 = vpop.permute.xlu0 %4268
    %v4270 = vsel %vm1406, %v4269, 0
    %4272 = vmatprep.subr.mxu0 0.0
    %4273 = vmatpush1.msra.mxu0 %v1646
    %4274 = vmatprep.subr.mxu0 0.0
    %4275 = vmatpush1.msra.mxu0 %v1647
    %4276 = vmatprep.subr.mxu0 0.0
    %4277 = vmatpush1.msra.mxu0 %v1648
    %4278 = vmatprep.subr.mxu0 0.0
    %4279 = vmatpush1.msra.mxu0 %v1649
    %4280 = vmatprep.subr.mxu0 0.0
    %4281 = vmatpush1.msra.mxu0 0.0
    %4282 = vmatprep.subr.mxu0 0.0
    %4283 = vmatpush1.msra.mxu0 0.0
    %4284 = vmatprep.subr.mxu0 0.0
    %4285 = vmatpush1.msra.mxu0 0.0
    %4286 = vmatprep.subr.mxu0 0.0
    %4287 = vmatpush1.msra.mxu0 0.0
    %4288 = vmatprep.subr.mxu0 0.0
    %4289 = vmatpush1.msra.mxu0 0.0
    %4290 = vmatprep.subr.mxu0 0.0
    %4291 = vmatpush1.msra.mxu0 0.0
    %4292 = vmatprep.subr.mxu0 0.0
    %4293 = vmatpush1.msra.mxu0 0.0
    %4294 = vmatprep.subr.mxu0 0.0
    %4295 = vmatpush1.msra.mxu0 0.0
    %4296 = vmatprep.subr.mxu0 0.0
    %4297 = vmatpush1.msra.mxu0 0.0
    %4298 = vmatprep.subr.mxu0 0.0
    %4299 = vmatpush1.msra.mxu0 0.0
    %4300 = vmatprep.subr.mxu0 0.0
    %4301 = vmatpush1.msra.mxu0 0.0
    %4302 = vmatprep.subr.mxu0 0.0
    %4303 = vmatpush1.msra.mxu0 0.0
    %4304 = vmatprep.subr.mxu0 0.0
    %4305 = vmatpush1.msra.mxu0 0.0
    %4306 = vmatprep.subr.mxu0 0.0
    %4307 = vmatpush1.msra.mxu0 0.0
    %4308 = vmatprep.subr.mxu0 0.0
    %4309 = vmatpush1.msra.mxu0 0.0
    %4310 = vmatprep.subr.mxu0 0.0
    %4311 = vmatpush1.msra.mxu0 0.0
    %4312 = vmatprep.subr.mxu0 0.0
    %4313 = vmatpush1.msra.mxu0 0.0
    %4314 = vmatprep.subr.mxu0 0.0
    %4315 = vmatpush1.msra.mxu0 0.0
    %4316 = vmatprep.subr.mxu0 0.0
    %4317 = vmatpush1.msra.mxu0 0.0
    %4318 = vmatprep.subr.mxu0 0.0
    %4319 = vmatpush1.msra.mxu0 0.0
    %4320 = vmatprep.subr.mxu0 0.0
    %4321 = vmatpush1.msra.mxu0 0.0
    %4322 = vmatprep.subr.mxu0 0.0
    %4323 = vmatpush1.msra.mxu0 0.0
    %4324 = vmatprep.subr.mxu0 0.0
    %4325 = vmatpush1.msra.mxu0 0.0
    %4326 = vmatprep.subr.mxu0 0.0
    %4327 = vmatpush1.msra.mxu0 0.0
    %4328 = vmatprep.subr.mxu0 0.0
    %4329 = vmatpush1.msra.mxu0 0.0
    %4330 = vmatprep.subr.mxu0 0.0
    %4331 = vmatpush1.msra.mxu0 0.0
    %4332 = vmatprep.subr.mxu0 0.0
    %4333 = vmatpush1.msra.mxu0 0.0
    %4334 = vmatprep.subr.mxu0 0.0
    %4335 = vmatpush1.msra.mxu0 0.0
    %4336 = vmatprep.mubr.f32.mxu0 0.0
    %4337 = vmatmul.mubr.f32.gmra.mrb[0].mxu0 %v4270
    %v4338 = vpop.f32.mrb[0].mxu0
    %v4339 = vadd.f32 %v1667, %v4338
    %v4340 = vpop.f32.mrb[0].mxu0
    %4341 = vdwg.mxu0
    %4342 = vrot.lane.b32.xlu0 %v4234, 32
    %v4343 = vpop.permute.xlu0 %4342
    %v4345 = vadd.f32 %v4339, %v4343
    %v4346 = vxor.u32 %v4345, 2147483648
    %v4347 = vmul.f32 %v4346, 1.442695
    %v4348 = vpow.pop %v4347
    %v4349 = vadd.f32 %v4348, 1.0
    %v4350 = vrcp.pop %v4349
    %v4351 = vmul.f32 1.0, %v4350
    %4353 = vrot.lane.b32.xlu0 %v4236, 32
    %v4354 = vpop.permute.xlu0 %4353
    %v4356 = vadd.f32 %v4339, %v4354
    %v4357 = vxor.u32 %v4356, 2147483648
    %v4358 = vmul.f32 %v4357, 1.442695
    %v4359 = vpow.pop %v4358
    %v4360 = vadd.f32 %v4359, 1.0
    %v4361 = vrcp.pop %v4360
    %v4362 = vmul.f32 1.0, %v4361
    %4363 = vrot.lane.b32.xlu0 %v4236, 96
    %v4364 = vpop.permute.xlu0 %4363
    %v4366 = vmul.f32 %v4351, %v4364
    %4368 = vrot.lane.b32.xlu0 %v4366, 64
    %v4369 = vpop.permute.xlu0 %4368
    %v4371 = vadd.f32 %v4339, %v4369
    %v4372 = vtanh.pop %v4371
    %v4373 = vsub.f32 1.0, %v4362
    %4375 = vrot.lane.b32.xlu0 %v4372, 96
    %v4376 = vpop.permute.xlu0 %4375
    %v4378 = vmul.f32 %v4373, %v4376
    %v4379 = vmul.f32 %v4362, %v4163
    %v4380 = vadd.f32 %v4378, %v4379
    %v4382 = vsel %vm1406, %v4269, %v4380
    %4383 = vst.msk [vmem:[#allocation4] sm:$0xff] %vm1670, %v4382
  $region109: #{cpc_forward.1} parent=0 // pred_fallthru
    _
  %v4384 = vld [vmem:[#allocation4] sm:$0xff]
  %4385 = vst.msk [vmem:[%s17] sm:$0xff] %vm1670, %v4384
  %v4386 = vld [vmem:[%s13] sm:$0xff]
  %v4387 = vld [vmem:[%s13 + $0x8] sm:$0xff]
  %v4388 = vld [vmem:[%s13 + $0x10] sm:$0xff]
  %v4389 = vld [vmem:[%s13 + $0x18] sm:$0xff]
  %v4390 = vld [vmem:[%s14] sm:$0x1]
  %v4392 = vlaneseq
  %v4393 = vshrl.u32 %v4392, 7
  %v4394 = vsub.s32 0, %v4393
  %v4395 = vrot.slane %v4390, %v4394
  %4398 = vrot.lane.b32.xlu0 %v4384, 96
  %v4399 = vpop.permute.xlu0 %4398
  %v4400 = vsel %vm1406, %v4399, 0
  %4402 = vmatprep.subr.mxu0 0.0
  %4403 = vmatpush1.msra.mxu0 %v4386
  %4404 = vmatprep.subr.mxu0 0.0
  %4405 = vmatpush1.msra.mxu0 %v4387
  %4406 = vmatprep.subr.mxu0 0.0
  %4407 = vmatpush1.msra.mxu0 %v4388
  %4408 = vmatprep.subr.mxu0 0.0
  %4409 = vmatpush1.msra.mxu0 %v4389
  %4410 = vmatprep.subr.mxu0 0.0
  %4411 = vmatpush1.msra.mxu0 0.0
  %4412 = vmatprep.subr.mxu0 0.0
  %4413 = vmatpush1.msra.mxu0 0.0
  %4414 = vmatprep.subr.mxu0 0.0
  %4415 = vmatpush1.msra.mxu0 0.0
  %4416 = vmatprep.subr.mxu0 0.0
  %4417 = vmatpush1.msra.mxu0 0.0
  %4418 = vmatprep.subr.mxu0 0.0
  %4419 = vmatpush1.msra.mxu0 0.0
  %4420 = vmatprep.subr.mxu0 0.0
  %4421 = vmatpush1.msra.mxu0 0.0
  %4422 = vmatprep.subr.mxu0 0.0
  %4423 = vmatpush1.msra.mxu0 0.0
  %4424 = vmatprep.subr.mxu0 0.0
  %4425 = vmatpush1.msra.mxu0 0.0
  %4426 = vmatprep.subr.mxu0 0.0
  %4427 = vmatpush1.msra.mxu0 0.0
  %4428 = vmatprep.subr.mxu0 0.0
  %4429 = vmatpush1.msra.mxu0 0.0
  %4430 = vmatprep.subr.mxu0 0.0
  %4431 = vmatpush1.msra.mxu0 0.0
  %4432 = vmatprep.subr.mxu0 0.0
  %4433 = vmatpush1.msra.mxu0 0.0
  %4434 = vmatprep.subr.mxu0 0.0
  %4435 = vmatpush1.msra.mxu0 0.0
  %4436 = vmatprep.subr.mxu0 0.0
  %4437 = vmatpush1.msra.mxu0 0.0
  %4438 = vmatprep.subr.mxu0 0.0
  %4439 = vmatpush1.msra.mxu0 0.0
  %4440 = vmatprep.subr.mxu0 0.0
  %4441 = vmatpush1.msra.mxu0 0.0
  %4442 = vmatprep.subr.mxu0 0.0
  %4443 = vmatpush1.msra.mxu0 0.0
  %4444 = vmatprep.subr.mxu0 0.0
  %4445 = vmatpush1.msra.mxu0 0.0
  %4446 = vmatprep.subr.mxu0 0.0
  %4447 = vmatpush1.msra.mxu0 0.0
  %4448 = vmatprep.subr.mxu0 0.0
  %4449 = vmatpush1.msra.mxu0 0.0
  %4450 = vmatprep.subr.mxu0 0.0
  %4451 = vmatpush1.msra.mxu0 0.0
  %4452 = vmatprep.subr.mxu0 0.0
  %4453 = vmatpush1.msra.mxu0 0.0
  %4454 = vmatprep.subr.mxu0 0.0
  %4455 = vmatpush1.msra.mxu0 0.0
  %4456 = vmatprep.subr.mxu0 0.0
  %4457 = vmatpush1.msra.mxu0 0.0
  %4458 = vmatprep.subr.mxu0 0.0
  %4459 = vmatpush1.msra.mxu0 0.0
  %4460 = vmatprep.subr.mxu0 0.0
  %4461 = vmatpush1.msra.mxu0 0.0
  %4462 = vmatprep.subr.mxu0 0.0
  %4463 = vmatpush1.msra.mxu0 0.0
  %4464 = vmatprep.subr.mxu0 0.0
  %4465 = vmatpush1.msra.mxu0 0.0
  %4466 = vmatprep.mubr.f32.mxu0 0.0
  %4467 = vmatmul.mubr.f32.gmra.mrb[0].mxu0 %v4400
  %v4468 = vpop.f32.mrb[0].mxu0
  %v4469 = vadd.f32 %v4395, %v4468
  %v4470 = vpop.f32.mrb[0].mxu0
  %4471 = vdwg.mxu0
  %4472 = vst [vmem:[%s16] sm:$0xff] %v4469
  // Predicated region
  $region110: #{cpc_forward.1} parent=0 // pred_check
    _
  $region111: #{cpc_forward.1} parent=0 // pred_check_branch
    %4474 = sbr.rel (0) target = $region113
  $region112: #{cpc_forward.1} parent=0 // pred_region
    _
  $region113: #{cpc_forward.1} parent=0 // pred_fallthru
    _
  // Predicated region
  $region114: #{cpc_forward.1} parent=0 // pred_check
    _
  $region115: #{cpc_forward.1} parent=0 // pred_check_branch
    %4476 = sbr.rel (0) target = $region117
  $region116: #{cpc_forward.1} parent=0 // pred_region
    _
  $region117: #{cpc_forward.1} parent=0 // pred_fallthru
    _
  // Predicated region
  $region118: #{cpc_forward.1} parent=0 // pred_check
    _
  $region119: #{cpc_forward.1} parent=0 // pred_check_branch
    %4478 = sbr.rel (0) target = $region121
  $region120: #{cpc_forward.1} parent=0 // pred_region
    _
  $region121: #{cpc_forward.1} parent=0 // pred_fallthru
    _
  // Predicated region
  $region122: #{cpc_forward.1} parent=0 // pred_check
    _
  $region123: #{cpc_forward.1} parent=0 // pred_check_branch
    %4480 = sbr.rel (0) target = $region125
  $region124: #{cpc_forward.1} parent=0 // pred_region
    _
  $region125: #{cpc_forward.1} parent=0 // pred_fallthru
    _
  // Predicated region
  $region126: #{cpc_forward.1} parent=0 // pred_check
    _
  $region127: #{cpc_forward.1} parent=0 // pred_check_branch
    %4482 = sbr.rel (0) target = $region129
  $region128: #{cpc_forward.1} parent=0 // pred_region
    _
  $region129: #{cpc_forward.1} parent=0 // pred_fallthru
    _
  // Predicated region
  $region130: #{cpc_forward.1} parent=0 // pred_check
    _
  $region131: #{cpc_forward.1} parent=0 // pred_check_branch
    %4484 = sbr.rel (0) target = $region133
  $region132: #{cpc_forward.1} parent=0 // pred_region
    _
  $region133: #{cpc_forward.1} parent=0 // pred_fallthru
    _

</llo_original>
